<compile_context>
chip_gen: v5e
topology: v5e:2x2
jax: 0.10.0
libtpu: 0.0.40
codegen_flags: <defaults>
</compile_context>

<pallas_src>
import jax
import jax.numpy as jnp
from jax.experimental import pallas as pl
from jax.experimental.pallas import tpu as pltpu

_BN_EPS = 1e-5
_VMEM_LIMIT = 48 * 1024 * 1024   # < 64 MiB physical on v7x; well under v5e/v6e physical.


def _round_up(x, m):
    return (x + m - 1) // m * m


def _cparams(*sem):
    return pltpu.CompilerParams(dimension_semantics=tuple(sem),
                                vmem_limit_bytes=_VMEM_LIMIT)


# --------------------------------------------------------------------------------------
# Kernel 1: tiled im2col matmul + fused per-tile BN statistics (used by conv1, stride 2).
# --------------------------------------------------------------------------------------

def _matmul_stats_kernel(x_ref, w_ref, o_ref, s_ref):
    # x: (TM, K) bf16   w: (K, Cout) bf16 (resident)   o: (TM, Cout) f32   s: (1, 2, Cout) f32
    acc = jnp.dot(x_ref[...], w_ref[...], preferred_element_type=jnp.float32)
    o_ref[...] = acc
    s0 = jnp.sum(acc, axis=0, keepdims=True)
    s1 = jnp.sum(acc * acc, axis=0, keepdims=True)
    s_ref[0] = jnp.concatenate([s0, s1], axis=0)


def _conv_im2col(x_nhwc, w_oihw, *, stride, padding):
    N, H, W, Cin = x_nhwc.shape
    Cout, _, KH, KW = w_oihw.shape
    OH = (H + 2 * padding - KH) // stride + 1
    OW = (W + 2 * padding - KW) // stride + 1
    M = N * OH * OW
    K = KH * KW * Cin

    xp = jnp.pad(x_nhwc, ((0, 0), (padding, padding), (padding, padding), (0, 0)))
    taps = []
    for kh in range(KH):
        for kw in range(KW):
            taps.append(xp[:, kh:kh + stride * (OH - 1) + 1:stride,
                              kw:kw + stride * (OW - 1) + 1:stride, :])
    X = jnp.stack(taps, axis=-2).reshape(M, K).astype(jnp.bfloat16)
    Wm = jnp.transpose(w_oihw, (2, 3, 1, 0)).reshape(K, Cout).astype(jnp.bfloat16)

    TM = min(1024, _round_up(M, 8))
    Mp = _round_up(M, TM)
    if Mp != M:
        # explicit zero rows: they contribute 0 to both sum and sum-of-squares.
        X = jnp.pad(X, ((0, Mp - M), (0, 0)))
    nt = Mp // TM

    conv, stats = pl.pallas_call(
        _matmul_stats_kernel,
        out_shape=(jax.ShapeDtypeStruct((Mp, Cout), jnp.float32),
                   jax.ShapeDtypeStruct((nt, 2, Cout), jnp.float32)),
        grid=(nt,),
        in_specs=[pl.BlockSpec((TM, K), lambda i: (i, 0)),
                  pl.BlockSpec((K, Cout), lambda i: (0, 0))],
        out_specs=(pl.BlockSpec((TM, Cout), lambda i: (i, 0)),
                   pl.BlockSpec((1, 2, Cout), lambda i: (i, 0, 0))),
        compiler_params=_cparams("parallel"),
    )(X, Wm)
    return conv, stats, M, (N, OH, OW, Cout)


# --------------------------------------------------------------------------------------
# Kernel 2: direct 3x3 / stride-1 conv per image (9 shifted matmuls) + fused BN statistics.
# --------------------------------------------------------------------------------------

def _make_conv3x3_direct_kernel(OH, OW, Cin, Cout):
    def kernel(xp_ref, w_ref, o_ref, s_ref):
        # xp: (1, OH+2, OW+2, Cin) bf16   w: (9, Cin, Cout) bf16 (resident)
        # o:  (1, OH, OW, Cout) f32       s: (1, 2, Cout) f32
        xw = xp_ref[0]                                             # (OH+2, OW+2, Cin)
        acc = jnp.zeros((OH * OW, Cout), jnp.float32)
        for kh in range(3):
            for kw in range(3):
                tap = xw[kh:kh + OH, kw:kw + OW, :].reshape(OH * OW, Cin)
                acc = acc + jnp.dot(tap, w_ref[3 * kh + kw],
                                    preferred_element_type=jnp.float32)
        o_ref[0] = acc.reshape(OH, OW, Cout)
        s0 = jnp.sum(acc, axis=0, keepdims=True)
        s1 = jnp.sum(acc * acc, axis=0, keepdims=True)
        s_ref[0] = jnp.concatenate([s0, s1], axis=0)
    return kernel


def _conv_direct_3x3_s1(x_nhwc, w_oihw):
    N, H, W, Cin = x_nhwc.shape
    Cout = w_oihw.shape[0]
    OH, OW = H, W
    xp = jnp.pad(x_nhwc, ((0, 0), (1, 1), (1, 1), (0, 0))).astype(jnp.bfloat16)
    wt = jnp.transpose(w_oihw, (2, 3, 1, 0)).reshape(9, Cin, Cout).astype(jnp.bfloat16)

    conv, stats = pl.pallas_call(
        _make_conv3x3_direct_kernel(OH, OW, Cin, Cout),
        out_shape=(jax.ShapeDtypeStruct((N, OH, OW, Cout), jnp.float32),
                   jax.ShapeDtypeStruct((N, 2, Cout), jnp.float32)),
        grid=(N,),
        in_specs=[pl.BlockSpec((1, H + 2, W + 2, Cin), lambda n: (n, 0, 0, 0)),
                  pl.BlockSpec((9, Cin, Cout), lambda n: (0, 0, 0))],
        out_specs=(pl.BlockSpec((1, OH, OW, Cout), lambda n: (n, 0, 0, 0)),
                   pl.BlockSpec((1, 2, Cout), lambda n: (n, 0, 0))),
        compiler_params=_cparams("parallel"),
    )(xp, wt)
    M = N * OH * OW
    return conv.reshape(M, Cout), stats, M, (N, OH, OW, Cout)


# --------------------------------------------------------------------------------------
# Kernel 3: BN normalize + ReLU (tiled, lane-dense folded view for C < 128).
# --------------------------------------------------------------------------------------

def _bn_relu_kernel(x_ref, sc_ref, sh_ref, o_ref):
    o_ref[...] = jnp.maximum(x_ref[...] * sc_ref[...] + sh_ref[...], 0.0)


def _bn_relu(conv_flat, stats, m_real, gamma, beta):
    Mp, C = conv_flat.shape
    tot = jnp.sum(stats, axis=0)                          # (2, C) -- reduce per-tile partials
    mean = tot[0] / float(m_real)
    var = jnp.maximum(tot[1] / float(m_real) - mean * mean, 0.0)   # biased batch variance
    scale = gamma * jax.lax.rsqrt(var + _BN_EPS)
    shift = beta - mean * scale

    fold = 1
    if C < 128 and 128 % C == 0 and Mp % (128 // C) == 0:
        fold = 128 // C                                   # view [Mp, C] as [Mp/f, 128]
    CF = C * fold
    MF = Mp // fold
    x2 = conv_flat.reshape(MF, CF)
    sc = jnp.tile(scale, fold).reshape(1, CF)
    sh = jnp.tile(shift, fold).reshape(1, CF)

    TM = MF if MF <= 2048 else 2048
    out = pl.pallas_call(
        _bn_relu_kernel,
        out_shape=jax.ShapeDtypeStruct((MF, CF), jnp.float32),
        grid=(pl.cdiv(MF, TM),),
        in_specs=[pl.BlockSpec((TM, CF), lambda i: (i, 0)),
                  pl.BlockSpec((1, CF), lambda i: (0, 0)),
                  pl.BlockSpec((1, CF), lambda i: (0, 0))],
        out_specs=pl.BlockSpec((TM, CF), lambda i: (i, 0)),
        compiler_params=_cparams("parallel"),
    )(x2, sc, sh)
    return out.reshape(Mp, C)


def conv_bn_relu(x_nhwc, w_oihw, gamma, beta, *, stride, padding):
    """Conv2d(3x3, bias=False) + BatchNorm2d(training-mode batch stats) + ReLU."""
    N, H, W, Cin = x_nhwc.shape
    Cout, _, KH, KW = w_oihw.shape
    OH = (H + 2 * padding - KH) // stride + 1
    OW = (W + 2 * padding - KW) // stride + 1

    use_direct = (stride == 1 and padding == 1 and KH == 3 and KW == 3
                  and OW % 8 == 0 and Cin % 8 == 0)
    if use_direct:
        conv_flat, stats, m, shape = _conv_direct_3x3_s1(x_nhwc, w_oihw)
    else:
        conv_flat, stats, m, shape = _conv_im2col(x_nhwc, w_oihw, stride=stride, padding=padding)

    act = _bn_relu(conv_flat, stats, m, gamma, beta)
    return act[:m].reshape(shape)


# --------------------------------------------------------------------------------------
# Kernel 4: MaxPool2d(kernel=3, stride=2, padding=1) via 4 even/odd phase planes.
# --------------------------------------------------------------------------------------

def _make_maxpool_kernel(OH, OW):
    def kernel(p_ref, o_ref):
        # p: (4, Hh, Wh, C) phase planes [ee, eo, oe, oo]; o: (1, OH, OW, C)
        ee = p_ref[0]
        eo = p_ref[1]
        oe = p_ref[2]
        oo = p_ref[3]
        m = ee[0:OH, 0:OW, :]
        m = jnp.maximum(m, ee[0:OH, 1:OW + 1, :])
        m = jnp.maximum(m, ee[1:OH + 1, 0:OW, :])
        m = jnp.maximum(m, ee[1:OH + 1, 1:OW + 1, :])
        m = jnp.maximum(m, eo[0:OH, 0:OW, :])
        m = jnp.maximum(m, eo[1:OH + 1, 0:OW, :])
        m = jnp.maximum(m, oe[0:OH, 0:OW, :])
        m = jnp.maximum(m, oe[0:OH, 1:OW + 1, :])
        m = jnp.maximum(m, oo[0:OH, 0:OW, :])
        o_ref[0] = m
    return kernel


def maxpool2d_3x3_s2_p1(x_nhwc):
    N, H, W, C = x_nhwc.shape
    OH = (H + 2 - 3) // 2 + 1
    OW = (W + 2 - 3) // 2 + 1
    Hp = _round_up(H + 2, 2)
    Wp = _round_up(W + 2, 2)
    xp = jnp.pad(x_nhwc, ((0, 0), (1, Hp - H - 1), (1, Wp - W - 1), (0, 0)),
                 constant_values=-jnp.inf)
    Hh, Wh = Hp // 2, Wp // 2
    ph = xp.reshape(N, Hh, 2, Wh, 2, C)
    # phase planes: (h even/odd, w even/odd); flattened into the leading axis -> (N*4, Hh, Wh, C)
    planes = jnp.stack([ph[:, :, 0, :, 0, :], ph[:, :, 0, :, 1, :],
                        ph[:, :, 1, :, 0, :], ph[:, :, 1, :, 1, :]],
                       axis=1).reshape(N * 4, Hh, Wh, C)

    return pl.pallas_call(
        _make_maxpool_kernel(OH, OW),
        out_shape=jax.ShapeDtypeStruct((N, OH, OW, C), x_nhwc.dtype),
        grid=(N,),
        in_specs=[pl.BlockSpec((4, Hh, Wh, C), lambda n: (n, 0, 0, 0))],
        out_specs=pl.BlockSpec((1, OH, OW, C), lambda n: (n, 0, 0, 0)),
        compiler_params=_cparams("parallel"),
    )(planes)


# --------------------------------------------------------------------------------------
# Module: FeatureMap_convolution
# --------------------------------------------------------------------------------------

def init_params(key):
    """Deterministic synthetic parameters with the shapes from FeatureMap_convolution.__init__."""
    ks = jax.random.split(key, 3)

    def conv_w(k, cout, cin, kh=3, kw=3):
        fan_in = cin * kh * kw
        return jax.random.normal(k, (cout, cin, kh, kw), jnp.float32) * jnp.sqrt(2.0 / fan_in)

    return {
        "w1": conv_w(ks[0], 64, 3),   "g1": jnp.ones((64,), jnp.float32),  "b1": jnp.zeros((64,), jnp.float32),
        "w2": conv_w(ks[1], 64, 64),  "g2": jnp.ones((64,), jnp.float32),  "b2": jnp.zeros((64,), jnp.float32),
        "w3": conv_w(ks[2], 128, 64), "g3": jnp.ones((128,), jnp.float32), "b3": jnp.zeros((128,), jnp.float32),
    }


@jax.jit
def feature_map_convolution(x_nchw, params):
    # NCHW (PyTorch) -> NHWC internal.
    x = jnp.transpose(x_nchw, (0, 2, 3, 1)).astype(jnp.float32)
    x = conv_bn_relu(x, params["w1"], params["g1"], params["b1"], stride=2, padding=1)
    x = conv_bn_relu(x, params["w2"], params["g2"], params["b2"], stride=1, padding=1)
    x = conv_bn_relu(x, params["w3"], params["g3"], params["b3"], stride=1, padding=1)
    x = maxpool2d_3x3_s2_p1(x)
    return jnp.transpose(x, (0, 3, 1, 2))  # back to NCHW


if __name__ == "__main__":
    key = jax.random.PRNGKey(0)
    kx, kp = jax.random.split(key)
    x = jax.random.normal(kx, (2, 3, 16, 16), jnp.float32)   # NCHW, in_channels=3
    params = init_params(kp)

    out = feature_map_convolution(x, params)
    out = jax.block_until_ready(out)

    assert out.shape == (2, 128, 4, 4), out.shape
    assert jnp.all(jnp.isfinite(out))
    print("KERNEL_OK")
</pallas_src>

<mosaic_0001>
module attributes {stable_mosaic.version = 11 : i64} {
  func.func @_matmul_stats_kernel(%arg0: i32, %arg1: memref<128x27xbf16, #tpu.memory_space<vmem>>, %arg2: memref<27x64xbf16, #tpu.memory_space<vmem>>, %arg3: memref<128x64xf32, #tpu.memory_space<vmem>>, %arg4: memref<1x2x64xf32, #tpu.memory_space<vmem>>) attributes {dimension_semantics = [#tpu.dimension_semantics<parallel>], iteration_bounds = array<i64: 1>, scalar_prefetch = 0 : i64, scratch_operands = 0 : i64, tpu.core_type = #tpu.core_type<tc>, window_params = [{transform_indices = @transform_0, window_bounds = array<i64: 128, 27>}, {pipeline_mode = #tpu.pipeline_mode<synchronous>, transform_indices = @transform_1, window_bounds = array<i64: 27, 64>}, {transform_indices = @transform_2, window_bounds = array<i64: 128, 64>}, {transform_indices = @transform_3, window_bounds = array<i64: 1, 2, 64>}]} {
    %c0 = arith.constant 0 : index
    %c0_0 = arith.constant 0 : index
    %0 = vector.load %arg1[%c0, %c0_0] : memref<128x27xbf16, #tpu.memory_space<vmem>>, vector<128x27xbf16>
    %c0_1 = arith.constant 0 : index
    %c0_2 = arith.constant 0 : index
    %1 = vector.load %arg2[%c0_1, %c0_2] : memref<27x64xbf16, #tpu.memory_space<vmem>>, vector<27x64xbf16>
    %cst = arith.constant dense<0.000000e+00> : vector<128x64xf32>
    %2 = tpu.matmul %0, %1, %cst {dimension_numbers = #tpu.dot_dimension_numbers<[1], [0], [0], [1], [0, 0, 1, 1], [], []>} : vector<128x27xbf16>, vector<27x64xbf16>, vector<128x64xf32> -> vector<128x64xf32>
    %c0_3 = arith.constant 0 : index
    %c0_4 = arith.constant 0 : index
    %3 = vector.load %arg3[%c0_3, %c0_4] : memref<128x64xf32, #tpu.memory_space<vmem>>, vector<128x64xf32>
    tpu.vector_store %arg3[%c0_3, %c0_4], %2 {strides = array<i32>} : memref<128x64xf32, #tpu.memory_space<vmem>>, vector<128x64xf32>,
    %cst_5 = arith.constant dense<0.000000e+00> : vector<64xf32>
    %4 = vector.multi_reduction <add>, %2, %cst_5 [0] : vector<128x64xf32> to vector<64xf32>
    %5 = vector.shape_cast %4 : vector<64xf32> to vector<1x64xf32>
    %6 = arith.mulf %2, %2 : vector<128x64xf32>
    %cst_6 = arith.constant dense<0.000000e+00> : vector<64xf32>
    %7 = vector.multi_reduction <add>, %6, %cst_6 [0] : vector<128x64xf32> to vector<64xf32>
    %8 = vector.shape_cast %7 : vector<64xf32> to vector<1x64xf32>
    %9 = tpu.concatenate %5, %8 in 0 : vector<1x64xf32>, vector<1x64xf32> -> vector<2x64xf32>
    %c0_7 = arith.constant 0 : index
    %c0_8 = arith.constant 0 : index
    %c0_9 = arith.constant 0 : index
    %10 = vector.load %arg4[%c0_7, %c0_8, %c0_9] : memref<1x2x64xf32, #tpu.memory_space<vmem>>, vector<1x2x64xf32>
    %11 = vector.shape_cast %10 : vector<1x2x64xf32> to vector<2x64xf32>
    %12 = vector.shape_cast %9 : vector<2x64xf32> to vector<1x2x64xf32>
    tpu.vector_store %arg4[%c0_7, %c0_8, %c0_9], %12 {strides = array<i32>} : memref<1x2x64xf32, #tpu.memory_space<vmem>>, vector<1x2x64xf32>,
    return
  }
  func.func @transform_0(%arg0: i32) -> (i32, i32) {
    %c0_i32 = arith.constant 0 : i32
    %c0_i32_0 = arith.constant 0 : i32
    return %arg0, %c0_i32 : i32, i32
  }
  func.func @transform_1(%arg0: i32) -> (i32, i32) {
    %c0_i32 = arith.constant 0 : i32
    %c0_i32_0 = arith.constant 0 : i32
    %c0_i32_1 = arith.constant 0 : i32
    return %c0_i32, %c0_i32_0 : i32, i32
  }
  func.func @transform_2(%arg0: i32) -> (i32, i32) {
    %c0_i32 = arith.constant 0 : i32
    %c0_i32_0 = arith.constant 0 : i32
    return %arg0, %c0_i32 : i32, i32
  }
  func.func @transform_3(%arg0: i32) -> (i32, i32, i32) {
    %c0_i32 = arith.constant 0 : i32
    %c0_i32_0 = arith.constant 0 : i32
    %c0_i32_1 = arith.constant 0 : i32
    return %arg0, %c0_i32, %c0_i32_0 : i32, i32, i32
  }
}

module attributes {stable_mosaic.version = 11 : i64} {
  func.func @_bn_relu_kernel(%arg0: i32, %arg1: memref<64x128xf32, #tpu.memory_space<vmem>>, %arg2: memref<1x128xf32, #tpu.memory_space<vmem>>, %arg3: memref<1x128xf32, #tpu.memory_space<vmem>>, %arg4: memref<64x128xf32, #tpu.memory_space<vmem>>) attributes {dimension_semantics = [#tpu.dimension_semantics<parallel>], iteration_bounds = array<i64: 1>, scalar_prefetch = 0 : i64, scratch_operands = 0 : i64, tpu.core_type = #tpu.core_type<tc>, window_params = [{transform_indices = @transform_0, window_bounds = array<i64: 64, 128>}, {pipeline_mode = #tpu.pipeline_mode<synchronous>, transform_indices = @transform_1, window_bounds = array<i64: 1, 128>}, {pipeline_mode = #tpu.pipeline_mode<synchronous>, transform_indices = @transform_2, window_bounds = array<i64: 1, 128>}, {transform_indices = @transform_3, window_bounds = array<i64: 64, 128>}]} {
    %c0 = arith.constant 0 : index
    %c0_0 = arith.constant 0 : index
    %0 = vector.load %arg1[%c0, %c0_0] : memref<64x128xf32, #tpu.memory_space<vmem>>, vector<64x128xf32>
    %c0_1 = arith.constant 0 : index
    %c0_2 = arith.constant 0 : index
    %1 = vector.load %arg2[%c0_1, %c0_2] : memref<1x128xf32, #tpu.memory_space<vmem>>, vector<1x128xf32>
    %2 = vector.broadcast %1 : vector<1x128xf32> to vector<64x128xf32>
    %3 = arith.mulf %0, %2 : vector<64x128xf32>
    %c0_3 = arith.constant 0 : index
    %c0_4 = arith.constant 0 : index
    %4 = vector.load %arg3[%c0_3, %c0_4] : memref<1x128xf32, #tpu.memory_space<vmem>>, vector<1x128xf32>
    %5 = vector.broadcast %4 : vector<1x128xf32> to vector<64x128xf32>
    %6 = arith.addf %3, %5 : vector<64x128xf32>
    %cst = arith.constant 0.000000e+00 : f32
    %7 = vector.broadcast %cst : f32 to vector<64x128xf32>
    %8 = arith.maximumf %6, %7 : vector<64x128xf32>
    %c0_5 = arith.constant 0 : index
    %c0_6 = arith.constant 0 : index
    %9 = vector.load %arg4[%c0_5, %c0_6] : memref<64x128xf32, #tpu.memory_space<vmem>>, vector<64x128xf32>
    tpu.vector_store %arg4[%c0_5, %c0_6], %8 {strides = array<i32>} : memref<64x128xf32, #tpu.memory_space<vmem>>, vector<64x128xf32>,
    return
  }
  func.func @transform_0(%arg0: i32) -> (i32, i32) {
    %c0_i32 = arith.constant 0 : i32
    %c0_i32_0 = arith.constant 0 : i32
    return %arg0, %c0_i32 : i32, i32
  }
  func.func @transform_1(%arg0: i32) -> (i32, i32) {
    %c0_i32 = arith.constant 0 : i32
    %c0_i32_0 = arith.constant 0 : i32
    %c0_i32_1 = arith.constant 0 : i32
    return %c0_i32, %c0_i32_0 : i32, i32
  }
  func.func @transform_2(%arg0: i32) -> (i32, i32) {
    %c0_i32 = arith.constant 0 : i32
    %c0_i32_0 = arith.constant 0 : i32
    %c0_i32_1 = arith.constant 0 : i32
    return %c0_i32, %c0_i32_0 : i32, i32
  }
  func.func @transform_3(%arg0: i32) -> (i32, i32) {
    %c0_i32 = arith.constant 0 : i32
    %c0_i32_0 = arith.constant 0 : i32
    return %arg0, %c0_i32 : i32, i32
  }
}

module attributes {stable_mosaic.version = 11 : i64} {
  func.func @kernel(%arg0: i32, %arg1: memref<1x10x10x64xbf16, #tpu.memory_space<vmem>>, %arg2: memref<9x64x64xbf16, #tpu.memory_space<vmem>>, %arg3: memref<1x8x8x64xf32, #tpu.memory_space<vmem>>, %arg4: memref<1x2x64xf32, #tpu.memory_space<vmem>>) attributes {dimension_semantics = [#tpu.dimension_semantics<parallel>], iteration_bounds = array<i64: 2>, scalar_prefetch = 0 : i64, scratch_operands = 0 : i64, tpu.core_type = #tpu.core_type<tc>, window_params = [{transform_indices = @transform_0, window_bounds = array<i64: 1, 10, 10, 64>}, {pipeline_mode = #tpu.pipeline_mode<synchronous>, transform_indices = @transform_1, window_bounds = array<i64: 9, 64, 64>}, {transform_indices = @transform_2, window_bounds = array<i64: 1, 8, 8, 64>}, {transform_indices = @transform_3, window_bounds = array<i64: 1, 2, 64>}]} {
    %c0 = arith.constant 0 : index
    %c0_0 = arith.constant 0 : index
    %c0_1 = arith.constant 0 : index
    %c0_2 = arith.constant 0 : index
    %0 = vector.load %arg1[%c0, %c0_0, %c0_1, %c0_2] : memref<1x10x10x64xbf16, #tpu.memory_space<vmem>>, vector<1x10x10x64xbf16>
    %1 = vector.shape_cast %0 : vector<1x10x10x64xbf16> to vector<10x10x64xbf16>
    %cst = arith.constant 0.000000e+00 : f32
    %2 = vector.broadcast %cst : f32 to vector<64x64xf32>
    %3 = vector.extract_strided_slice %1 {offsets = [0, 0, 0], sizes = [8, 8, 64], strides = [1, 1, 1]} : vector<10x10x64xbf16> to vector<8x8x64xbf16>
    %4 = vector.shape_cast %3 : vector<8x8x64xbf16> to vector<64x64xbf16>
    %c0_3 = arith.constant 0 : index
    %c0_4 = arith.constant 0 : index
    %c0_5 = arith.constant 0 : index
    %5 = vector.load %arg2[%c0_3, %c0_4, %c0_5] : memref<9x64x64xbf16, #tpu.memory_space<vmem>>, vector<1x64x64xbf16>
    %6 = vector.shape_cast %5 : vector<1x64x64xbf16> to vector<64x64xbf16>
    %cst_6 = arith.constant dense<0.000000e+00> : vector<64x64xf32>
    %7 = tpu.matmul %4, %6, %cst_6 {dimension_numbers = #tpu.dot_dimension_numbers<[1], [0], [0], [1], [0, 0, 1, 1], [], []>} : vector<64x64xbf16>, vector<64x64xbf16>, vector<64x64xf32> -> vector<64x64xf32>
    %8 = arith.addf %2, %7 : vector<64x64xf32>
    %9 = vector.extract_strided_slice %1 {offsets = [0, 1, 0], sizes = [8, 8, 64], strides = [1, 1, 1]} : vector<10x10x64xbf16> to vector<8x8x64xbf16>
    %10 = vector.shape_cast %9 : vector<8x8x64xbf16> to vector<64x64xbf16>
    %c1 = arith.constant 1 : index
    %c0_7 = arith.constant 0 : index
    %c0_8 = arith.constant 0 : index
    %11 = vector.load %arg2[%c1, %c0_7, %c0_8] : memref<9x64x64xbf16, #tpu.memory_space<vmem>>, vector<1x64x64xbf16>
    %12 = vector.shape_cast %11 : vector<1x64x64xbf16> to vector<64x64xbf16>
    %cst_9 = arith.constant dense<0.000000e+00> : vector<64x64xf32>
    %13 = tpu.matmul %10, %12, %cst_9 {dimension_numbers = #tpu.dot_dimension_numbers<[1], [0], [0], [1], [0, 0, 1, 1], [], []>} : vector<64x64xbf16>, vector<64x64xbf16>, vector<64x64xf32> -> vector<64x64xf32>
    %14 = arith.addf %8, %13 : vector<64x64xf32>
    %15 = vector.extract_strided_slice %1 {offsets = [0, 2, 0], sizes = [8, 8, 64], strides = [1, 1, 1]} : vector<10x10x64xbf16> to vector<8x8x64xbf16>
    %16 = vector.shape_cast %15 : vector<8x8x64xbf16> to vector<64x64xbf16>
    %c2 = arith.constant 2 : index
    %c0_10 = arith.constant 0 : index
    %c0_11 = arith.constant 0 : index
    %17 = vector.load %arg2[%c2, %c0_10, %c0_11] : memref<9x64x64xbf16, #tpu.memory_space<vmem>>, vector<1x64x64xbf16>
    %18 = vector.shape_cast %17 : vector<1x64x64xbf16> to vector<64x64xbf16>
    %cst_12 = arith.constant dense<0.000000e+00> : vector<64x64xf32>
    %19 = tpu.matmul %16, %18, %cst_12 {dimension_numbers = #tpu.dot_dimension_numbers<[1], [0], [0], [1], [0, 0, 1, 1], [], []>} : vector<64x64xbf16>, vector<64x64xbf16>, vector<64x64xf32> -> vector<64x64xf32>
    %20 = arith.addf %14, %19 : vector<64x64xf32>
    %21 = vector.extract_strided_slice %1 {offsets = [1, 0, 0], sizes = [8, 8, 64], strides = [1, 1, 1]} : vector<10x10x64xbf16> to vector<8x8x64xbf16>
    %22 = vector.shape_cast %21 : vector<8x8x64xbf16> to vector<64x64xbf16>
    %c3 = arith.constant 3 : index
    %c0_13 = arith.constant 0 : index
    %c0_14 = arith.constant 0 : index
    %23 = vector.load %arg2[%c3, %c0_13, %c0_14] : memref<9x64x64xbf16, #tpu.memory_space<vmem>>, vector<1x64x64xbf16>
    %24 = vector.shape_cast %23 : vector<1x64x64xbf16> to vector<64x64xbf16>
    %cst_15 = arith.constant dense<0.000000e+00> : vector<64x64xf32>
    %25 = tpu.matmul %22, %24, %cst_15 {dimension_numbers = #tpu.dot_dimension_numbers<[1], [0], [0], [1], [0, 0, 1, 1], [], []>} : vector<64x64xbf16>, vector<64x64xbf16>, vector<64x64xf32> -> vector<64x64xf32>
    %26 = arith.addf %20, %25 : vector<64x64xf32>
    %27 = vector.extract_strided_slice %1 {offsets = [1, 1, 0], sizes = [8, 8, 64], strides = [1, 1, 1]} : vector<10x10x64xbf16> to vector<8x8x64xbf16>
    %28 = vector.shape_cast %27 : vector<8x8x64xbf16> to vector<64x64xbf16>
    %c4 = arith.constant 4 : index
    %c0_16 = arith.constant 0 : index
    %c0_17 = arith.constant 0 : index
    %29 = vector.load %arg2[%c4, %c0_16, %c0_17] : memref<9x64x64xbf16, #tpu.memory_space<vmem>>, vector<1x64x64xbf16>
    %30 = vector.shape_cast %29 : vector<1x64x64xbf16> to vector<64x64xbf16>
    %cst_18 = arith.constant dense<0.000000e+00> : vector<64x64xf32>
    %31 = tpu.matmul %28, %30, %cst_18 {dimension_numbers = #tpu.dot_dimension_numbers<[1], [0], [0], [1], [0, 0, 1, 1], [], []>} : vector<64x64xbf16>, vector<64x64xbf16>, vector<64x64xf32> -> vector<64x64xf32>
    %32 = arith.addf %26, %31 : vector<64x64xf32>
    %33 = vector.extract_strided_slice %1 {offsets = [1, 2, 0], sizes = [8, 8, 64], strides = [1, 1, 1]} : vector<10x10x64xbf16> to vector<8x8x64xbf16>
    %34 = vector.shape_cast %33 : vector<8x8x64xbf16> to vector<64x64xbf16>
    %c5 = arith.constant 5 : index
    %c0_19 = arith.constant 0 : index
    %c0_20 = arith.constant 0 : index
    %35 = vector.load %arg2[%c5, %c0_19, %c0_20] : memref<9x64x64xbf16, #tpu.memory_space<vmem>>, vector<1x64x64xbf16>
    %36 = vector.shape_cast %35 : vector<1x64x64xbf16> to vector<64x64xbf16>
    %cst_21 = arith.constant dense<0.000000e+00> : vector<64x64xf32>
    %37 = tpu.matmul %34, %36, %cst_21 {dimension_numbers = #tpu.dot_dimension_numbers<[1], [0], [0], [1], [0, 0, 1, 1], [], []>} : vector<64x64xbf16>, vector<64x64xbf16>, vector<64x64xf32> -> vector<64x64xf32>
    %38 = arith.addf %32, %37 : vector<64x64xf32>
    %39 = vector.extract_strided_slice %1 {offsets = [2, 0, 0], sizes = [8, 8, 64], strides = [1, 1, 1]} : vector<10x10x64xbf16> to vector<8x8x64xbf16>
    %40 = vector.shape_cast %39 : vector<8x8x64xbf16> to vector<64x64xbf16>
    %c6 = arith.constant 6 : index
    %c0_22 = arith.constant 0 : index
    %c0_23 = arith.constant 0 : index
    %41 = vector.load %arg2[%c6, %c0_22, %c0_23] : memref<9x64x64xbf16, #tpu.memory_space<vmem>>, vector<1x64x64xbf16>
    %42 = vector.shape_cast %41 : vector<1x64x64xbf16> to vector<64x64xbf16>
    %cst_24 = arith.constant dense<0.000000e+00> : vector<64x64xf32>
    %43 = tpu.matmul %40, %42, %cst_24 {dimension_numbers = #tpu.dot_dimension_numbers<[1], [0], [0], [1], [0, 0, 1, 1], [], []>} : vector<64x64xbf16>, vector<64x64xbf16>, vector<64x64xf32> -> vector<64x64xf32>
    %44 = arith.addf %38, %43 : vector<64x64xf32>
    %45 = vector.extract_strided_slice %1 {offsets = [2, 1, 0], sizes = [8, 8, 64], strides = [1, 1, 1]} : vector<10x10x64xbf16> to vector<8x8x64xbf16>
    %46 = vector.shape_cast %45 : vector<8x8x64xbf16> to vector<64x64xbf16>
    %c7 = arith.constant 7 : index
    %c0_25 = arith.constant 0 : index
    %c0_26 = arith.constant 0 : index
    %47 = vector.load %arg2[%c7, %c0_25, %c0_26] : memref<9x64x64xbf16, #tpu.memory_space<vmem>>, vector<1x64x64xbf16>
    %48 = vector.shape_cast %47 : vector<1x64x64xbf16> to vector<64x64xbf16>
    %cst_27 = arith.constant dense<0.000000e+00> : vector<64x64xf32>
    %49 = tpu.matmul %46, %48, %cst_27 {dimension_numbers = #tpu.dot_dimension_numbers<[1], [0], [0], [1], [0, 0, 1, 1], [], []>} : vector<64x64xbf16>, vector<64x64xbf16>, vector<64x64xf32> -> vector<64x64xf32>
    %50 = arith.addf %44, %49 : vector<64x64xf32>
    %51 = vector.extract_strided_slice %1 {offsets = [2, 2, 0], sizes = [8, 8, 64], strides = [1, 1, 1]} : vector<10x10x64xbf16> to vector<8x8x64xbf16>
    %52 = vector.shape_cast %51 : vector<8x8x64xbf16> to vector<64x64xbf16>
    %c8 = arith.constant 8 : index
    %c0_28 = arith.constant 0 : index
    %c0_29 = arith.constant 0 : index
    %53 = vector.load %arg2[%c8, %c0_28, %c0_29] : memref<9x64x64xbf16, #tpu.memory_space<vmem>>, vector<1x64x64xbf16>
    %54 = vector.shape_cast %53 : vector<1x64x64xbf16> to vector<64x64xbf16>
    %cst_30 = arith.constant dense<0.000000e+00> : vector<64x64xf32>
    %55 = tpu.matmul %52, %54, %cst_30 {dimension_numbers = #tpu.dot_dimension_numbers<[1], [0], [0], [1], [0, 0, 1, 1], [], []>} : vector<64x64xbf16>, vector<64x64xbf16>, vector<64x64xf32> -> vector<64x64xf32>
    %56 = arith.addf %50, %55 : vector<64x64xf32>
    %57 = vector.shape_cast %56 : vector<64x64xf32> to vector<8x8x64xf32>
    %c0_31 = arith.constant 0 : index
    %c0_32 = arith.constant 0 : index
    %c0_33 = arith.constant 0 : index
    %c0_34 = arith.constant 0 : index
    %58 = vector.load %arg3[%c0_31, %c0_32, %c0_33, %c0_34] : memref<1x8x8x64xf32, #tpu.memory_space<vmem>>, vector<1x8x8x64xf32>
    %59 = vector.shape_cast %58 : vector<1x8x8x64xf32> to vector<8x8x64xf32>
    %60 = vector.shape_cast %57 : vector<8x8x64xf32> to vector<1x8x8x64xf32>
    tpu.vector_store %arg3[%c0_31, %c0_32, %c0_33, %c0_34], %60 {strides = array<i32>} : memref<1x8x8x64xf32, #tpu.memory_space<vmem>>, vector<1x8x8x64xf32>,
    %cst_35 = arith.constant dense<0.000000e+00> : vector<64xf32>
    %61 = vector.multi_reduction <add>, %56, %cst_35 [0] : vector<64x64xf32> to vector<64xf32>
    %62 = vector.shape_cast %61 : vector<64xf32> to vector<1x64xf32>
    %63 = arith.mulf %56, %56 : vector<64x64xf32>
    %cst_36 = arith.constant dense<0.000000e+00> : vector<64xf32>
    %64 = vector.multi_reduction <add>, %63, %cst_36 [0] : vector<64x64xf32> to vector<64xf32>
    %65 = vector.shape_cast %64 : vector<64xf32> to vector<1x64xf32>
    %66 = tpu.concatenate %62, %65 in 0 : vector<1x64xf32>, vector<1x64xf32> -> vector<2x64xf32>
    %c0_37 = arith.constant 0 : index
    %c0_38 = arith.constant 0 : index
    %c0_39 = arith.constant 0 : index
    %67 = vector.load %arg4[%c0_37, %c0_38, %c0_39] : memref<1x2x64xf32, #tpu.memory_space<vmem>>, vector<1x2x64xf32>
    %68 = vector.shape_cast %67 : vector<1x2x64xf32> to vector<2x64xf32>
    %69 = vector.shape_cast %66 : vector<2x64xf32> to vector<1x2x64xf32>
    tpu.vector_store %arg4[%c0_37, %c0_38, %c0_39], %69 {strides = array<i32>} : memref<1x2x64xf32, #tpu.memory_space<vmem>>, vector<1x2x64xf32>,
    return
  }
  func.func @transform_0(%arg0: i32) -> (i32, i32, i32, i32) {
    %c0_i32 = arith.constant 0 : i32
    %c0_i32_0 = arith.constant 0 : i32
    %c0_i32_1 = arith.constant 0 : i32
    %c0_i32_2 = arith.constant 0 : i32
    return %arg0, %c0_i32, %c0_i32_0, %c0_i32_1 : i32, i32, i32, i32
  }
  func.func @transform_1(%arg0: i32) -> (i32, i32, i32) {
    %c0_i32 = arith.constant 0 : i32
    %c0_i32_0 = arith.constant 0 : i32
    %c0_i32_1 = arith.constant 0 : i32
    %c0_i32_2 = arith.constant 0 : i32
    return %c0_i32, %c0_i32_0, %c0_i32_1 : i32, i32, i32
  }
  func.func @transform_2(%arg0: i32) -> (i32, i32, i32, i32) {
    %c0_i32 = arith.constant 0 : i32
    %c0_i32_0 = arith.constant 0 : i32
    %c0_i32_1 = arith.constant 0 : i32
    %c0_i32_2 = arith.constant 0 : i32
    return %arg0, %c0_i32, %c0_i32_0, %c0_i32_1 : i32, i32, i32, i32
  }
  func.func @transform_3(%arg0: i32) -> (i32, i32, i32) {
    %c0_i32 = arith.constant 0 : i32
    %c0_i32_0 = arith.constant 0 : i32
    %c0_i32_1 = arith.constant 0 : i32
    return %arg0, %c0_i32, %c0_i32_0 : i32, i32, i32
  }
}

module attributes {stable_mosaic.version = 11 : i64} {
  func.func @_bn_relu_kernel(%arg0: i32, %arg1: memref<128x128xf32, #tpu.memory_space<vmem>>, %arg2: memref<1x128xf32, #tpu.memory_space<vmem>>, %arg3: memref<1x128xf32, #tpu.memory_space<vmem>>, %arg4: memref<128x128xf32, #tpu.memory_space<vmem>>) attributes {dimension_semantics = [#tpu.dimension_semantics<parallel>], iteration_bounds = array<i64: 1>, scalar_prefetch = 0 : i64, scratch_operands = 0 : i64, tpu.core_type = #tpu.core_type<tc>, window_params = [{transform_indices = @transform_0, window_bounds = array<i64: 128, 128>}, {pipeline_mode = #tpu.pipeline_mode<synchronous>, transform_indices = @transform_1, window_bounds = array<i64: 1, 128>}, {pipeline_mode = #tpu.pipeline_mode<synchronous>, transform_indices = @transform_2, window_bounds = array<i64: 1, 128>}, {transform_indices = @transform_3, window_bounds = array<i64: 128, 128>}]} {
    %c0 = arith.constant 0 : index
    %c0_0 = arith.constant 0 : index
    %0 = vector.load %arg1[%c0, %c0_0] : memref<128x128xf32, #tpu.memory_space<vmem>>, vector<128x128xf32>
    %c0_1 = arith.constant 0 : index
    %c0_2 = arith.constant 0 : index
    %1 = vector.load %arg2[%c0_1, %c0_2] : memref<1x128xf32, #tpu.memory_space<vmem>>, vector<1x128xf32>
    %2 = vector.broadcast %1 : vector<1x128xf32> to vector<128x128xf32>
    %3 = arith.mulf %0, %2 : vector<128x128xf32>
    %c0_3 = arith.constant 0 : index
    %c0_4 = arith.constant 0 : index
    %4 = vector.load %arg3[%c0_3, %c0_4] : memref<1x128xf32, #tpu.memory_space<vmem>>, vector<1x128xf32>
    %5 = vector.broadcast %4 : vector<1x128xf32> to vector<128x128xf32>
    %6 = arith.addf %3, %5 : vector<128x128xf32>
    %cst = arith.constant 0.000000e+00 : f32
    %7 = vector.broadcast %cst : f32 to vector<128x128xf32>
    %8 = arith.maximumf %6, %7 : vector<128x128xf32>
    %c0_5 = arith.constant 0 : index
    %c0_6 = arith.constant 0 : index
    %9 = vector.load %arg4[%c0_5, %c0_6] : memref<128x128xf32, #tpu.memory_space<vmem>>, vector<128x128xf32>
    tpu.vector_store %arg4[%c0_5, %c0_6], %8 {strides = array<i32>} : memref<128x128xf32, #tpu.memory_space<vmem>>, vector<128x128xf32>,
    return
  }
  func.func @transform_0(%arg0: i32) -> (i32, i32) {
    %c0_i32 = arith.constant 0 : i32
    %c0_i32_0 = arith.constant 0 : i32
    return %arg0, %c0_i32 : i32, i32
  }
  func.func @transform_1(%arg0: i32) -> (i32, i32) {
    %c0_i32 = arith.constant 0 : i32
    %c0_i32_0 = arith.constant 0 : i32
    %c0_i32_1 = arith.constant 0 : i32
    return %c0_i32, %c0_i32_0 : i32, i32
  }
  func.func @transform_2(%arg0: i32) -> (i32, i32) {
    %c0_i32 = arith.constant 0 : i32
    %c0_i32_0 = arith.constant 0 : i32
    %c0_i32_1 = arith.constant 0 : i32
    return %c0_i32, %c0_i32_0 : i32, i32
  }
  func.func @transform_3(%arg0: i32) -> (i32, i32) {
    %c0_i32 = arith.constant 0 : i32
    %c0_i32_0 = arith.constant 0 : i32
    return %arg0, %c0_i32 : i32, i32
  }
}

module attributes {stable_mosaic.version = 11 : i64} {
  func.func @kernel(%arg0: i32, %arg1: memref<1x10x10x64xbf16, #tpu.memory_space<vmem>>, %arg2: memref<9x64x128xbf16, #tpu.memory_space<vmem>>, %arg3: memref<1x8x8x128xf32, #tpu.memory_space<vmem>>, %arg4: memref<1x2x128xf32, #tpu.memory_space<vmem>>) attributes {dimension_semantics = [#tpu.dimension_semantics<parallel>], iteration_bounds = array<i64: 2>, scalar_prefetch = 0 : i64, scratch_operands = 0 : i64, tpu.core_type = #tpu.core_type<tc>, window_params = [{transform_indices = @transform_0, window_bounds = array<i64: 1, 10, 10, 64>}, {pipeline_mode = #tpu.pipeline_mode<synchronous>, transform_indices = @transform_1, window_bounds = array<i64: 9, 64, 128>}, {transform_indices = @transform_2, window_bounds = array<i64: 1, 8, 8, 128>}, {transform_indices = @transform_3, window_bounds = array<i64: 1, 2, 128>}]} {
    %c0 = arith.constant 0 : index
    %c0_0 = arith.constant 0 : index
    %c0_1 = arith.constant 0 : index
    %c0_2 = arith.constant 0 : index
    %0 = vector.load %arg1[%c0, %c0_0, %c0_1, %c0_2] : memref<1x10x10x64xbf16, #tpu.memory_space<vmem>>, vector<1x10x10x64xbf16>
    %1 = vector.shape_cast %0 : vector<1x10x10x64xbf16> to vector<10x10x64xbf16>
    %cst = arith.constant 0.000000e+00 : f32
    %2 = vector.broadcast %cst : f32 to vector<64x128xf32>
    %3 = vector.extract_strided_slice %1 {offsets = [0, 0, 0], sizes = [8, 8, 64], strides = [1, 1, 1]} : vector<10x10x64xbf16> to vector<8x8x64xbf16>
    %4 = vector.shape_cast %3 : vector<8x8x64xbf16> to vector<64x64xbf16>
    %c0_3 = arith.constant 0 : index
    %c0_4 = arith.constant 0 : index
    %c0_5 = arith.constant 0 : index
    %5 = vector.load %arg2[%c0_3, %c0_4, %c0_5] : memref<9x64x128xbf16, #tpu.memory_space<vmem>>, vector<1x64x128xbf16>
    %6 = vector.shape_cast %5 : vector<1x64x128xbf16> to vector<64x128xbf16>
    %cst_6 = arith.constant dense<0.000000e+00> : vector<64x128xf32>
    %7 = tpu.matmul %4, %6, %cst_6 {dimension_numbers = #tpu.dot_dimension_numbers<[1], [0], [0], [1], [0, 0, 1, 1], [], []>} : vector<64x64xbf16>, vector<64x128xbf16>, vector<64x128xf32> -> vector<64x128xf32>
    %8 = arith.addf %2, %7 : vector<64x128xf32>
    %9 = vector.extract_strided_slice %1 {offsets = [0, 1, 0], sizes = [8, 8, 64], strides = [1, 1, 1]} : vector<10x10x64xbf16> to vector<8x8x64xbf16>
    %10 = vector.shape_cast %9 : vector<8x8x64xbf16> to vector<64x64xbf16>
    %c1 = arith.constant 1 : index
    %c0_7 = arith.constant 0 : index
    %c0_8 = arith.constant 0 : index
    %11 = vector.load %arg2[%c1, %c0_7, %c0_8] : memref<9x64x128xbf16, #tpu.memory_space<vmem>>, vector<1x64x128xbf16>
    %12 = vector.shape_cast %11 : vector<1x64x128xbf16> to vector<64x128xbf16>
    %cst_9 = arith.constant dense<0.000000e+00> : vector<64x128xf32>
    %13 = tpu.matmul %10, %12, %cst_9 {dimension_numbers = #tpu.dot_dimension_numbers<[1], [0], [0], [1], [0, 0, 1, 1], [], []>} : vector<64x64xbf16>, vector<64x128xbf16>, vector<64x128xf32> -> vector<64x128xf32>
    %14 = arith.addf %8, %13 : vector<64x128xf32>
    %15 = vector.extract_strided_slice %1 {offsets = [0, 2, 0], sizes = [8, 8, 64], strides = [1, 1, 1]} : vector<10x10x64xbf16> to vector<8x8x64xbf16>
    %16 = vector.shape_cast %15 : vector<8x8x64xbf16> to vector<64x64xbf16>
    %c2 = arith.constant 2 : index
    %c0_10 = arith.constant 0 : index
    %c0_11 = arith.constant 0 : index
    %17 = vector.load %arg2[%c2, %c0_10, %c0_11] : memref<9x64x128xbf16, #tpu.memory_space<vmem>>, vector<1x64x128xbf16>
    %18 = vector.shape_cast %17 : vector<1x64x128xbf16> to vector<64x128xbf16>
    %cst_12 = arith.constant dense<0.000000e+00> : vector<64x128xf32>
    %19 = tpu.matmul %16, %18, %cst_12 {dimension_numbers = #tpu.dot_dimension_numbers<[1], [0], [0], [1], [0, 0, 1, 1], [], []>} : vector<64x64xbf16>, vector<64x128xbf16>, vector<64x128xf32> -> vector<64x128xf32>
    %20 = arith.addf %14, %19 : vector<64x128xf32>
    %21 = vector.extract_strided_slice %1 {offsets = [1, 0, 0], sizes = [8, 8, 64], strides = [1, 1, 1]} : vector<10x10x64xbf16> to vector<8x8x64xbf16>
    %22 = vector.shape_cast %21 : vector<8x8x64xbf16> to vector<64x64xbf16>
    %c3 = arith.constant 3 : index
    %c0_13 = arith.constant 0 : index
    %c0_14 = arith.constant 0 : index
    %23 = vector.load %arg2[%c3, %c0_13, %c0_14] : memref<9x64x128xbf16, #tpu.memory_space<vmem>>, vector<1x64x128xbf16>
    %24 = vector.shape_cast %23 : vector<1x64x128xbf16> to vector<64x128xbf16>
    %cst_15 = arith.constant dense<0.000000e+00> : vector<64x128xf32>
    %25 = tpu.matmul %22, %24, %cst_15 {dimension_numbers = #tpu.dot_dimension_numbers<[1], [0], [0], [1], [0, 0, 1, 1], [], []>} : vector<64x64xbf16>, vector<64x128xbf16>, vector<64x128xf32> -> vector<64x128xf32>
    %26 = arith.addf %20, %25 : vector<64x128xf32>
    %27 = vector.extract_strided_slice %1 {offsets = [1, 1, 0], sizes = [8, 8, 64], strides = [1, 1, 1]} : vector<10x10x64xbf16> to vector<8x8x64xbf16>
    %28 = vector.shape_cast %27 : vector<8x8x64xbf16> to vector<64x64xbf16>
    %c4 = arith.constant 4 : index
    %c0_16 = arith.constant 0 : index
    %c0_17 = arith.constant 0 : index
    %29 = vector.load %arg2[%c4, %c0_16, %c0_17] : memref<9x64x128xbf16, #tpu.memory_space<vmem>>, vector<1x64x128xbf16>
    %30 = vector.shape_cast %29 : vector<1x64x128xbf16> to vector<64x128xbf16>
    %cst_18 = arith.constant dense<0.000000e+00> : vector<64x128xf32>
    %31 = tpu.matmul %28, %30, %cst_18 {dimension_numbers = #tpu.dot_dimension_numbers<[1], [0], [0], [1], [0, 0, 1, 1], [], []>} : vector<64x64xbf16>, vector<64x128xbf16>, vector<64x128xf32> -> vector<64x128xf32>
    %32 = arith.addf %26, %31 : vector<64x128xf32>
    %33 = vector.extract_strided_slice %1 {offsets = [1, 2, 0], sizes = [8, 8, 64], strides = [1, 1, 1]} : vector<10x10x64xbf16> to vector<8x8x64xbf16>
    %34 = vector.shape_cast %33 : vector<8x8x64xbf16> to vector<64x64xbf16>
    %c5 = arith.constant 5 : index
    %c0_19 = arith.constant 0 : index
    %c0_20 = arith.constant 0 : index
    %35 = vector.load %arg2[%c5, %c0_19, %c0_20] : memref<9x64x128xbf16, #tpu.memory_space<vmem>>, vector<1x64x128xbf16>
    %36 = vector.shape_cast %35 : vector<1x64x128xbf16> to vector<64x128xbf16>
    %cst_21 = arith.constant dense<0.000000e+00> : vector<64x128xf32>
    %37 = tpu.matmul %34, %36, %cst_21 {dimension_numbers = #tpu.dot_dimension_numbers<[1], [0], [0], [1], [0, 0, 1, 1], [], []>} : vector<64x64xbf16>, vector<64x128xbf16>, vector<64x128xf32> -> vector<64x128xf32>
    %38 = arith.addf %32, %37 : vector<64x128xf32>
    %39 = vector.extract_strided_slice %1 {offsets = [2, 0, 0], sizes = [8, 8, 64], strides = [1, 1, 1]} : vector<10x10x64xbf16> to vector<8x8x64xbf16>
    %40 = vector.shape_cast %39 : vector<8x8x64xbf16> to vector<64x64xbf16>
    %c6 = arith.constant 6 : index
    %c0_22 = arith.constant 0 : index
    %c0_23 = arith.constant 0 : index
    %41 = vector.load %arg2[%c6, %c0_22, %c0_23] : memref<9x64x128xbf16, #tpu.memory_space<vmem>>, vector<1x64x128xbf16>
    %42 = vector.shape_cast %41 : vector<1x64x128xbf16> to vector<64x128xbf16>
    %cst_24 = arith.constant dense<0.000000e+00> : vector<64x128xf32>
    %43 = tpu.matmul %40, %42, %cst_24 {dimension_numbers = #tpu.dot_dimension_numbers<[1], [0], [0], [1], [0, 0, 1, 1], [], []>} : vector<64x64xbf16>, vector<64x128xbf16>, vector<64x128xf32> -> vector<64x128xf32>
    %44 = arith.addf %38, %43 : vector<64x128xf32>
    %45 = vector.extract_strided_slice %1 {offsets = [2, 1, 0], sizes = [8, 8, 64], strides = [1, 1, 1]} : vector<10x10x64xbf16> to vector<8x8x64xbf16>
    %46 = vector.shape_cast %45 : vector<8x8x64xbf16> to vector<64x64xbf16>
    %c7 = arith.constant 7 : index
    %c0_25 = arith.constant 0 : index
    %c0_26 = arith.constant 0 : index
    %47 = vector.load %arg2[%c7, %c0_25, %c0_26] : memref<9x64x128xbf16, #tpu.memory_space<vmem>>, vector<1x64x128xbf16>
    %48 = vector.shape_cast %47 : vector<1x64x128xbf16> to vector<64x128xbf16>
    %cst_27 = arith.constant dense<0.000000e+00> : vector<64x128xf32>
    %49 = tpu.matmul %46, %48, %cst_27 {dimension_numbers = #tpu.dot_dimension_numbers<[1], [0], [0], [1], [0, 0, 1, 1], [], []>} : vector<64x64xbf16>, vector<64x128xbf16>, vector<64x128xf32> -> vector<64x128xf32>
    %50 = arith.addf %44, %49 : vector<64x128xf32>
    %51 = vector.extract_strided_slice %1 {offsets = [2, 2, 0], sizes = [8, 8, 64], strides = [1, 1, 1]} : vector<10x10x64xbf16> to vector<8x8x64xbf16>
    %52 = vector.shape_cast %51 : vector<8x8x64xbf16> to vector<64x64xbf16>
    %c8 = arith.constant 8 : index
    %c0_28 = arith.constant 0 : index
    %c0_29 = arith.constant 0 : index
    %53 = vector.load %arg2[%c8, %c0_28, %c0_29] : memref<9x64x128xbf16, #tpu.memory_space<vmem>>, vector<1x64x128xbf16>
    %54 = vector.shape_cast %53 : vector<1x64x128xbf16> to vector<64x128xbf16>
    %cst_30 = arith.constant dense<0.000000e+00> : vector<64x128xf32>
    %55 = tpu.matmul %52, %54, %cst_30 {dimension_numbers = #tpu.dot_dimension_numbers<[1], [0], [0], [1], [0, 0, 1, 1], [], []>} : vector<64x64xbf16>, vector<64x128xbf16>, vector<64x128xf32> -> vector<64x128xf32>
    %56 = arith.addf %50, %55 : vector<64x128xf32>
    %57 = vector.shape_cast %56 : vector<64x128xf32> to vector<8x8x128xf32>
    %c0_31 = arith.constant 0 : index
    %c0_32 = arith.constant 0 : index
    %c0_33 = arith.constant 0 : index
    %c0_34 = arith.constant 0 : index
    %58 = vector.load %arg3[%c0_31, %c0_32, %c0_33, %c0_34] : memref<1x8x8x128xf32, #tpu.memory_space<vmem>>, vector<1x8x8x128xf32>
    %59 = vector.shape_cast %58 : vector<1x8x8x128xf32> to vector<8x8x128xf32>
    %60 = vector.shape_cast %57 : vector<8x8x128xf32> to vector<1x8x8x128xf32>
    tpu.vector_store %arg3[%c0_31, %c0_32, %c0_33, %c0_34], %60 {strides = array<i32>} : memref<1x8x8x128xf32, #tpu.memory_space<vmem>>, vector<1x8x8x128xf32>,
    %cst_35 = arith.constant dense<0.000000e+00> : vector<128xf32>
    %61 = vector.multi_reduction <add>, %56, %cst_35 [0] : vector<64x128xf32> to vector<128xf32>
    %62 = vector.shape_cast %61 : vector<128xf32> to vector<1x128xf32>
    %63 = arith.mulf %56, %56 : vector<64x128xf32>
    %cst_36 = arith.constant dense<0.000000e+00> : vector<128xf32>
    %64 = vector.multi_reduction <add>, %63, %cst_36 [0] : vector<64x128xf32> to vector<128xf32>
    %65 = vector.shape_cast %64 : vector<128xf32> to vector<1x128xf32>
    %66 = tpu.concatenate %62, %65 in 0 : vector<1x128xf32>, vector<1x128xf32> -> vector<2x128xf32>
    %c0_37 = arith.constant 0 : index
    %c0_38 = arith.constant 0 : index
    %c0_39 = arith.constant 0 : index
    %67 = vector.load %arg4[%c0_37, %c0_38, %c0_39] : memref<1x2x128xf32, #tpu.memory_space<vmem>>, vector<1x2x128xf32>
    %68 = vector.shape_cast %67 : vector<1x2x128xf32> to vector<2x128xf32>
    %69 = vector.shape_cast %66 : vector<2x128xf32> to vector<1x2x128xf32>
    tpu.vector_store %arg4[%c0_37, %c0_38, %c0_39], %69 {strides = array<i32>} : memref<1x2x128xf32, #tpu.memory_space<vmem>>, vector<1x2x128xf32>,
    return
  }
  func.func @transform_0(%arg0: i32) -> (i32, i32, i32, i32) {
    %c0_i32 = arith.constant 0 : i32
    %c0_i32_0 = arith.constant 0 : i32
    %c0_i32_1 = arith.constant 0 : i32
    %c0_i32_2 = arith.constant 0 : i32
    return %arg0, %c0_i32, %c0_i32_0, %c0_i32_1 : i32, i32, i32, i32
  }
  func.func @transform_1(%arg0: i32) -> (i32, i32, i32) {
    %c0_i32 = arith.constant 0 : i32
    %c0_i32_0 = arith.constant 0 : i32
    %c0_i32_1 = arith.constant 0 : i32
    %c0_i32_2 = arith.constant 0 : i32
    return %c0_i32, %c0_i32_0, %c0_i32_1 : i32, i32, i32
  }
  func.func @transform_2(%arg0: i32) -> (i32, i32, i32, i32) {
    %c0_i32 = arith.constant 0 : i32
    %c0_i32_0 = arith.constant 0 : i32
    %c0_i32_1 = arith.constant 0 : i32
    %c0_i32_2 = arith.constant 0 : i32
    return %arg0, %c0_i32, %c0_i32_0, %c0_i32_1 : i32, i32, i32, i32
  }
  func.func @transform_3(%arg0: i32) -> (i32, i32, i32) {
    %c0_i32 = arith.constant 0 : i32
    %c0_i32_0 = arith.constant 0 : i32
    %c0_i32_1 = arith.constant 0 : i32
    return %arg0, %c0_i32, %c0_i32_0 : i32, i32, i32
  }
}

module attributes {stable_mosaic.version = 11 : i64} {
  func.func @kernel(%arg0: i32, %arg1: memref<4x5x5x128xf32, #tpu.memory_space<vmem>>, %arg2: memref<1x4x4x128xf32, #tpu.memory_space<vmem>>) attributes {dimension_semantics = [#tpu.dimension_semantics<parallel>], iteration_bounds = array<i64: 2>, scalar_prefetch = 0 : i64, scratch_operands = 0 : i64, tpu.core_type = #tpu.core_type<tc>, window_params = [{transform_indices = @transform_0, window_bounds = array<i64: 4, 5, 5, 128>}, {transform_indices = @transform_1, window_bounds = array<i64: 1, 4, 4, 128>}]} {
    %c0 = arith.constant 0 : index
    %c0_0 = arith.constant 0 : index
    %c0_1 = arith.constant 0 : index
    %c0_2 = arith.constant 0 : index
    %0 = vector.load %arg1[%c0, %c0_0, %c0_1, %c0_2] : memref<4x5x5x128xf32, #tpu.memory_space<vmem>>, vector<1x5x5x128xf32>
    %1 = vector.shape_cast %0 : vector<1x5x5x128xf32> to vector<5x5x128xf32>
    %c1 = arith.constant 1 : index
    %c0_3 = arith.constant 0 : index
    %c0_4 = arith.constant 0 : index
    %c0_5 = arith.constant 0 : index
    %2 = vector.load %arg1[%c1, %c0_3, %c0_4, %c0_5] : memref<4x5x5x128xf32, #tpu.memory_space<vmem>>, vector<1x5x5x128xf32>
    %3 = vector.shape_cast %2 : vector<1x5x5x128xf32> to vector<5x5x128xf32>
    %c2 = arith.constant 2 : index
    %c0_6 = arith.constant 0 : index
    %c0_7 = arith.constant 0 : index
    %c0_8 = arith.constant 0 : index
    %4 = vector.load %arg1[%c2, %c0_6, %c0_7, %c0_8] : memref<4x5x5x128xf32, #tpu.memory_space<vmem>>, vector<1x5x5x128xf32>
    %5 = vector.shape_cast %4 : vector<1x5x5x128xf32> to vector<5x5x128xf32>
    %c3 = arith.constant 3 : index
    %c0_9 = arith.constant 0 : index
    %c0_10 = arith.constant 0 : index
    %c0_11 = arith.constant 0 : index
    %6 = vector.load %arg1[%c3, %c0_9, %c0_10, %c0_11] : memref<4x5x5x128xf32, #tpu.memory_space<vmem>>, vector<1x5x5x128xf32>
    %7 = vector.shape_cast %6 : vector<1x5x5x128xf32> to vector<5x5x128xf32>
    %8 = vector.extract_strided_slice %1 {offsets = [0, 0, 0], sizes = [4, 4, 128], strides = [1, 1, 1]} : vector<5x5x128xf32> to vector<4x4x128xf32>
    %9 = vector.extract_strided_slice %1 {offsets = [0, 1, 0], sizes = [4, 4, 128], strides = [1, 1, 1]} : vector<5x5x128xf32> to vector<4x4x128xf32>
    %10 = arith.maximumf %8, %9 : vector<4x4x128xf32>
    %11 = vector.extract_strided_slice %1 {offsets = [1, 0, 0], sizes = [4, 4, 128], strides = [1, 1, 1]} : vector<5x5x128xf32> to vector<4x4x128xf32>
    %12 = arith.maximumf %10, %11 : vector<4x4x128xf32>
    %13 = vector.extract_strided_slice %1 {offsets = [1, 1, 0], sizes = [4, 4, 128], strides = [1, 1, 1]} : vector<5x5x128xf32> to vector<4x4x128xf32>
    %14 = arith.maximumf %12, %13 : vector<4x4x128xf32>
    %15 = vector.extract_strided_slice %3 {offsets = [0, 0, 0], sizes = [4, 4, 128], strides = [1, 1, 1]} : vector<5x5x128xf32> to vector<4x4x128xf32>
    %16 = arith.maximumf %14, %15 : vector<4x4x128xf32>
    %17 = vector.extract_strided_slice %3 {offsets = [1, 0, 0], sizes = [4, 4, 128], strides = [1, 1, 1]} : vector<5x5x128xf32> to vector<4x4x128xf32>
    %18 = arith.maximumf %16, %17 : vector<4x4x128xf32>
    %19 = vector.extract_strided_slice %5 {offsets = [0, 0, 0], sizes = [4, 4, 128], strides = [1, 1, 1]} : vector<5x5x128xf32> to vector<4x4x128xf32>
    %20 = arith.maximumf %18, %19 : vector<4x4x128xf32>
    %21 = vector.extract_strided_slice %5 {offsets = [0, 1, 0], sizes = [4, 4, 128], strides = [1, 1, 1]} : vector<5x5x128xf32> to vector<4x4x128xf32>
    %22 = arith.maximumf %20, %21 : vector<4x4x128xf32>
    %23 = vector.extract_strided_slice %7 {offsets = [0, 0, 0], sizes = [4, 4, 128], strides = [1, 1, 1]} : vector<5x5x128xf32> to vector<4x4x128xf32>
    %24 = arith.maximumf %22, %23 : vector<4x4x128xf32>
    %c0_12 = arith.constant 0 : index
    %c0_13 = arith.constant 0 : index
    %c0_14 = arith.constant 0 : index
    %c0_15 = arith.constant 0 : index
    %25 = vector.load %arg2[%c0_12, %c0_13, %c0_14, %c0_15] : memref<1x4x4x128xf32, #tpu.memory_space<vmem>>, vector<1x4x4x128xf32>
    %26 = vector.shape_cast %25 : vector<1x4x4x128xf32> to vector<4x4x128xf32>
    %27 = vector.shape_cast %24 : vector<4x4x128xf32> to vector<1x4x4x128xf32>
    tpu.vector_store %arg2[%c0_12, %c0_13, %c0_14, %c0_15], %27 {strides = array<i32>} : memref<1x4x4x128xf32, #tpu.memory_space<vmem>>, vector<1x4x4x128xf32>,
    return
  }
  func.func @transform_0(%arg0: i32) -> (i32, i32, i32, i32) {
    %c0_i32 = arith.constant 0 : i32
    %c0_i32_0 = arith.constant 0 : i32
    %c0_i32_1 = arith.constant 0 : i32
    %c0_i32_2 = arith.constant 0 : i32
    return %arg0, %c0_i32, %c0_i32_0, %c0_i32_1 : i32, i32, i32, i32
  }
  func.func @transform_1(%arg0: i32) -> (i32, i32, i32, i32) {
    %c0_i32 = arith.constant 0 : i32
    %c0_i32_0 = arith.constant 0 : i32
    %c0_i32_1 = arith.constant 0 : i32
    %c0_i32_2 = arith.constant 0 : i32
    return %arg0, %c0_i32, %c0_i32_0, %c0_i32_1 : i32, i32, i32, i32
  }
}

</mosaic_0001>

<llo_original>
// kernel: tile.30
$region0: #{tile.30}
  #allocation0 [shape = 's32[1]{0}', space=sflag, size = 0x4, scoped, tag = 'scoped memory for tile.30']
  %s0 = inlined_call_operand.vmem [shape: f32[64], index: 0, kind: input, shape index: {}]
  %s1 = inlined_call_operand.vmem [shape: f32[2,64], index: 1, kind: output, shape index: {}]
  // Predicated region
  $region2: #{tile.30} parent=0 // pred_check
    _
  $region3: #{tile.30} parent=0 // pred_check_branch
    %3 = sbr.rel (0) target = $region5
  $region4: #{tile.30} parent=0 // pred_region
    _
  $region5: #{tile.30} parent=0 // pred_fallthru
    _
  %v4 = vld [vmem:[%s0] ss:$0 sm:$0xff]
  %5 = vst [vmem:[%s1] sm:$0x3] %v4

// kernel: tile.31
$region0: #{tile.31}
  %s0 = inlined_call_operand.vmem [shape: f32[2,64], index: 0, kind: input, shape index: {}]
  %s1 = inlined_call_operand.vmem [shape: f32[1,128], index: 1, kind: output, shape index: {}]
  $region1: #{tile.31} parent=0
    #allocation0 [shape = 'u8[4096]{0}', space=vmem, size = 0x1000, scoped, tag = 'scoped mem for output reshape']
    #allocation1 [shape = 'u8[4096]{0}', space=vmem, size = 0x1000, scoped, tag = 'scoped mem for input reshape']
    %s3 = ssub.s32 4, 1
    %v4 = vld [vmem:[%s0] sm:%s3]
    %5 = vst [vmem:[#allocation1] sm:%s3] %v4
    %v6 = vld [vmem:[#allocation1] sm:$0x1]
    %vm7 = vcmask 523264
    %8 = vst.msk [vmem:[#allocation0] sm:$0x1] %vm7, %v6
    %s9 = scalar_lea.vmem [#allocation1], 1
    %v10 = vld [vmem:[%s9] sm:$0x1]
    %11 = vrot.lane.b32.xlu0 %v10, 64
    %v12 = vpop.permute.xlu0 %11
    %vm13 = vcmask 1048064
    %14 = vst.msk [vmem:[#allocation0] sm:$0x1] %vm13, %v12
    %s16 = ssub.s32 2, 1
    %v17 = vld [vmem:[#allocation0] sm:%s16]
    %s19 = ssub.s32 2, 1
    %20 = vst [vmem:[%s1] sm:%s19] %v17

// kernel: feature_map_convolution.8
$region0: #{feature_map_convolution.8}
  #allocation0 [shape = 'u32[]', space=smem, size = 0x4, offset = 0x4, fixed_abs, tag = 'smem constant byte address 0x4 - core index']
  #allocation1 [shape = 'u32[72,128]{1,0:T(1,128)}', space=vmem, size = 0x9000, scoped, tag = 'internal scratch']
  %s0 = inlined_call_operand.vmem [shape: f32[64,128], index: 0, kind: input, shape index: {}]
  %s1 = inlined_call_operand.vmem [shape: f32[1,128], index: 1, kind: input, shape index: {}]
  %s2 = inlined_call_operand.vmem [shape: f32[1,128], index: 2, kind: input, shape index: {}]
  %s3 = inlined_call_operand.vmem [shape: f32[64,128], index: 3, kind: output, shape index: {}]
  %s4 = sld [smem:[#allocation0]]
  $region22: #{feature_map_convolution.8} parent=0
    _
  %s6 = ssub.s32 1, %s4
  %s7 = scalar_select 0, %s6, %s4
  // Predicated region
  $region2: #{feature_map_convolution.8} parent=0 // pred_check
    _
  $region3: #{feature_map_convolution.8} parent=0 // pred_check_branch
    %9 = sbr.rel (0) target = $region5
  $region4: #{feature_map_convolution.8} parent=0 // pred_region
    _
  $region5: #{feature_map_convolution.8} parent=0 // pred_fallthru
    _
  // Predicated region
  $region6: #{feature_map_convolution.8} parent=0 // pred_check
    _
  $region7: #{feature_map_convolution.8} parent=0 // pred_check_branch
    %11 = sbr.rel (0) target = $region9
  $region8: #{feature_map_convolution.8} parent=0 // pred_region
    _
  $region9: #{feature_map_convolution.8} parent=0 // pred_fallthru
    _
  // Predicated region
  $region10: #{feature_map_convolution.8} parent=0 // pred_check
    _
  $region11: #{feature_map_convolution.8} parent=0 // pred_check_branch
    %13 = sbr.rel (0) target = $region13
  $region12: #{feature_map_convolution.8} parent=0 // pred_region
    _
  $region13: #{feature_map_convolution.8} parent=0 // pred_fallthru
    _
  %v14 = vld [vmem:[%s0] sm:$0xff]
  %v15 = vld [vmem:[%s0 + $0x8] sm:$0xff]
  %v16 = vld [vmem:[%s0 + $0x10] sm:$0xff]
  %v17 = vld [vmem:[%s0 + $0x18] sm:$0xff]
  %v18 = vld [vmem:[%s0 + $0x20] sm:$0xff]
  %v19 = vld [vmem:[%s0 + $0x28] sm:$0xff]
  %v20 = vld [vmem:[%s0 + $0x30] sm:$0xff]
  %v21 = vld [vmem:[%s0 + $0x38] sm:$0xff]
  %v22 = vld [vmem:[%s1] sm:$0x1]
  %v24 = vperm.slane %v22, 0
  %v26 = vmul.f32 %v14, %v24
  %v27 = vmul.f32 %v15, %v24
  %v28 = vmul.f32 %v16, %v24
  %v29 = vmul.f32 %v17, %v24
  %v30 = vmul.f32 %v18, %v24
  %v31 = vmul.f32 %v19, %v24
  %v32 = vmul.f32 %v20, %v24
  %v33 = vmul.f32 %v21, %v24
  %v34 = vld [vmem:[%s2] sm:$0x1]
  %v36 = vperm.slane %v34, 0
  %v38 = vadd.f32 %v26, %v36
  %v39 = vadd.f32 %v27, %v36
  %v40 = vadd.f32 %v28, %v36
  %v41 = vadd.f32 %v29, %v36
  %v42 = vadd.f32 %v30, %v36
  %v43 = vadd.f32 %v31, %v36
  %v44 = vadd.f32 %v32, %v36
  %v45 = vadd.f32 %v33, %v36
  %v46 = vmax.f32 %v38, 0.0
  %v47 = vmax.f32 %v39, 0.0
  %v48 = vmax.f32 %v40, 0.0
  %v49 = vmax.f32 %v41, 0.0
  %v50 = vmax.f32 %v42, 0.0
  %v51 = vmax.f32 %v43, 0.0
  %v52 = vmax.f32 %v44, 0.0
  %v53 = vmax.f32 %v45, 0.0
  %54 = vst [vmem:[%s3] sm:$0xff] %v46
  %55 = vst [vmem:[%s3 + $0x8] sm:$0xff] %v47
  %56 = vst [vmem:[%s3 + $0x10] sm:$0xff] %v48
  %57 = vst [vmem:[%s3 + $0x18] sm:$0xff] %v49
  %58 = vst [vmem:[%s3 + $0x20] sm:$0xff] %v50
  %59 = vst [vmem:[%s3 + $0x28] sm:$0xff] %v51
  %60 = vst [vmem:[%s3 + $0x30] sm:$0xff] %v52
  %61 = vst [vmem:[%s3 + $0x38] sm:$0xff] %v53
  // Predicated region
  $region14: #{feature_map_convolution.8} parent=0 // pred_check
    _
  $region15: #{feature_map_convolution.8} parent=0 // pred_check_branch
    %63 = sbr.rel (0) target = $region17
  $region16: #{feature_map_convolution.8} parent=0 // pred_region
    _
  $region17: #{feature_map_convolution.8} parent=0 // pred_fallthru
    _
  // Predicated region
  $region18: #{feature_map_convolution.8} parent=0 // pred_check
    _
  $region19: #{feature_map_convolution.8} parent=0 // pred_check_branch
    %65 = sbr.rel (0) target = $region21
  $region20: #{feature_map_convolution.8} parent=0 // pred_region
    _
  $region21: #{feature_map_convolution.8} parent=0 // pred_fallthru
    _

// kernel: feature_map_convolution.7
$region0: #{feature_map_convolution.7}
  #allocation0 [shape = 'u32[]', space=smem, size = 0x4, offset = 0x4, fixed_abs, tag = 'smem constant byte address 0x4 - core index']
  #allocation1 [shape = 'u32[72,128]{1,0:T(1,128)}', space=vmem, size = 0x9000, scoped, tag = 'internal scratch']
  %s0 = inlined_call_operand.vmem [shape: bf16[128,27], index: 0, kind: input, shape index: {}]
  %s1 = inlined_call_operand.vmem [shape: bf16[27,64], index: 1, kind: input, shape index: {}]
  %s2 = inlined_call_operand.vmem [shape: f32[128,64], index: 2, kind: output, shape index: {0}]
  %s3 = inlined_call_operand.vmem [shape: f32[1,2,64], index: 3, kind: output, shape index: {1}]
  %4 = xla_tuple %s2, %s3
  %s5 = sld [smem:[#allocation0]]
  $region26: #{feature_map_convolution.7} parent=0
    _
  %s7 = ssub.s32 1, %s5
  %s8 = scalar_select 0, %s7, %s5
  // Predicated region
  $region2: #{feature_map_convolution.7} parent=0 // pred_check
    _
  $region3: #{feature_map_convolution.7} parent=0 // pred_check_branch
    %10 = sbr.rel (0) target = $region5
  $region4: #{feature_map_convolution.7} parent=0 // pred_region
    _
  $region5: #{feature_map_convolution.7} parent=0 // pred_fallthru
    _
  // Predicated region
  $region6: #{feature_map_convolution.7} parent=0 // pred_check
    _
  $region7: #{feature_map_convolution.7} parent=0 // pred_check_branch
    %12 = sbr.rel (0) target = $region9
  $region8: #{feature_map_convolution.7} parent=0 // pred_region
    _
  $region9: #{feature_map_convolution.7} parent=0 // pred_fallthru
    _
  %v14 = vld [vmem:[%s0] sm:$0xf]
  %v15 = vld [vmem:[%s0 + $0x4] sm:$0xf]
  %v16 = vld [vmem:[%s0 + $0x8] sm:$0xf]
  %v17 = vld [vmem:[%s0 + $0xc] sm:$0xf]
  %v18 = vld [vmem:[%s0 + $0x10] sm:$0xf]
  %v19 = vld [vmem:[%s0 + $0x14] sm:$0xf]
  %v20 = vld [vmem:[%s0 + $0x18] sm:$0xf]
  %v21 = vld [vmem:[%s0 + $0x1c] sm:$0xf]
  %v22 = vld [vmem:[%s0 + $0x20] sm:$0xf]
  %v23 = vld [vmem:[%s0 + $0x24] sm:$0xf]
  %v24 = vld [vmem:[%s0 + $0x28] sm:$0xf]
  %v25 = vld [vmem:[%s0 + $0x2c] sm:$0xf]
  %v26 = vld [vmem:[%s0 + $0x30] sm:$0xf]
  %v27 = vld [vmem:[%s0 + $0x34] sm:$0xf]
  %v28 = vld [vmem:[%s0 + $0x38] sm:$0xf]
  %v29 = vld [vmem:[%s0 + $0x3c] sm:$0xf]
  %v30 = vld [vmem:[%s1] sm:$0xf]
  %v31 = vld [vmem:[%s1 + $0x4] sm:$0xf]
  %v32 = vld [vmem:[%s1 + $0x8] sm:$0xf]
  %v33 = vld [vmem:[%s1 + $0xc] sm:$0x3]
  %v50 = vunpack.c.l.b16 %v14
  %v51 = vunpack.c.l.b16 %v15
  %v52 = vunpack.c.l.b16 %v16
  %v53 = vunpack.c.l.b16 %v17
  %v54 = vunpack.c.l.b16 %v18
  %v55 = vunpack.c.l.b16 %v19
  %v56 = vunpack.c.l.b16 %v20
  %v57 = vunpack.c.l.b16 %v21
  %v58 = vunpack.c.l.b16 %v22
  %v59 = vunpack.c.l.b16 %v23
  %v60 = vunpack.c.l.b16 %v24
  %v61 = vunpack.c.l.b16 %v25
  %v62 = vunpack.c.l.b16 %v26
  %v63 = vunpack.c.l.b16 %v27
  %v64 = vunpack.c.l.b16 %v28
  %v65 = vunpack.c.l.b16 %v29
  %v66 = vpack.c.b16 %v51, %v50
  %v67 = vpack.c.b16 %v53, %v52
  %v68 = vpack.c.b16 %v55, %v54
  %v69 = vpack.c.b16 %v57, %v56
  %v70 = vpack.c.b16 %v59, %v58
  %v71 = vpack.c.b16 %v61, %v60
  %v72 = vpack.c.b16 %v63, %v62
  %v73 = vpack.c.b16 %v65, %v64
  %v78 = vunpack.c.l.b16 %v30
  %v79 = vunpack.c.l.b16 %v31
  %v80 = vunpack.c.l.b16 %v32
  %v81 = vunpack.c.l.b16 %v33
  %v82 = vpack.c.b16 %v79, %v78
  %v83 = vpack.c.b16 %v81, %v80
  %vm85 = vcmask 220160
  %v87 = vsel %vm85, %v66, 0
  %v90 = vsel %vm85, %v67, 0
  %v93 = vsel %vm85, %v68, 0
  %v96 = vsel %vm85, %v69, 0
  %v99 = vsel %vm85, %v70, 0
  %v102 = vsel %vm85, %v71, 0
  %v105 = vsel %vm85, %v72, 0
  %v108 = vsel %vm85, %v73, 0
  %vm110 = vcmask 1044480
  %vm111 = vcmask 1045504
  %v112 = vsel %vm110, 4294967295, 65535
  %v113 = vsel %vm111, %v112, 0
  %v115 = vand.u32 %v83, %v113
  %117 = vmatpush.bf16.msra.mxu0 0
  %118 = vmatpush.bf16.msra.mxu0 0
  %119 = vmatpush.bf16.msra.mxu0 0
  %120 = vmatpush.bf16.msra.mxu0 0
  %121 = vmatpush.bf16.msra.mxu0 0
  %122 = vmatpush.bf16.msra.mxu0 0
  %123 = vmatpush.bf16.msra.mxu0 %v115
  %124 = vmatpush.bf16.msra.mxu0 %v82
  %125 = vmatmul.bf16.gmra.mxu0 %v87
  %v126 = vpop.f32.mrf.mxu0
  %v127 = vadd.f32 0.0, %v126
  %v128 = vpop.f32.mrf.mxu0
  %v129 = vadd.f32 0.0, %v128
  %130 = vmatmul.bf16.gmra.mxu0 %v90
  %v131 = vpop.f32.mrf.mxu0
  %v132 = vadd.f32 0.0, %v131
  %v133 = vpop.f32.mrf.mxu0
  %v134 = vadd.f32 0.0, %v133
  %135 = vmatmul.bf16.gmra.mxu0 %v93
  %v136 = vpop.f32.mrf.mxu0
  %v137 = vadd.f32 0.0, %v136
  %v138 = vpop.f32.mrf.mxu0
  %v139 = vadd.f32 0.0, %v138
  %140 = vmatmul.bf16.gmra.mxu0 %v96
  %v141 = vpop.f32.mrf.mxu0
  %v142 = vadd.f32 0.0, %v141
  %v143 = vpop.f32.mrf.mxu0
  %v144 = vadd.f32 0.0, %v143
  %145 = vmatmul.bf16.gmra.mxu0 %v99
  %v146 = vpop.f32.mrf.mxu0
  %v147 = vadd.f32 0.0, %v146
  %v148 = vpop.f32.mrf.mxu0
  %v149 = vadd.f32 0.0, %v148
  %150 = vmatmul.bf16.gmra.mxu0 %v102
  %v151 = vpop.f32.mrf.mxu0
  %v152 = vadd.f32 0.0, %v151
  %v153 = vpop.f32.mrf.mxu0
  %v154 = vadd.f32 0.0, %v153
  %155 = vmatmul.bf16.gmra.mxu0 %v105
  %v156 = vpop.f32.mrf.mxu0
  %v157 = vadd.f32 0.0, %v156
  %v158 = vpop.f32.mrf.mxu0
  %v159 = vadd.f32 0.0, %v158
  %160 = vmatmul.bf16.gmra.mxu0 %v108
  %v161 = vpop.f32.mrf.mxu0
  %v162 = vadd.f32 0.0, %v161
  %v163 = vpop.f32.mrf.mxu0
  %v164 = vadd.f32 0.0, %v163
  %165 = vdwg.mxu0
  %vm166 = vcmask 523264
  %167 = vst.msk [vmem:[%s2] sm:$0xff] %vm166, %v127
  %168 = vst.msk [vmem:[%s2 + $0x8] sm:$0xff] %vm166, %v129
  %169 = vst.msk [vmem:[%s2 + $0x10] sm:$0xff] %vm166, %v132
  %170 = vst.msk [vmem:[%s2 + $0x18] sm:$0xff] %vm166, %v134
  %171 = vst.msk [vmem:[%s2 + $0x20] sm:$0xff] %vm166, %v137
  %172 = vst.msk [vmem:[%s2 + $0x28] sm:$0xff] %vm166, %v139
  %173 = vst.msk [vmem:[%s2 + $0x30] sm:$0xff] %vm166, %v142
  %174 = vst.msk [vmem:[%s2 + $0x38] sm:$0xff] %vm166, %v144
  %175 = vst.msk [vmem:[%s2 + $0x40] sm:$0xff] %vm166, %v147
  %176 = vst.msk [vmem:[%s2 + $0x48] sm:$0xff] %vm166, %v149
  %177 = vst.msk [vmem:[%s2 + $0x50] sm:$0xff] %vm166, %v152
  %178 = vst.msk [vmem:[%s2 + $0x58] sm:$0xff] %vm166, %v154
  %179 = vst.msk [vmem:[%s2 + $0x60] sm:$0xff] %vm166, %v157
  %180 = vst.msk [vmem:[%s2 + $0x68] sm:$0xff] %vm166, %v159
  %181 = vst.msk [vmem:[%s2 + $0x70] sm:$0xff] %vm166, %v162
  %182 = vst.msk [vmem:[%s2 + $0x78] sm:$0xff] %vm166, %v164
  %v183 = vsel %vm166, %v127, 0.0
  %v184 = vsel %vm166, %v129, 0.0
  %v185 = vadd.f32 %v183, %v184
  %v186 = vsel %vm166, %v132, 0.0
  %v187 = vadd.f32 %v185, %v186
  %v188 = vsel %vm166, %v134, 0.0
  %v189 = vadd.f32 %v187, %v188
  %v190 = vsel %vm166, %v137, 0.0
  %v191 = vadd.f32 %v189, %v190
  %v192 = vsel %vm166, %v139, 0.0
  %v193 = vadd.f32 %v191, %v192
  %v194 = vsel %vm166, %v142, 0.0
  %v195 = vadd.f32 %v193, %v194
  %v196 = vsel %vm166, %v144, 0.0
  %v197 = vadd.f32 %v195, %v196
  %v198 = vsel %vm166, %v147, 0.0
  %v199 = vadd.f32 %v197, %v198
  %v200 = vsel %vm166, %v149, 0.0
  %v201 = vadd.f32 %v199, %v200
  %v202 = vsel %vm166, %v152, 0.0
  %v203 = vadd.f32 %v201, %v202
  %v204 = vsel %vm166, %v154, 0.0
  %v205 = vadd.f32 %v203, %v204
  %v206 = vsel %vm166, %v157, 0.0
  %v207 = vadd.f32 %v205, %v206
  %v208 = vsel %vm166, %v159, 0.0
  %v209 = vadd.f32 %v207, %v208
  %v210 = vsel %vm166, %v162, 0.0
  %v211 = vadd.f32 %v209, %v210
  %v212 = vsel %vm166, %v164, 0.0
  %v213 = vadd.f32 %v211, %v212
  %v214 = vrot.slane %v213, 4
  %v215 = vadd.f32 %v213, %v214
  %v216 = vrot.slane %v215, 2
  %v217 = vadd.f32 %v215, %v216
  %v218 = vrot.slane %v217, 1
  %v219 = vadd.f32 %v217, %v218
  %v220 = vmul.f32 %v127, %v127
  %v221 = vmul.f32 %v129, %v129
  %v222 = vmul.f32 %v132, %v132
  %v223 = vmul.f32 %v134, %v134
  %v224 = vmul.f32 %v137, %v137
  %v225 = vmul.f32 %v139, %v139
  %v226 = vmul.f32 %v142, %v142
  %v227 = vmul.f32 %v144, %v144
  %v228 = vmul.f32 %v147, %v147
  %v229 = vmul.f32 %v149, %v149
  %v230 = vmul.f32 %v152, %v152
  %v231 = vmul.f32 %v154, %v154
  %v232 = vmul.f32 %v157, %v157
  %v233 = vmul.f32 %v159, %v159
  %v234 = vmul.f32 %v162, %v162
  %v235 = vmul.f32 %v164, %v164
  %v236 = vsel %vm166, %v220, 0.0
  %v237 = vsel %vm166, %v221, 0.0
  %v238 = vadd.f32 %v236, %v237
  %v239 = vsel %vm166, %v222, 0.0
  %v240 = vadd.f32 %v238, %v239
  %v241 = vsel %vm166, %v223, 0.0
  %v242 = vadd.f32 %v240, %v241
  %v243 = vsel %vm166, %v224, 0.0
  %v244 = vadd.f32 %v242, %v243
  %v245 = vsel %vm166, %v225, 0.0
  %v246 = vadd.f32 %v244, %v245
  %v247 = vsel %vm166, %v226, 0.0
  %v248 = vadd.f32 %v246, %v247
  %v249 = vsel %vm166, %v227, 0.0
  %v250 = vadd.f32 %v248, %v249
  %v251 = vsel %vm166, %v228, 0.0
  %v252 = vadd.f32 %v250, %v251
  %v253 = vsel %vm166, %v229, 0.0
  %v254 = vadd.f32 %v252, %v253
  %v255 = vsel %vm166, %v230, 0.0
  %v256 = vadd.f32 %v254, %v255
  %v257 = vsel %vm166, %v231, 0.0
  %v258 = vadd.f32 %v256, %v257
  %v259 = vsel %vm166, %v232, 0.0
  %v260 = vadd.f32 %v258, %v259
  %v261 = vsel %vm166, %v233, 0.0
  %v262 = vadd.f32 %v260, %v261
  %v263 = vsel %vm166, %v234, 0.0
  %v264 = vadd.f32 %v262, %v263
  %v265 = vsel %vm166, %v235, 0.0
  %v266 = vadd.f32 %v264, %v265
  %v267 = vrot.slane %v266, 4
  %v268 = vadd.f32 %v266, %v267
  %v269 = vrot.slane %v268, 2
  %v270 = vadd.f32 %v268, %v269
  %v271 = vrot.slane %v270, 1
  %v272 = vadd.f32 %v270, %v271
  %vm273 = vcmask 1040384
  %v274 = vsel %vm273, %v219, %v272
  %vm275 = vcmask 517120
  %276 = vst.msk [vmem:[%s3] sm:$0x3] %vm275, %v274
  // Predicated region
  $region10: #{feature_map_convolution.7} parent=0 // pred_check
    _
  $region11: #{feature_map_convolution.7} parent=0 // pred_check_branch
    %278 = sbr.rel (0) target = $region13
  $region12: #{feature_map_convolution.7} parent=0 // pred_region
    _
  $region13: #{feature_map_convolution.7} parent=0 // pred_fallthru
    _
  // Predicated region
  $region14: #{feature_map_convolution.7} parent=0 // pred_check
    _
  $region15: #{feature_map_convolution.7} parent=0 // pred_check_branch
    %280 = sbr.rel (0) target = $region17
  $region16: #{feature_map_convolution.7} parent=0 // pred_region
    _
  $region17: #{feature_map_convolution.7} parent=0 // pred_fallthru
    _
  // Predicated region
  $region18: #{feature_map_convolution.7} parent=0 // pred_check
    _
  $region19: #{feature_map_convolution.7} parent=0 // pred_check_branch
    %282 = sbr.rel (0) target = $region21
  $region20: #{feature_map_convolution.7} parent=0 // pred_region
    _
  $region21: #{feature_map_convolution.7} parent=0 // pred_fallthru
    _
  // Predicated region
  $region22: #{feature_map_convolution.7} parent=0 // pred_check
    _
  $region23: #{feature_map_convolution.7} parent=0 // pred_check_branch
    %284 = sbr.rel (0) target = $region25
  $region24: #{feature_map_convolution.7} parent=0 // pred_region
    _
  $region25: #{feature_map_convolution.7} parent=0 // pred_fallthru
    _

// kernel: feature_map_convolution.9
$region0: #{feature_map_convolution.9}
  #allocation0 [shape = 'u32[]', space=smem, size = 0x4, offset = 0x4, fixed_abs, tag = 'smem constant byte address 0x4 - core index']
  #allocation1 [shape = 'u32[72,128]{1,0:T(1,128)}', space=vmem, size = 0x9000, scoped, tag = 'internal scratch']
  %s0 = inlined_call_operand.vmem [shape: bf16[2,10,10,64], index: 0, kind: input, shape index: {}]
  %s1 = inlined_call_operand.vmem [shape: bf16[9,64,64], index: 1, kind: input, shape index: {}]
  %s2 = inlined_call_operand.vmem [shape: f32[2,8,8,64], index: 2, kind: output, shape index: {0}]
  %s3 = inlined_call_operand.vmem [shape: f32[2,2,64], index: 3, kind: output, shape index: {1}]
  %4 = xla_tuple %s2, %s3
  %s5 = sld [smem:[#allocation0]]
  $region49: #{feature_map_convolution.9} parent=0
    _
  %s7 = ssub.s32 1, %s5
  %s8 = scalar_select 0, %s7, %s5
  loop: start=0, step=1, limit=4
  $region2: #{feature_map_convolution.9} parent=0 // loop_pre_header
    _
  $region3: #{feature_map_convolution.9} parent=0 // loop_header
    %s10 = sphi 0, %s14
    %p11 = scmp.ge.s32.totalorder %s10, 4
    %s20 = sphi 0, %s22
    %s23 = sphi 0, %s20
    %s24 = sphi 0, %s23
    %s40 = sphi 0, %s24
    %s44 = sphi 0, %s44
    %s46 = sphi 0, %s44
    %s47 = sphi 0, %s46
    %s61 = sphi 0, %s47
    %s67 = sphi 0, %s69
    %s70 = sphi 0, %s67
    %s71 = sphi 0, %s70
    %s87 = sphi 0, %s71
    %s93 = sphi 0, %s95
    %s96 = sphi 0, %s93
    %s97 = sphi 0, %s96
    %s113 = sphi 0, %s97
  $region4: #{feature_map_convolution.9} parent=0 // loop_header_branch
    %13 = sbr.rel (%p11) target = $region8
  $region5: #{feature_map_convolution.9} parent=0 // loop_body
    %s15 = ssub.s32 %s10, 1
    %s16 = ssub.s32 %s10, 2
    %s17 = sadd.s32 %s10, 1
    %s18 = ssub.s32 %s10, %s17
    %p19 = scmp.eq.s32.totalorder %s18, 0
    %s21 = sadd.s32 %s20, 1
    %s22 = scalar_select %p19, %s20, %s21
    %p25 = pneg %p19
    %p26 = scmp.eq.s32.totalorder %s10, 1
    %p27 = por %p25, %p26
    %p28 = scmp.ne.s32.totalorder %s20, %s23
    %p29 = scmp.eq.s32.totalorder %s10, 0
    %p30 = por %p28, %p29
    %p31 = scmp.ne.s32.totalorder %s20, %s23
    %p32 = scmp.eq.s32.totalorder %s15, 1
    %p33 = por %p31, %p32
    %p34 = scmp.ne.s32.totalorder %s23, %s24
    %p35 = scmp.eq.s32.totalorder %s15, 0
    %p36 = por %p34, %p35
    %p37 = scmp.ne.s32.totalorder %s23, %s24
    %p38 = scmp.eq.s32.totalorder %s16, 1
    %p39 = por %p37, %p38
    %p41 = scmp.ne.s32.totalorder %s24, %s40
    %p42 = scmp.eq.s32.totalorder %s16, 0
    %p43 = por %p41, %p42
    %s45 = sadd.s32 %s44, 1
    %p48 = scmp.eq.s32.totalorder %s10, 1
    %p49 = scmp.ne.s32.totalorder %s44, %s46
    %p50 = scmp.eq.s32.totalorder %s10, 0
    %p51 = por %p49, %p50
    %p52 = scmp.ne.s32.totalorder %s44, %s46
    %p53 = scmp.eq.s32.totalorder %s15, 1
    %p54 = por %p52, %p53
    %p55 = scmp.ne.s32.totalorder %s46, %s47
    %p56 = scmp.eq.s32.totalorder %s15, 0
    %p57 = por %p55, %p56
    %p58 = scmp.ne.s32.totalorder %s46, %s47
    %p59 = scmp.eq.s32.totalorder %s16, 1
    %p60 = por %p58, %p59
    %p62 = scmp.ne.s32.totalorder %s47, %s61
    %p63 = scmp.eq.s32.totalorder %s16, 0
    %p64 = por %p62, %p63
    %s65 = ssub.s32 %s10, %s17
    %p66 = scmp.eq.s32.totalorder %s65, 0
    %s68 = sadd.s32 %s67, 1
    %s69 = scalar_select %p66, %s67, %s68
    %p72 = pneg %p66
    %p73 = scmp.eq.s32.totalorder %s10, 1
    %p74 = por %p72, %p73
    %p75 = scmp.ne.s32.totalorder %s67, %s70
    %p76 = scmp.eq.s32.totalorder %s10, 0
    %p77 = por %p75, %p76
    %p78 = scmp.ne.s32.totalorder %s67, %s70
    %p79 = scmp.eq.s32.totalorder %s15, 1
    %p80 = por %p78, %p79
    %p81 = scmp.ne.s32.totalorder %s70, %s71
    %p82 = scmp.eq.s32.totalorder %s15, 0
    %p83 = por %p81, %p82
    %p84 = scmp.ne.s32.totalorder %s70, %s71
    %p85 = scmp.eq.s32.totalorder %s16, 1
    %p86 = por %p84, %p85
    %p88 = scmp.ne.s32.totalorder %s71, %s87
    %p89 = scmp.eq.s32.totalorder %s16, 0
    %p90 = por %p88, %p89
    %s91 = ssub.s32 %s10, %s17
    %p92 = scmp.eq.s32.totalorder %s91, 0
    %s94 = sadd.s32 %s93, 1
    %s95 = scalar_select %p92, %s93, %s94
    %p98 = pneg %p92
    %p99 = scmp.eq.s32.totalorder %s10, 1
    %p100 = por %p98, %p99
    %p101 = scmp.ne.s32.totalorder %s93, %s96
    %p102 = scmp.eq.s32.totalorder %s10, 0
    %p103 = por %p101, %p102
    %p104 = scmp.ne.s32.totalorder %s93, %s96
    %p105 = scmp.eq.s32.totalorder %s15, 1
    %p106 = por %p104, %p105
    %p107 = scmp.ne.s32.totalorder %s96, %s97
    %p108 = scmp.eq.s32.totalorder %s15, 0
    %p109 = por %p107, %p108
    %p110 = scmp.ne.s32.totalorder %s96, %s97
    %p111 = scmp.eq.s32.totalorder %s16, 1
    %p112 = por %p110, %p111
    %p114 = scmp.ne.s32.totalorder %s97, %s113
    %p115 = scmp.eq.s32.totalorder %s16, 0
    %p116 = por %p114, %p115
    %p117 = scmp.le.s32.totalorder 1, %s10
    %p118 = scmp.lt.s32.totalorder %s10, 3
    %p119 = pnand %p117, %p118
    %p120 = pneg %p119
    // Predicated region
    $region9: #{feature_map_convolution.9} parent=5 // pred_check
      _
    $region10: #{feature_map_convolution.9} parent=5 // pred_check_branch
      %122 = sbr.rel (%p119) target = $region12
    $region11: #{feature_map_convolution.9} parent=5 // pred_region
      %s123 = ssub.s32 %s10, 1
      // Predicated region
      $region13: #{feature_map_convolution.9} parent=11 // pred_check
        %p124 = pneg %p57
      $region14: #{feature_map_convolution.9} parent=11 // pred_check_branch
        %126 = sbr.rel (%p124) target = $region16
      $region15: #{feature_map_convolution.9} parent=11 // pred_region
        _
      $region16: #{feature_map_convolution.9} parent=11 // pred_fallthru
        _
    $region12: #{feature_map_convolution.9} parent=5 // pred_fallthru
      _
    %p127 = scmp.lt.s32.totalorder %s10, 2
    // Predicated region
    $region17: #{feature_map_convolution.9} parent=5 // pred_check
      %p128 = pneg %p127
    $region18: #{feature_map_convolution.9} parent=5 // pred_check_branch
      %130 = sbr.rel (%p128) target = $region20
    $region19: #{feature_map_convolution.9} parent=5 // pred_region
      // Predicated region
      $region21: #{feature_map_convolution.9} parent=19 // pred_check
        %p131 = pneg %p30
      $region22: #{feature_map_convolution.9} parent=19 // pred_check_branch
        %133 = sbr.rel (%p131) target = $region24
      $region23: #{feature_map_convolution.9} parent=19 // pred_region
        %p134 = scmp.lt.s32.totalorder %s10, 1
        %s135 = scalar_select %p134, %s10, 1
        %s136 = smul.addr %s135, 20
        %s137 = smul.addr %s136, 4
        %s138 = scalar_lea.vmem %s0, %s137
      $region24: #{feature_map_convolution.9} parent=19 // pred_fallthru
        _
    $region20: #{feature_map_convolution.9} parent=5 // pred_fallthru
      _
    %p139 = scmp.le.s32.totalorder 1, %s10
    %p140 = scmp.lt.s32.totalorder %s10, 3
    %p141 = pnand %p139, %p140
    %p142 = pneg %p141
    // Predicated region
    $region25: #{feature_map_convolution.9} parent=5 // pred_check
      _
    $region26: #{feature_map_convolution.9} parent=5 // pred_check_branch
      %144 = sbr.rel (%p141) target = $region28
    $region27: #{feature_map_convolution.9} parent=5 // pred_region
      %s145 = ssub.s32 %s10, 1
      %p146 = scmp.lt.s32.totalorder %s15, 1
      %s147 = scalar_select %p146, %s15, 1
      %s148 = smul.addr %s147, 20
      %s149 = smul.addr %s148, 4
      %s150 = scalar_lea.vmem %s0, %s149
      %p151 = pneg %p36
      %p152 = pneg %p33
      %p153 = pneg %p57
      %p154 = pneg %p54
      %p155 = pneg %p83
      %p156 = pneg %p80
      %p157 = scmp.lt.s32.totalorder %s15, 1
      %s158 = scalar_select %p157, %s15, 1
      %s159 = smul.addr %s158, 8
      %s160 = smul.addr %s159, 8
      %s161 = scalar_lea.vmem %s2, %s160
      %p162 = pneg %p109
      %p163 = pneg %p106
      %p164 = scmp.lt.s32.totalorder %s15, 1
      %s165 = scalar_select %p164, %s15, 1
      %s166 = smul.addr %s165, 2
      %s167 = scalar_lea.vmem %s3, %s166
      %p168 = scmp.lt.s32.totalorder %s15, 1
      %s169 = scalar_select %p168, %s15, 1
      %s170 = smul.addr %s169, 20
      %s171 = smul.addr %s170, 4
      %s172 = scalar_lea.vmem %s0, %s171
      %p173 = scmp.lt.s32.totalorder %s15, 1
      %s174 = scalar_select %p173, %s15, 1
      %s175 = smul.addr %s174, 8
      %s176 = smul.addr %s175, 8
      %s177 = scalar_lea.vmem %s2, %s176
      %p178 = scmp.lt.s32.totalorder %s15, 1
      %s179 = scalar_select %p178, %s15, 1
      %s180 = smul.addr %s179, 2
      %s181 = scalar_lea.vmem %s3, %s180
      %v183 = vld [vmem:[%s172] sm:$0xf]
      %v184 = vld [vmem:[%s172 + $0x4] sm:$0x1]
      %v185 = vld [vmem:[%s172 + $0x8] sm:$0xf]
      %v186 = vld [vmem:[%s172 + $0xc] sm:$0x1]
      %v187 = vld [vmem:[%s172 + $0x10] sm:$0xf]
      %v188 = vld [vmem:[%s172 + $0x14] sm:$0x1]
      %v189 = vld [vmem:[%s172 + $0x18] sm:$0xf]
      %v190 = vld [vmem:[%s172 + $0x1c] sm:$0x1]
      %v191 = vld [vmem:[%s172 + $0x20] sm:$0xf]
      %v192 = vld [vmem:[%s172 + $0x24] sm:$0x1]
      %v193 = vld [vmem:[%s172 + $0x28] sm:$0xf]
      %v194 = vld [vmem:[%s172 + $0x2c] sm:$0x1]
      %v195 = vld [vmem:[%s172 + $0x30] sm:$0xf]
      %v196 = vld [vmem:[%s172 + $0x34] sm:$0x1]
      %v197 = vld [vmem:[%s172 + $0x38] sm:$0xf]
      %v198 = vld [vmem:[%s172 + $0x3c] sm:$0x1]
      %v199 = vld [vmem:[%s172 + $0x40] sm:$0xf]
      %v200 = vld [vmem:[%s172 + $0x44] sm:$0x1]
      %v201 = vld [vmem:[%s172 + $0x48] sm:$0xf]
      %v202 = vld [vmem:[%s172 + $0x4c] sm:$0x1]
      %v203 = vld [vmem:[%s1] sm:$0xf]
      %v204 = vld [vmem:[%s1 + $0x4] sm:$0xf]
      %v205 = vld [vmem:[%s1 + $0x8] sm:$0xf]
      %v206 = vld [vmem:[%s1 + $0xc] sm:$0xf]
      %v207 = vld [vmem:[%s1 + $0x10] sm:$0xf]
      %v208 = vld [vmem:[%s1 + $0x14] sm:$0xf]
      %v209 = vld [vmem:[%s1 + $0x18] sm:$0xf]
      %v210 = vld [vmem:[%s1 + $0x1c] sm:$0xf]
      %vm211 = vsmask.f32 3328
      %vm212 = vsmask.f32 7440
      %vm213 = vmor %vm211, %vm212
      %v215 = vshrl.u32 %v183, 16
      %v217 = vrot.slane %v215, 4
      %v218 = vshll.u32 %v183, 16
      %v220 = vrot.slane %v218, 5
      %v221 = vor.u32 %v217, %v220
      %v222 = vrot.slane %v221, 4
      %v224 = vshll.u32 %v184, 16
      %v226 = vrot.slane %v224, 5
      %v227 = vsel %vm213, %v222, %v226
      %v229 = vshrl.u32 %v185, 16
      %v231 = vrot.slane %v229, 4
      %v232 = vshll.u32 %v185, 16
      %v234 = vrot.slane %v232, 5
      %v235 = vor.u32 %v231, %v234
      %v236 = vrot.slane %v235, 4
      %v238 = vshll.u32 %v186, 16
      %v240 = vrot.slane %v238, 5
      %v241 = vsel %vm213, %v236, %v240
      %v243 = vshrl.u32 %v187, 16
      %v245 = vrot.slane %v243, 4
      %v246 = vshll.u32 %v187, 16
      %v248 = vrot.slane %v246, 5
      %v249 = vor.u32 %v245, %v248
      %v250 = vrot.slane %v249, 4
      %v252 = vshll.u32 %v188, 16
      %v254 = vrot.slane %v252, 5
      %v255 = vsel %vm213, %v250, %v254
      %v257 = vshrl.u32 %v189, 16
      %v259 = vrot.slane %v257, 4
      %v260 = vshll.u32 %v189, 16
      %v262 = vrot.slane %v260, 5
      %v263 = vor.u32 %v259, %v262
      %v264 = vrot.slane %v263, 4
      %v266 = vshll.u32 %v190, 16
      %v268 = vrot.slane %v266, 5
      %v269 = vsel %vm213, %v264, %v268
      %v271 = vshrl.u32 %v191, 16
      %v273 = vrot.slane %v271, 4
      %v274 = vshll.u32 %v191, 16
      %v276 = vrot.slane %v274, 5
      %v277 = vor.u32 %v273, %v276
      %v278 = vrot.slane %v277, 4
      %v280 = vshll.u32 %v192, 16
      %v282 = vrot.slane %v280, 5
      %v283 = vsel %vm213, %v278, %v282
      %v285 = vshrl.u32 %v193, 16
      %v287 = vrot.slane %v285, 4
      %v288 = vshll.u32 %v193, 16
      %v290 = vrot.slane %v288, 5
      %v291 = vor.u32 %v287, %v290
      %v292 = vrot.slane %v291, 4
      %v294 = vshll.u32 %v194, 16
      %v296 = vrot.slane %v294, 5
      %v297 = vsel %vm213, %v292, %v296
      %v299 = vshrl.u32 %v195, 16
      %v301 = vrot.slane %v299, 4
      %v302 = vshll.u32 %v195, 16
      %v304 = vrot.slane %v302, 5
      %v305 = vor.u32 %v301, %v304
      %v306 = vrot.slane %v305, 4
      %v308 = vshll.u32 %v196, 16
      %v310 = vrot.slane %v308, 5
      %v311 = vsel %vm213, %v306, %v310
      %v313 = vshrl.u32 %v197, 16
      %v315 = vrot.slane %v313, 4
      %v316 = vshll.u32 %v197, 16
      %v318 = vrot.slane %v316, 5
      %v319 = vor.u32 %v315, %v318
      %v320 = vrot.slane %v319, 4
      %v322 = vshll.u32 %v198, 16
      %v324 = vrot.slane %v322, 5
      %v325 = vsel %vm213, %v320, %v324
      %s326 = scalar_lea.vmem %s1, 32
      %v327 = vld [vmem:[%s326] sm:$0xf]
      %v328 = vld [vmem:[%s326 + $0x4] sm:$0xf]
      %v329 = vld [vmem:[%s326 + $0x8] sm:$0xf]
      %v330 = vld [vmem:[%s326 + $0xc] sm:$0xf]
      %v331 = vld [vmem:[%s326 + $0x10] sm:$0xf]
      %v332 = vld [vmem:[%s326 + $0x14] sm:$0xf]
      %v333 = vld [vmem:[%s326 + $0x18] sm:$0xf]
      %v334 = vld [vmem:[%s326 + $0x1c] sm:$0xf]
      %v335 = vunpack.c.l.b16 %v227
      %v336 = vunpack.c.l.b16 %v241
      %v337 = vunpack.c.l.b16 %v255
      %v338 = vunpack.c.l.b16 %v269
      %v339 = vunpack.c.l.b16 %v283
      %v340 = vunpack.c.l.b16 %v297
      %v341 = vunpack.c.l.b16 %v311
      %v342 = vunpack.c.l.b16 %v325
      %v343 = vpack.c.b16 %v336, %v335
      %v344 = vpack.c.b16 %v338, %v337
      %v345 = vpack.c.b16 %v340, %v339
      %v346 = vpack.c.b16 %v342, %v341
      %v355 = vunpack.c.l.b16 %v327
      %v356 = vunpack.c.l.b16 %v328
      %v357 = vunpack.c.l.b16 %v329
      %v358 = vunpack.c.l.b16 %v330
      %v359 = vunpack.c.l.b16 %v331
      %v360 = vunpack.c.l.b16 %v332
      %v361 = vunpack.c.l.b16 %v333
      %v362 = vunpack.c.l.b16 %v334
      %v363 = vpack.c.b16 %v356, %v355
      %v364 = vpack.c.b16 %v358, %v357
      %v365 = vpack.c.b16 %v360, %v359
      %v366 = vpack.c.b16 %v362, %v361
      %vm371 = vcmask 523264
      %v373 = vsel %vm371, %v343, 0
      %v376 = vsel %vm371, %v344, 0
      %v379 = vsel %vm371, %v345, 0
      %v382 = vsel %vm371, %v346, 0
      %384 = vmatpush.bf16.msra.mxu0 0
      %385 = vmatpush.bf16.msra.mxu0 0
      %386 = vmatpush.bf16.msra.mxu0 0
      %387 = vmatpush.bf16.msra.mxu0 0
      %388 = vmatpush.bf16.msra.mxu0 %v366
      %389 = vmatpush.bf16.msra.mxu0 %v365
      %390 = vmatpush.bf16.msra.mxu0 %v364
      %391 = vmatpush.bf16.msra.mxu0 %v363
      %392 = vmatmul.bf16.gmra.mxu0 %v373
      %v393 = vpop.f32.mrf.mxu0
      %v394 = vadd.f32 0.0, %v393
      %v395 = vpop.f32.mrf.mxu0
      %v396 = vadd.f32 0.0, %v395
      %397 = vmatmul.bf16.gmra.mxu0 %v376
      %v398 = vpop.f32.mrf.mxu0
      %v399 = vadd.f32 0.0, %v398
      %v400 = vpop.f32.mrf.mxu0
      %v401 = vadd.f32 0.0, %v400
      %402 = vmatmul.bf16.gmra.mxu0 %v379
      %v403 = vpop.f32.mrf.mxu0
      %v404 = vadd.f32 0.0, %v403
      %v405 = vpop.f32.mrf.mxu0
      %v406 = vadd.f32 0.0, %v405
      %407 = vmatmul.bf16.gmra.mxu0 %v382
      %v408 = vpop.f32.mrf.mxu0
      %v409 = vadd.f32 0.0, %v408
      %v410 = vpop.f32.mrf.mxu0
      %v411 = vadd.f32 0.0, %v410
      %412 = vdwg.mxu0
      %v421 = vunpack.c.l.b16 %v183
      %v422 = vunpack.c.l.b16 %v185
      %v423 = vunpack.c.l.b16 %v187
      %v424 = vunpack.c.l.b16 %v189
      %v425 = vunpack.c.l.b16 %v191
      %v426 = vunpack.c.l.b16 %v193
      %v427 = vunpack.c.l.b16 %v195
      %v428 = vunpack.c.l.b16 %v197
      %v429 = vpack.c.b16 %v422, %v421
      %v430 = vpack.c.b16 %v424, %v423
      %v431 = vpack.c.b16 %v426, %v425
      %v432 = vpack.c.b16 %v428, %v427
      %v441 = vunpack.c.l.b16 %v203
      %v442 = vunpack.c.l.b16 %v204
      %v443 = vunpack.c.l.b16 %v205
      %v444 = vunpack.c.l.b16 %v206
      %v445 = vunpack.c.l.b16 %v207
      %v446 = vunpack.c.l.b16 %v208
      %v447 = vunpack.c.l.b16 %v209
      %v448 = vunpack.c.l.b16 %v210
      %v449 = vpack.c.b16 %v442, %v441
      %v450 = vpack.c.b16 %v444, %v443
      %v451 = vpack.c.b16 %v446, %v445
      %v452 = vpack.c.b16 %v448, %v447
      %v458 = vsel %vm371, %v429, 0
      %v461 = vsel %vm371, %v430, 0
      %v464 = vsel %vm371, %v431, 0
      %v467 = vsel %vm371, %v432, 0
      %469 = vmatpush.bf16.msra.mxu0 0
      %470 = vmatpush.bf16.msra.mxu0 0
      %471 = vmatpush.bf16.msra.mxu0 0
      %472 = vmatpush.bf16.msra.mxu0 0
      %473 = vmatpush.bf16.msra.mxu0 %v452
      %474 = vmatpush.bf16.msra.mxu0 %v451
      %475 = vmatpush.bf16.msra.mxu0 %v450
      %476 = vmatpush.bf16.msra.mxu0 %v449
      %477 = vmatmul.bf16.gmra.mxu0 %v458
      %v478 = vpop.f32.mrf.mxu0
      %v479 = vadd.f32 %v394, %v478
      %v480 = vpop.f32.mrf.mxu0
      %v481 = vadd.f32 %v396, %v480
      %482 = vmatmul.bf16.gmra.mxu0 %v461
      %v483 = vpop.f32.mrf.mxu0
      %v484 = vadd.f32 %v399, %v483
      %v485 = vpop.f32.mrf.mxu0
      %v486 = vadd.f32 %v401, %v485
      %487 = vmatmul.bf16.gmra.mxu0 %v464
      %v488 = vpop.f32.mrf.mxu0
      %v489 = vadd.f32 %v404, %v488
      %v490 = vpop.f32.mrf.mxu0
      %v491 = vadd.f32 %v406, %v490
      %492 = vmatmul.bf16.gmra.mxu0 %v467
      %v493 = vpop.f32.mrf.mxu0
      %v494 = vadd.f32 %v409, %v493
      %v495 = vpop.f32.mrf.mxu0
      %v496 = vadd.f32 %v411, %v495
      %497 = vdwg.mxu0
      %vm506 = vcmask 1042432
      %vm507 = vcmask 1046532
      %vm508 = vmor %vm506, %vm507
      %v509 = vrot.slane %v183, 5
      %v510 = vrot.slane %v509, 4
      %v511 = vrot.slane %v184, 5
      %v512 = vsel %vm508, %v510, %v511
      %v513 = vrot.slane %v185, 5
      %v514 = vrot.slane %v513, 4
      %v515 = vrot.slane %v186, 5
      %v516 = vsel %vm508, %v514, %v515
      %v517 = vrot.slane %v187, 5
      %v518 = vrot.slane %v517, 4
      %v519 = vrot.slane %v188, 5
      %v520 = vsel %vm508, %v518, %v519
      %v521 = vrot.slane %v189, 5
      %v522 = vrot.slane %v521, 4
      %v523 = vrot.slane %v190, 5
      %v524 = vsel %vm508, %v522, %v523
      %v525 = vrot.slane %v191, 5
      %v526 = vrot.slane %v525, 4
      %v527 = vrot.slane %v192, 5
      %v528 = vsel %vm508, %v526, %v527
      %v529 = vrot.slane %v193, 5
      %v530 = vrot.slane %v529, 4
      %v531 = vrot.slane %v194, 5
      %v532 = vsel %vm508, %v530, %v531
      %v533 = vrot.slane %v195, 5
      %v534 = vrot.slane %v533, 4
      %v535 = vrot.slane %v196, 5
      %v536 = vsel %vm508, %v534, %v535
      %v537 = vrot.slane %v197, 5
      %v538 = vrot.slane %v537, 4
      %v539 = vrot.slane %v198, 5
      %v540 = vsel %vm508, %v538, %v539
      %s541 = scalar_lea.vmem %s1, 64
      %v542 = vld [vmem:[%s541] sm:$0xf]
      %v543 = vld [vmem:[%s541 + $0x4] sm:$0xf]
      %v544 = vld [vmem:[%s541 + $0x8] sm:$0xf]
      %v545 = vld [vmem:[%s541 + $0xc] sm:$0xf]
      %v546 = vld [vmem:[%s541 + $0x10] sm:$0xf]
      %v547 = vld [vmem:[%s541 + $0x14] sm:$0xf]
      %v548 = vld [vmem:[%s541 + $0x18] sm:$0xf]
      %v549 = vld [vmem:[%s541 + $0x1c] sm:$0xf]
      %v550 = vunpack.c.l.b16 %v512
      %v551 = vunpack.c.l.b16 %v516
      %v552 = vunpack.c.l.b16 %v520
      %v553 = vunpack.c.l.b16 %v524
      %v554 = vunpack.c.l.b16 %v528
      %v555 = vunpack.c.l.b16 %v532
      %v556 = vunpack.c.l.b16 %v536
      %v557 = vunpack.c.l.b16 %v540
      %v558 = vpack.c.b16 %v551, %v550
      %v559 = vpack.c.b16 %v553, %v552
      %v560 = vpack.c.b16 %v555, %v554
      %v561 = vpack.c.b16 %v557, %v556
      %v570 = vunpack.c.l.b16 %v542
      %v571 = vunpack.c.l.b16 %v543
      %v572 = vunpack.c.l.b16 %v544
      %v573 = vunpack.c.l.b16 %v545
      %v574 = vunpack.c.l.b16 %v546
      %v575 = vunpack.c.l.b16 %v547
      %v576 = vunpack.c.l.b16 %v548
      %v577 = vunpack.c.l.b16 %v549
      %v578 = vpack.c.b16 %v571, %v570
      %v579 = vpack.c.b16 %v573, %v572
      %v580 = vpack.c.b16 %v575, %v574
      %v581 = vpack.c.b16 %v577, %v576
      %v587 = vsel %vm371, %v558, 0
      %v590 = vsel %vm371, %v559, 0
      %v593 = vsel %vm371, %v560, 0
      %v596 = vsel %vm371, %v561, 0
      %598 = vmatpush.bf16.msra.mxu0 0
      %599 = vmatpush.bf16.msra.mxu0 0
      %600 = vmatpush.bf16.msra.mxu0 0
      %601 = vmatpush.bf16.msra.mxu0 0
      %602 = vmatpush.bf16.msra.mxu0 %v581
      %603 = vmatpush.bf16.msra.mxu0 %v580
      %604 = vmatpush.bf16.msra.mxu0 %v579
      %605 = vmatpush.bf16.msra.mxu0 %v578
      %606 = vmatmul.bf16.gmra.mxu0 %v587
      %v607 = vpop.f32.mrf.mxu0
      %v608 = vadd.f32 0.0, %v607
      %v609 = vpop.f32.mrf.mxu0
      %v610 = vadd.f32 0.0, %v609
      %611 = vmatmul.bf16.gmra.mxu0 %v590
      %v612 = vpop.f32.mrf.mxu0
      %v613 = vadd.f32 0.0, %v612
      %v614 = vpop.f32.mrf.mxu0
      %v615 = vadd.f32 0.0, %v614
      %616 = vmatmul.bf16.gmra.mxu0 %v593
      %v617 = vpop.f32.mrf.mxu0
      %v618 = vadd.f32 0.0, %v617
      %v619 = vpop.f32.mrf.mxu0
      %v620 = vadd.f32 0.0, %v619
      %621 = vmatmul.bf16.gmra.mxu0 %v596
      %v622 = vpop.f32.mrf.mxu0
      %v623 = vadd.f32 0.0, %v622
      %v624 = vpop.f32.mrf.mxu0
      %v625 = vadd.f32 0.0, %v624
      %626 = vdwg.mxu0
      %v627 = vadd.f32 %v479, %v608
      %v628 = vadd.f32 %v481, %v610
      %v629 = vadd.f32 %v484, %v613
      %v630 = vadd.f32 %v486, %v615
      %v631 = vadd.f32 %v489, %v618
      %v632 = vadd.f32 %v491, %v620
      %v633 = vadd.f32 %v494, %v623
      %v634 = vadd.f32 %v496, %v625
      %s635 = scalar_lea.vmem %s1, 96
      %v636 = vld [vmem:[%s635] sm:$0xf]
      %v637 = vld [vmem:[%s635 + $0x4] sm:$0xf]
      %v638 = vld [vmem:[%s635 + $0x8] sm:$0xf]
      %v639 = vld [vmem:[%s635 + $0xc] sm:$0xf]
      %v640 = vld [vmem:[%s635 + $0x10] sm:$0xf]
      %v641 = vld [vmem:[%s635 + $0x14] sm:$0xf]
      %v642 = vld [vmem:[%s635 + $0x18] sm:$0xf]
      %v643 = vld [vmem:[%s635 + $0x1c] sm:$0xf]
      %v645 = vunpack.c.l.b16 %v199
      %v646 = vpack.c.b16 %v423, %v422
      %v647 = vpack.c.b16 %v425, %v424
      %v648 = vpack.c.b16 %v427, %v426
      %v649 = vpack.c.b16 %v645, %v428
      %v658 = vunpack.c.l.b16 %v636
      %v659 = vunpack.c.l.b16 %v637
      %v660 = vunpack.c.l.b16 %v638
      %v661 = vunpack.c.l.b16 %v639
      %v662 = vunpack.c.l.b16 %v640
      %v663 = vunpack.c.l.b16 %v641
      %v664 = vunpack.c.l.b16 %v642
      %v665 = vunpack.c.l.b16 %v643
      %v666 = vpack.c.b16 %v659, %v658
      %v667 = vpack.c.b16 %v661, %v660
      %v668 = vpack.c.b16 %v663, %v662
      %v669 = vpack.c.b16 %v665, %v664
      %v675 = vsel %vm371, %v646, 0
      %v678 = vsel %vm371, %v647, 0
      %v681 = vsel %vm371, %v648, 0
      %v684 = vsel %vm371, %v649, 0
      %686 = vmatpush.bf16.msra.mxu0 0
      %687 = vmatpush.bf16.msra.mxu0 0
      %688 = vmatpush.bf16.msra.mxu0 0
      %689 = vmatpush.bf16.msra.mxu0 0
      %690 = vmatpush.bf16.msra.mxu0 %v669
      %691 = vmatpush.bf16.msra.mxu0 %v668
      %692 = vmatpush.bf16.msra.mxu0 %v667
      %693 = vmatpush.bf16.msra.mxu0 %v666
      %694 = vmatmul.bf16.gmra.mxu0 %v675
      %v695 = vpop.f32.mrf.mxu0
      %v696 = vadd.f32 0.0, %v695
      %v697 = vpop.f32.mrf.mxu0
      %v698 = vadd.f32 0.0, %v697
      %699 = vmatmul.bf16.gmra.mxu0 %v678
      %v700 = vpop.f32.mrf.mxu0
      %v701 = vadd.f32 0.0, %v700
      %v702 = vpop.f32.mrf.mxu0
      %v703 = vadd.f32 0.0, %v702
      %704 = vmatmul.bf16.gmra.mxu0 %v681
      %v705 = vpop.f32.mrf.mxu0
      %v706 = vadd.f32 0.0, %v705
      %v707 = vpop.f32.mrf.mxu0
      %v708 = vadd.f32 0.0, %v707
      %709 = vmatmul.bf16.gmra.mxu0 %v684
      %v710 = vpop.f32.mrf.mxu0
      %v711 = vadd.f32 0.0, %v710
      %v712 = vpop.f32.mrf.mxu0
      %v713 = vadd.f32 0.0, %v712
      %714 = vdwg.mxu0
      %v715 = vadd.f32 %v627, %v696
      %v716 = vadd.f32 %v628, %v698
      %v717 = vadd.f32 %v629, %v701
      %v718 = vadd.f32 %v630, %v703
      %v719 = vadd.f32 %v631, %v706
      %v720 = vadd.f32 %v632, %v708
      %v721 = vadd.f32 %v633, %v711
      %v722 = vadd.f32 %v634, %v713
      %v724 = vshrl.u32 %v199, 16
      %v726 = vrot.slane %v724, 4
      %v727 = vshll.u32 %v199, 16
      %v729 = vrot.slane %v727, 5
      %v730 = vor.u32 %v726, %v729
      %v731 = vrot.slane %v730, 4
      %v733 = vshll.u32 %v200, 16
      %v735 = vrot.slane %v733, 5
      %v736 = vsel %vm213, %v731, %v735
      %s737 = scalar_lea.vmem %s1, 128
      %v738 = vld [vmem:[%s737] sm:$0xf]
      %v739 = vld [vmem:[%s737 + $0x4] sm:$0xf]
      %v740 = vld [vmem:[%s737 + $0x8] sm:$0xf]
      %v741 = vld [vmem:[%s737 + $0xc] sm:$0xf]
      %v742 = vld [vmem:[%s737 + $0x10] sm:$0xf]
      %v743 = vld [vmem:[%s737 + $0x14] sm:$0xf]
      %v744 = vld [vmem:[%s737 + $0x18] sm:$0xf]
      %v745 = vld [vmem:[%s737 + $0x1c] sm:$0xf]
      %v746 = vunpack.c.l.b16 %v736
      %v747 = vpack.c.b16 %v337, %v336
      %v748 = vpack.c.b16 %v339, %v338
      %v749 = vpack.c.b16 %v341, %v340
      %v750 = vpack.c.b16 %v746, %v342
      %v759 = vunpack.c.l.b16 %v738
      %v760 = vunpack.c.l.b16 %v739
      %v761 = vunpack.c.l.b16 %v740
      %v762 = vunpack.c.l.b16 %v741
      %v763 = vunpack.c.l.b16 %v742
      %v764 = vunpack.c.l.b16 %v743
      %v765 = vunpack.c.l.b16 %v744
      %v766 = vunpack.c.l.b16 %v745
      %v767 = vpack.c.b16 %v760, %v759
      %v768 = vpack.c.b16 %v762, %v761
      %v769 = vpack.c.b16 %v764, %v763
      %v770 = vpack.c.b16 %v766, %v765
      %v776 = vsel %vm371, %v747, 0
      %v779 = vsel %vm371, %v748, 0
      %v782 = vsel %vm371, %v749, 0
      %v785 = vsel %vm371, %v750, 0
      %787 = vmatpush.bf16.msra.mxu0 0
      %788 = vmatpush.bf16.msra.mxu0 0
      %789 = vmatpush.bf16.msra.mxu0 0
      %790 = vmatpush.bf16.msra.mxu0 0
      %791 = vmatpush.bf16.msra.mxu0 %v770
      %792 = vmatpush.bf16.msra.mxu0 %v769
      %793 = vmatpush.bf16.msra.mxu0 %v768
      %794 = vmatpush.bf16.msra.mxu0 %v767
      %795 = vmatmul.bf16.gmra.mxu0 %v776
      %v796 = vpop.f32.mrf.mxu0
      %v797 = vadd.f32 0.0, %v796
      %v798 = vpop.f32.mrf.mxu0
      %v799 = vadd.f32 0.0, %v798
      %800 = vmatmul.bf16.gmra.mxu0 %v779
      %v801 = vpop.f32.mrf.mxu0
      %v802 = vadd.f32 0.0, %v801
      %v803 = vpop.f32.mrf.mxu0
      %v804 = vadd.f32 0.0, %v803
      %805 = vmatmul.bf16.gmra.mxu0 %v782
      %v806 = vpop.f32.mrf.mxu0
      %v807 = vadd.f32 0.0, %v806
      %v808 = vpop.f32.mrf.mxu0
      %v809 = vadd.f32 0.0, %v808
      %810 = vmatmul.bf16.gmra.mxu0 %v785
      %v811 = vpop.f32.mrf.mxu0
      %v812 = vadd.f32 0.0, %v811
      %v813 = vpop.f32.mrf.mxu0
      %v814 = vadd.f32 0.0, %v813
      %815 = vdwg.mxu0
      %v816 = vadd.f32 %v715, %v797
      %v817 = vadd.f32 %v716, %v799
      %v818 = vadd.f32 %v717, %v802
      %v819 = vadd.f32 %v718, %v804
      %v820 = vadd.f32 %v719, %v807
      %v821 = vadd.f32 %v720, %v809
      %v822 = vadd.f32 %v721, %v812
      %v823 = vadd.f32 %v722, %v814
      %v825 = vrot.slane %v199, 5
      %v826 = vrot.slane %v825, 4
      %v827 = vrot.slane %v200, 5
      %v828 = vsel %vm508, %v826, %v827
      %s829 = scalar_lea.vmem %s1, 160
      %v830 = vld [vmem:[%s829] sm:$0xf]
      %v831 = vld [vmem:[%s829 + $0x4] sm:$0xf]
      %v832 = vld [vmem:[%s829 + $0x8] sm:$0xf]
      %v833 = vld [vmem:[%s829 + $0xc] sm:$0xf]
      %v834 = vld [vmem:[%s829 + $0x10] sm:$0xf]
      %v835 = vld [vmem:[%s829 + $0x14] sm:$0xf]
      %v836 = vld [vmem:[%s829 + $0x18] sm:$0xf]
      %v837 = vld [vmem:[%s829 + $0x1c] sm:$0xf]
      %v838 = vunpack.c.l.b16 %v828
      %v839 = vpack.c.b16 %v552, %v551
      %v840 = vpack.c.b16 %v554, %v553
      %v841 = vpack.c.b16 %v556, %v555
      %v842 = vpack.c.b16 %v838, %v557
      %v851 = vunpack.c.l.b16 %v830
      %v852 = vunpack.c.l.b16 %v831
      %v853 = vunpack.c.l.b16 %v832
      %v854 = vunpack.c.l.b16 %v833
      %v855 = vunpack.c.l.b16 %v834
      %v856 = vunpack.c.l.b16 %v835
      %v857 = vunpack.c.l.b16 %v836
      %v858 = vunpack.c.l.b16 %v837
      %v859 = vpack.c.b16 %v852, %v851
      %v860 = vpack.c.b16 %v854, %v853
      %v861 = vpack.c.b16 %v856, %v855
      %v862 = vpack.c.b16 %v858, %v857
      %v868 = vsel %vm371, %v839, 0
      %v871 = vsel %vm371, %v840, 0
      %v874 = vsel %vm371, %v841, 0
      %v877 = vsel %vm371, %v842, 0
      %879 = vmatpush.bf16.msra.mxu0 0
      %880 = vmatpush.bf16.msra.mxu0 0
      %881 = vmatpush.bf16.msra.mxu0 0
      %882 = vmatpush.bf16.msra.mxu0 0
      %883 = vmatpush.bf16.msra.mxu0 %v862
      %884 = vmatpush.bf16.msra.mxu0 %v861
      %885 = vmatpush.bf16.msra.mxu0 %v860
      %886 = vmatpush.bf16.msra.mxu0 %v859
      %887 = vmatmul.bf16.gmra.mxu0 %v868
      %v888 = vpop.f32.mrf.mxu0
      %v889 = vadd.f32 0.0, %v888
      %v890 = vpop.f32.mrf.mxu0
      %v891 = vadd.f32 0.0, %v890
      %892 = vmatmul.bf16.gmra.mxu0 %v871
      %v893 = vpop.f32.mrf.mxu0
      %v894 = vadd.f32 0.0, %v893
      %v895 = vpop.f32.mrf.mxu0
      %v896 = vadd.f32 0.0, %v895
      %897 = vmatmul.bf16.gmra.mxu0 %v874
      %v898 = vpop.f32.mrf.mxu0
      %v899 = vadd.f32 0.0, %v898
      %v900 = vpop.f32.mrf.mxu0
      %v901 = vadd.f32 0.0, %v900
      %902 = vmatmul.bf16.gmra.mxu0 %v877
      %v903 = vpop.f32.mrf.mxu0
      %v904 = vadd.f32 0.0, %v903
      %v905 = vpop.f32.mrf.mxu0
      %v906 = vadd.f32 0.0, %v905
      %907 = vdwg.mxu0
      %v908 = vadd.f32 %v816, %v889
      %v909 = vadd.f32 %v817, %v891
      %v910 = vadd.f32 %v818, %v894
      %v911 = vadd.f32 %v819, %v896
      %v912 = vadd.f32 %v820, %v899
      %v913 = vadd.f32 %v821, %v901
      %v914 = vadd.f32 %v822, %v904
      %v915 = vadd.f32 %v823, %v906
      %s916 = scalar_lea.vmem %s1, 192
      %v917 = vld [vmem:[%s916] sm:$0xf]
      %v918 = vld [vmem:[%s916 + $0x4] sm:$0xf]
      %v919 = vld [vmem:[%s916 + $0x8] sm:$0xf]
      %v920 = vld [vmem:[%s916 + $0xc] sm:$0xf]
      %v921 = vld [vmem:[%s916 + $0x10] sm:$0xf]
      %v922 = vld [vmem:[%s916 + $0x14] sm:$0xf]
      %v923 = vld [vmem:[%s916 + $0x18] sm:$0xf]
      %v924 = vld [vmem:[%s916 + $0x1c] sm:$0xf]
      %v926 = vunpack.c.l.b16 %v201
      %v927 = vpack.c.b16 %v926, %v645
      %v936 = vunpack.c.l.b16 %v917
      %v937 = vunpack.c.l.b16 %v918
      %v938 = vunpack.c.l.b16 %v919
      %v939 = vunpack.c.l.b16 %v920
      %v940 = vunpack.c.l.b16 %v921
      %v941 = vunpack.c.l.b16 %v922
      %v942 = vunpack.c.l.b16 %v923
      %v943 = vunpack.c.l.b16 %v924
      %v944 = vpack.c.b16 %v937, %v936
      %v945 = vpack.c.b16 %v939, %v938
      %v946 = vpack.c.b16 %v941, %v940
      %v947 = vpack.c.b16 %v943, %v942
      %v953 = vsel %vm371, %v927, 0
      %955 = vmatpush.bf16.msra.mxu0 0
      %956 = vmatpush.bf16.msra.mxu0 0
      %957 = vmatpush.bf16.msra.mxu0 0
      %958 = vmatpush.bf16.msra.mxu0 0
      %959 = vmatpush.bf16.msra.mxu0 %v947
      %960 = vmatpush.bf16.msra.mxu0 %v946
      %961 = vmatpush.bf16.msra.mxu0 %v945
      %962 = vmatpush.bf16.msra.mxu0 %v944
      %963 = vmatmul.bf16.gmra.mxu0 %v461
      %v964 = vpop.f32.mrf.mxu0
      %v965 = vadd.f32 0.0, %v964
      %v966 = vpop.f32.mrf.mxu0
      %v967 = vadd.f32 0.0, %v966
      %968 = vmatmul.bf16.gmra.mxu0 %v464
      %v969 = vpop.f32.mrf.mxu0
      %v970 = vadd.f32 0.0, %v969
      %v971 = vpop.f32.mrf.mxu0
      %v972 = vadd.f32 0.0, %v971
      %973 = vmatmul.bf16.gmra.mxu0 %v467
      %v974 = vpop.f32.mrf.mxu0
      %v975 = vadd.f32 0.0, %v974
      %v976 = vpop.f32.mrf.mxu0
      %v977 = vadd.f32 0.0, %v976
      %978 = vmatmul.bf16.gmra.mxu0 %v953
      %v979 = vpop.f32.mrf.mxu0
      %v980 = vadd.f32 0.0, %v979
      %v981 = vpop.f32.mrf.mxu0
      %v982 = vadd.f32 0.0, %v981
      %983 = vdwg.mxu0
      %v984 = vadd.f32 %v908, %v965
      %v985 = vadd.f32 %v909, %v967
      %v986 = vadd.f32 %v910, %v970
      %v987 = vadd.f32 %v911, %v972
      %v988 = vadd.f32 %v912, %v975
      %v989 = vadd.f32 %v913, %v977
      %v990 = vadd.f32 %v914, %v980
      %v991 = vadd.f32 %v915, %v982
      %v993 = vshrl.u32 %v201, 16
      %v995 = vrot.slane %v993, 4
      %v996 = vshll.u32 %v201, 16
      %v998 = vrot.slane %v996, 5
      %v999 = vor.u32 %v995, %v998
      %v1000 = vrot.slane %v999, 4
      %v1002 = vshll.u32 %v202, 16
      %v1004 = vrot.slane %v1002, 5
      %v1005 = vsel %vm213, %v1000, %v1004
      %s1006 = scalar_lea.vmem %s1, 224
      %v1007 = vld [vmem:[%s1006] sm:$0xf]
      %v1008 = vld [vmem:[%s1006 + $0x4] sm:$0xf]
      %v1009 = vld [vmem:[%s1006 + $0x8] sm:$0xf]
      %v1010 = vld [vmem:[%s1006 + $0xc] sm:$0xf]
      %v1011 = vld [vmem:[%s1006 + $0x10] sm:$0xf]
      %v1012 = vld [vmem:[%s1006 + $0x14] sm:$0xf]
      %v1013 = vld [vmem:[%s1006 + $0x18] sm:$0xf]
      %v1014 = vld [vmem:[%s1006 + $0x1c] sm:$0xf]
      %v1015 = vunpack.c.l.b16 %v1005
      %v1016 = vpack.c.b16 %v1015, %v746
      %v1025 = vunpack.c.l.b16 %v1007
      %v1026 = vunpack.c.l.b16 %v1008
      %v1027 = vunpack.c.l.b16 %v1009
      %v1028 = vunpack.c.l.b16 %v1010
      %v1029 = vunpack.c.l.b16 %v1011
      %v1030 = vunpack.c.l.b16 %v1012
      %v1031 = vunpack.c.l.b16 %v1013
      %v1032 = vunpack.c.l.b16 %v1014
      %v1033 = vpack.c.b16 %v1026, %v1025
      %v1034 = vpack.c.b16 %v1028, %v1027
      %v1035 = vpack.c.b16 %v1030, %v1029
      %v1036 = vpack.c.b16 %v1032, %v1031
      %v1042 = vsel %vm371, %v1016, 0
      %1044 = vmatpush.bf16.msra.mxu0 0
      %1045 = vmatpush.bf16.msra.mxu0 0
      %1046 = vmatpush.bf16.msra.mxu0 0
      %1047 = vmatpush.bf16.msra.mxu0 0
      %1048 = vmatpush.bf16.msra.mxu0 %v1036
      %1049 = vmatpush.bf16.msra.mxu0 %v1035
      %1050 = vmatpush.bf16.msra.mxu0 %v1034
      %1051 = vmatpush.bf16.msra.mxu0 %v1033
      %1052 = vmatmul.bf16.gmra.mxu0 %v376
      %v1053 = vpop.f32.mrf.mxu0
      %v1054 = vadd.f32 0.0, %v1053
      %v1055 = vpop.f32.mrf.mxu0
      %v1056 = vadd.f32 0.0, %v1055
      %1057 = vmatmul.bf16.gmra.mxu0 %v379
      %v1058 = vpop.f32.mrf.mxu0
      %v1059 = vadd.f32 0.0, %v1058
      %v1060 = vpop.f32.mrf.mxu0
      %v1061 = vadd.f32 0.0, %v1060
      %1062 = vmatmul.bf16.gmra.mxu0 %v382
      %v1063 = vpop.f32.mrf.mxu0
      %v1064 = vadd.f32 0.0, %v1063
      %v1065 = vpop.f32.mrf.mxu0
      %v1066 = vadd.f32 0.0, %v1065
      %1067 = vmatmul.bf16.gmra.mxu0 %v1042
      %v1068 = vpop.f32.mrf.mxu0
      %v1069 = vadd.f32 0.0, %v1068
      %v1070 = vpop.f32.mrf.mxu0
      %v1071 = vadd.f32 0.0, %v1070
      %1072 = vdwg.mxu0
      %v1073 = vadd.f32 %v984, %v1054
      %v1074 = vadd.f32 %v985, %v1056
      %v1075 = vadd.f32 %v986, %v1059
      %v1076 = vadd.f32 %v987, %v1061
      %v1077 = vadd.f32 %v988, %v1064
      %v1078 = vadd.f32 %v989, %v1066
      %v1079 = vadd.f32 %v990, %v1069
      %v1080 = vadd.f32 %v991, %v1071
      %v1082 = vrot.slane %v201, 5
      %v1083 = vrot.slane %v1082, 4
      %v1084 = vrot.slane %v202, 5
      %v1085 = vsel %vm508, %v1083, %v1084
      %s1086 = scalar_lea.vmem %s1, 256
      %v1087 = vld [vmem:[%s1086] sm:$0xf]
      %v1088 = vld [vmem:[%s1086 + $0x4] sm:$0xf]
      %v1089 = vld [vmem:[%s1086 + $0x8] sm:$0xf]
      %v1090 = vld [vmem:[%s1086 + $0xc] sm:$0xf]
      %v1091 = vld [vmem:[%s1086 + $0x10] sm:$0xf]
      %v1092 = vld [vmem:[%s1086 + $0x14] sm:$0xf]
      %v1093 = vld [vmem:[%s1086 + $0x18] sm:$0xf]
      %v1094 = vld [vmem:[%s1086 + $0x1c] sm:$0xf]
      %v1095 = vunpack.c.l.b16 %v1085
      %v1096 = vpack.c.b16 %v1095, %v838
      %v1105 = vunpack.c.l.b16 %v1087
      %v1106 = vunpack.c.l.b16 %v1088
      %v1107 = vunpack.c.l.b16 %v1089
      %v1108 = vunpack.c.l.b16 %v1090
      %v1109 = vunpack.c.l.b16 %v1091
      %v1110 = vunpack.c.l.b16 %v1092
      %v1111 = vunpack.c.l.b16 %v1093
      %v1112 = vunpack.c.l.b16 %v1094
      %v1113 = vpack.c.b16 %v1106, %v1105
      %v1114 = vpack.c.b16 %v1108, %v1107
      %v1115 = vpack.c.b16 %v1110, %v1109
      %v1116 = vpack.c.b16 %v1112, %v1111
      %v1122 = vsel %vm371, %v1096, 0
      %1124 = vmatpush.bf16.msra.mxu0 0
      %1125 = vmatpush.bf16.msra.mxu0 0
      %1126 = vmatpush.bf16.msra.mxu0 0
      %1127 = vmatpush.bf16.msra.mxu0 0
      %1128 = vmatpush.bf16.msra.mxu0 %v1116
      %1129 = vmatpush.bf16.msra.mxu0 %v1115
      %1130 = vmatpush.bf16.msra.mxu0 %v1114
      %1131 = vmatpush.bf16.msra.mxu0 %v1113
      %1132 = vmatmul.bf16.gmra.mxu0 %v590
      %v1133 = vpop.f32.mrf.mxu0
      %v1134 = vadd.f32 0.0, %v1133
      %v1135 = vpop.f32.mrf.mxu0
      %v1136 = vadd.f32 0.0, %v1135
      %1137 = vmatmul.bf16.gmra.mxu0 %v593
      %v1138 = vpop.f32.mrf.mxu0
      %v1139 = vadd.f32 0.0, %v1138
      %v1140 = vpop.f32.mrf.mxu0
      %v1141 = vadd.f32 0.0, %v1140
      %1142 = vmatmul.bf16.gmra.mxu0 %v596
      %v1143 = vpop.f32.mrf.mxu0
      %v1144 = vadd.f32 0.0, %v1143
      %v1145 = vpop.f32.mrf.mxu0
      %v1146 = vadd.f32 0.0, %v1145
      %1147 = vmatmul.bf16.gmra.mxu0 %v1122
      %v1148 = vpop.f32.mrf.mxu0
      %v1149 = vadd.f32 0.0, %v1148
      %v1150 = vpop.f32.mrf.mxu0
      %v1151 = vadd.f32 0.0, %v1150
      %1152 = vdwg.mxu0
      %v1153 = vadd.f32 %v1073, %v1134
      %v1154 = vadd.f32 %v1074, %v1136
      %v1155 = vadd.f32 %v1075, %v1139
      %v1156 = vadd.f32 %v1076, %v1141
      %v1157 = vadd.f32 %v1077, %v1144
      %v1158 = vadd.f32 %v1078, %v1146
      %v1159 = vadd.f32 %v1079, %v1149
      %v1160 = vadd.f32 %v1080, %v1151
      %1161 = vst.msk [vmem:[%s177] sm:$0xff] %vm371, %v1153
      %1162 = vst.msk [vmem:[%s177 + $0x8] sm:$0xff] %vm371, %v1154
      %1163 = vst.msk [vmem:[%s177 + $0x10] sm:$0xff] %vm371, %v1155
      %1164 = vst.msk [vmem:[%s177 + $0x18] sm:$0xff] %vm371, %v1156
      %1165 = vst.msk [vmem:[%s177 + $0x20] sm:$0xff] %vm371, %v1157
      %1166 = vst.msk [vmem:[%s177 + $0x28] sm:$0xff] %vm371, %v1158
      %1167 = vst.msk [vmem:[%s177 + $0x30] sm:$0xff] %vm371, %v1159
      %1168 = vst.msk [vmem:[%s177 + $0x38] sm:$0xff] %vm371, %v1160
      %v1169 = vsel %vm371, %v1153, 0.0
      %v1170 = vsel %vm371, %v1154, 0.0
      %v1171 = vadd.f32 %v1169, %v1170
      %v1172 = vsel %vm371, %v1155, 0.0
      %v1173 = vadd.f32 %v1171, %v1172
      %v1174 = vsel %vm371, %v1156, 0.0
      %v1175 = vadd.f32 %v1173, %v1174
      %v1176 = vsel %vm371, %v1157, 0.0
      %v1177 = vadd.f32 %v1175, %v1176
      %v1178 = vsel %vm371, %v1158, 0.0
      %v1179 = vadd.f32 %v1177, %v1178
      %v1180 = vsel %vm371, %v1159, 0.0
      %v1181 = vadd.f32 %v1179, %v1180
      %v1182 = vsel %vm371, %v1160, 0.0
      %v1183 = vadd.f32 %v1181, %v1182
      %v1184 = vrot.slane %v1183, 4
      %v1185 = vadd.f32 %v1183, %v1184
      %v1186 = vrot.slane %v1185, 2
      %v1187 = vadd.f32 %v1185, %v1186
      %v1188 = vrot.slane %v1187, 1
      %v1189 = vadd.f32 %v1187, %v1188
      %v1190 = vmul.f32 %v1153, %v1153
      %v1191 = vmul.f32 %v1154, %v1154
      %v1192 = vmul.f32 %v1155, %v1155
      %v1193 = vmul.f32 %v1156, %v1156
      %v1194 = vmul.f32 %v1157, %v1157
      %v1195 = vmul.f32 %v1158, %v1158
      %v1196 = vmul.f32 %v1159, %v1159
      %v1197 = vmul.f32 %v1160, %v1160
      %v1198 = vsel %vm371, %v1190, 0.0
      %v1199 = vsel %vm371, %v1191, 0.0
      %v1200 = vadd.f32 %v1198, %v1199
      %v1201 = vsel %vm371, %v1192, 0.0
      %v1202 = vadd.f32 %v1200, %v1201
      %v1203 = vsel %vm371, %v1193, 0.0
      %v1204 = vadd.f32 %v1202, %v1203
      %v1205 = vsel %vm371, %v1194, 0.0
      %v1206 = vadd.f32 %v1204, %v1205
      %v1207 = vsel %vm371, %v1195, 0.0
      %v1208 = vadd.f32 %v1206, %v1207
      %v1209 = vsel %vm371, %v1196, 0.0
      %v1210 = vadd.f32 %v1208, %v1209
      %v1211 = vsel %vm371, %v1197, 0.0
      %v1212 = vadd.f32 %v1210, %v1211
      %v1213 = vrot.slane %v1212, 4
      %v1214 = vadd.f32 %v1212, %v1213
      %v1215 = vrot.slane %v1214, 2
      %v1216 = vadd.f32 %v1214, %v1215
      %v1217 = vrot.slane %v1216, 1
      %v1218 = vadd.f32 %v1216, %v1217
      %vm1219 = vcmask 1040384
      %v1220 = vsel %vm1219, %v1189, %v1218
      %vm1221 = vcmask 517120
      %1222 = vst.msk [vmem:[%s181] sm:$0x3] %vm1221, %v1220
      %p1223 = scmp.lt.s32.totalorder %s15, 1
      %s1224 = scalar_select %p1223, %s15, 1
      %s1225 = smul.addr %s1224, 8
      %s1226 = smul.addr %s1225, 8
      %s1227 = scalar_lea.vmem %s2, %s1226
      %p1228 = scmp.lt.s32.totalorder %s15, 1
      %s1229 = scalar_select %p1228, %s15, 1
      %s1230 = smul.addr %s1229, 2
      %s1231 = scalar_lea.vmem %s3, %s1230
      // Predicated region
      $region29: #{feature_map_convolution.9} parent=27 // pred_check
        %p1232 = pneg %p80
      $region30: #{feature_map_convolution.9} parent=27 // pred_check_branch
        %1234 = sbr.rel (%p1232) target = $region32
      $region31: #{feature_map_convolution.9} parent=27 // pred_region
        _
      $region32: #{feature_map_convolution.9} parent=27 // pred_fallthru
        _
      // Predicated region
      $region33: #{feature_map_convolution.9} parent=27 // pred_check
        %p1235 = pneg %p106
      $region34: #{feature_map_convolution.9} parent=27 // pred_check_branch
        %1237 = sbr.rel (%p1235) target = $region36
      $region35: #{feature_map_convolution.9} parent=27 // pred_region
        _
      $region36: #{feature_map_convolution.9} parent=27 // pred_fallthru
        _
    $region28: #{feature_map_convolution.9} parent=5 // pred_fallthru
      _
    %p1238 = scmp.le.s32.totalorder 2, %s10
    // Predicated region
    $region37: #{feature_map_convolution.9} parent=5 // pred_check
      %p1239 = pneg %p1238
    $region38: #{feature_map_convolution.9} parent=5 // pred_check_branch
      %1241 = sbr.rel (%p1239) target = $region40
    $region39: #{feature_map_convolution.9} parent=5 // pred_region
      %s1242 = ssub.s32 %s10, 2
      // Predicated region
      $region41: #{feature_map_convolution.9} parent=39 // pred_check
        %p1243 = pneg %p86
      $region42: #{feature_map_convolution.9} parent=39 // pred_check_branch
        %1245 = sbr.rel (%p1243) target = $region44
      $region43: #{feature_map_convolution.9} parent=39 // pred_region
        %p1246 = scmp.lt.s32.totalorder %s16, 1
        %s1247 = scalar_select %p1246, %s16, 1
        %s1248 = smul.addr %s1247, 8
        %s1249 = smul.addr %s1248, 8
        %s1250 = scalar_lea.vmem %s2, %s1249
      $region44: #{feature_map_convolution.9} parent=39 // pred_fallthru
        _
      // Predicated region
      $region45: #{feature_map_convolution.9} parent=39 // pred_check
        %p1251 = pneg %p112
      $region46: #{feature_map_convolution.9} parent=39 // pred_check_branch
        %1253 = sbr.rel (%p1251) target = $region48
      $region47: #{feature_map_convolution.9} parent=39 // pred_region
        %p1254 = scmp.lt.s32.totalorder %s16, 1
        %s1255 = scalar_select %p1254, %s16, 1
        %s1256 = smul.addr %s1255, 2
        %s1257 = scalar_lea.vmem %s3, %s1256
      $region48: #{feature_map_convolution.9} parent=39 // pred_fallthru
        _
    $region40: #{feature_map_convolution.9} parent=5 // pred_fallthru
      _
  $region6: #{feature_map_convolution.9} parent=0 // loop_footer
    %s14 = sadd.s32 1, %s10
  $region7: #{feature_map_convolution.9} parent=0 // loop_footer_branch
    %9 = sbr.rel target = $region3
  $region8: #{feature_map_convolution.9} parent=0 // loop_exit
    _

// kernel: feature_map_convolution.12
$region0: #{feature_map_convolution.12}
  #allocation0 [shape = 'u32[]', space=smem, size = 0x4, offset = 0x4, fixed_abs, tag = 'smem constant byte address 0x4 - core index']
  #allocation1 [shape = 'u32[72,128]{1,0:T(1,128)}', space=vmem, size = 0x9000, scoped, tag = 'internal scratch']
  %s0 = inlined_call_operand.vmem [shape: f32[128,128], index: 0, kind: input, shape index: {}]
  %s1 = inlined_call_operand.vmem [shape: f32[1,128], index: 1, kind: input, shape index: {}]
  %s2 = inlined_call_operand.vmem [shape: f32[1,128], index: 2, kind: input, shape index: {}]
  %s3 = inlined_call_operand.vmem [shape: f32[128,128], index: 3, kind: output, shape index: {}]
  %s4 = sld [smem:[#allocation0]]
  $region22: #{feature_map_convolution.12} parent=0
    _
  %s6 = ssub.s32 1, %s4
  %s7 = scalar_select 0, %s6, %s4
  // Predicated region
  $region2: #{feature_map_convolution.12} parent=0 // pred_check
    _
  $region3: #{feature_map_convolution.12} parent=0 // pred_check_branch
    %9 = sbr.rel (0) target = $region5
  $region4: #{feature_map_convolution.12} parent=0 // pred_region
    _
  $region5: #{feature_map_convolution.12} parent=0 // pred_fallthru
    _
  // Predicated region
  $region6: #{feature_map_convolution.12} parent=0 // pred_check
    _
  $region7: #{feature_map_convolution.12} parent=0 // pred_check_branch
    %11 = sbr.rel (0) target = $region9
  $region8: #{feature_map_convolution.12} parent=0 // pred_region
    _
  $region9: #{feature_map_convolution.12} parent=0 // pred_fallthru
    _
  // Predicated region
  $region10: #{feature_map_convolution.12} parent=0 // pred_check
    _
  $region11: #{feature_map_convolution.12} parent=0 // pred_check_branch
    %13 = sbr.rel (0) target = $region13
  $region12: #{feature_map_convolution.12} parent=0 // pred_region
    _
  $region13: #{feature_map_convolution.12} parent=0 // pred_fallthru
    _
  %v14 = vld [vmem:[%s0] sm:$0xff]
  %v15 = vld [vmem:[%s0 + $0x8] sm:$0xff]
  %v16 = vld [vmem:[%s0 + $0x10] sm:$0xff]
  %v17 = vld [vmem:[%s0 + $0x18] sm:$0xff]
  %v18 = vld [vmem:[%s0 + $0x20] sm:$0xff]
  %v19 = vld [vmem:[%s0 + $0x28] sm:$0xff]
  %v20 = vld [vmem:[%s0 + $0x30] sm:$0xff]
  %v21 = vld [vmem:[%s0 + $0x38] sm:$0xff]
  %v22 = vld [vmem:[%s0 + $0x40] sm:$0xff]
  %v23 = vld [vmem:[%s0 + $0x48] sm:$0xff]
  %v24 = vld [vmem:[%s0 + $0x50] sm:$0xff]
  %v25 = vld [vmem:[%s0 + $0x58] sm:$0xff]
  %v26 = vld [vmem:[%s0 + $0x60] sm:$0xff]
  %v27 = vld [vmem:[%s0 + $0x68] sm:$0xff]
  %v28 = vld [vmem:[%s0 + $0x70] sm:$0xff]
  %v29 = vld [vmem:[%s0 + $0x78] sm:$0xff]
  %v30 = vld [vmem:[%s1] sm:$0x1]
  %v32 = vperm.slane %v30, 0
  %v34 = vmul.f32 %v14, %v32
  %v35 = vmul.f32 %v15, %v32
  %v36 = vmul.f32 %v16, %v32
  %v37 = vmul.f32 %v17, %v32
  %v38 = vmul.f32 %v18, %v32
  %v39 = vmul.f32 %v19, %v32
  %v40 = vmul.f32 %v20, %v32
  %v41 = vmul.f32 %v21, %v32
  %v42 = vmul.f32 %v22, %v32
  %v43 = vmul.f32 %v23, %v32
  %v44 = vmul.f32 %v24, %v32
  %v45 = vmul.f32 %v25, %v32
  %v46 = vmul.f32 %v26, %v32
  %v47 = vmul.f32 %v27, %v32
  %v48 = vmul.f32 %v28, %v32
  %v49 = vmul.f32 %v29, %v32
  %v50 = vld [vmem:[%s2] sm:$0x1]
  %v52 = vperm.slane %v50, 0
  %v54 = vadd.f32 %v34, %v52
  %v55 = vadd.f32 %v35, %v52
  %v56 = vadd.f32 %v36, %v52
  %v57 = vadd.f32 %v37, %v52
  %v58 = vadd.f32 %v38, %v52
  %v59 = vadd.f32 %v39, %v52
  %v60 = vadd.f32 %v40, %v52
  %v61 = vadd.f32 %v41, %v52
  %v62 = vadd.f32 %v42, %v52
  %v63 = vadd.f32 %v43, %v52
  %v64 = vadd.f32 %v44, %v52
  %v65 = vadd.f32 %v45, %v52
  %v66 = vadd.f32 %v46, %v52
  %v67 = vadd.f32 %v47, %v52
  %v68 = vadd.f32 %v48, %v52
  %v69 = vadd.f32 %v49, %v52
  %v70 = vmax.f32 %v54, 0.0
  %v71 = vmax.f32 %v55, 0.0
  %v72 = vmax.f32 %v56, 0.0
  %v73 = vmax.f32 %v57, 0.0
  %v74 = vmax.f32 %v58, 0.0
  %v75 = vmax.f32 %v59, 0.0
  %v76 = vmax.f32 %v60, 0.0
  %v77 = vmax.f32 %v61, 0.0
  %v78 = vmax.f32 %v62, 0.0
  %v79 = vmax.f32 %v63, 0.0
  %v80 = vmax.f32 %v64, 0.0
  %v81 = vmax.f32 %v65, 0.0
  %v82 = vmax.f32 %v66, 0.0
  %v83 = vmax.f32 %v67, 0.0
  %v84 = vmax.f32 %v68, 0.0
  %v85 = vmax.f32 %v69, 0.0
  %86 = vst [vmem:[%s3] sm:$0xff] %v70
  %87 = vst [vmem:[%s3 + $0x8] sm:$0xff] %v71
  %88 = vst [vmem:[%s3 + $0x10] sm:$0xff] %v72
  %89 = vst [vmem:[%s3 + $0x18] sm:$0xff] %v73
  %90 = vst [vmem:[%s3 + $0x20] sm:$0xff] %v74
  %91 = vst [vmem:[%s3 + $0x28] sm:$0xff] %v75
  %92 = vst [vmem:[%s3 + $0x30] sm:$0xff] %v76
  %93 = vst [vmem:[%s3 + $0x38] sm:$0xff] %v77
  %94 = vst [vmem:[%s3 + $0x40] sm:$0xff] %v78
  %95 = vst [vmem:[%s3 + $0x48] sm:$0xff] %v79
  %96 = vst [vmem:[%s3 + $0x50] sm:$0xff] %v80
  %97 = vst [vmem:[%s3 + $0x58] sm:$0xff] %v81
  %98 = vst [vmem:[%s3 + $0x60] sm:$0xff] %v82
  %99 = vst [vmem:[%s3 + $0x68] sm:$0xff] %v83
  %100 = vst [vmem:[%s3 + $0x70] sm:$0xff] %v84
  %101 = vst [vmem:[%s3 + $0x78] sm:$0xff] %v85
  // Predicated region
  $region14: #{feature_map_convolution.12} parent=0 // pred_check
    _
  $region15: #{feature_map_convolution.12} parent=0 // pred_check_branch
    %103 = sbr.rel (0) target = $region17
  $region16: #{feature_map_convolution.12} parent=0 // pred_region
    _
  $region17: #{feature_map_convolution.12} parent=0 // pred_fallthru
    _
  // Predicated region
  $region18: #{feature_map_convolution.12} parent=0 // pred_check
    _
  $region19: #{feature_map_convolution.12} parent=0 // pred_check_branch
    %105 = sbr.rel (0) target = $region21
  $region20: #{feature_map_convolution.12} parent=0 // pred_region
    _
  $region21: #{feature_map_convolution.12} parent=0 // pred_fallthru
    _

// kernel: feature_map_convolution.11
$region0: #{feature_map_convolution.11}
  #allocation0 [shape = 'u32[]', space=smem, size = 0x4, offset = 0x4, fixed_abs, tag = 'smem constant byte address 0x4 - core index']
  #allocation1 [shape = 'u32[72,128]{1,0:T(1,128)}', space=vmem, size = 0x9000, scoped, tag = 'internal scratch']
  %s0 = inlined_call_operand.vmem [shape: bf16[2,10,10,64], index: 0, kind: input, shape index: {}]
  %s1 = inlined_call_operand.vmem [shape: bf16[9,64,128], index: 1, kind: input, shape index: {}]
  %s2 = inlined_call_operand.vmem [shape: f32[2,8,8,128], index: 2, kind: output, shape index: {0}]
  %s3 = inlined_call_operand.vmem [shape: f32[2,2,128], index: 3, kind: output, shape index: {1}]
  %4 = xla_tuple %s2, %s3
  %s5 = sld [smem:[#allocation0]]
  $region49: #{feature_map_convolution.11} parent=0
    _
  %s7 = ssub.s32 1, %s5
  %s8 = scalar_select 0, %s7, %s5
  loop: start=0, step=1, limit=4
  $region2: #{feature_map_convolution.11} parent=0 // loop_pre_header
    _
  $region3: #{feature_map_convolution.11} parent=0 // loop_header
    %s10 = sphi 0, %s14
    %p11 = scmp.ge.s32.totalorder %s10, 4
    %s20 = sphi 0, %s22
    %s23 = sphi 0, %s20
    %s24 = sphi 0, %s23
    %s40 = sphi 0, %s24
    %s44 = sphi 0, %s44
    %s46 = sphi 0, %s44
    %s47 = sphi 0, %s46
    %s61 = sphi 0, %s47
    %s67 = sphi 0, %s69
    %s70 = sphi 0, %s67
    %s71 = sphi 0, %s70
    %s87 = sphi 0, %s71
    %s93 = sphi 0, %s95
    %s96 = sphi 0, %s93
    %s97 = sphi 0, %s96
    %s113 = sphi 0, %s97
  $region4: #{feature_map_convolution.11} parent=0 // loop_header_branch
    %13 = sbr.rel (%p11) target = $region8
  $region5: #{feature_map_convolution.11} parent=0 // loop_body
    %s15 = ssub.s32 %s10, 1
    %s16 = ssub.s32 %s10, 2
    %s17 = sadd.s32 %s10, 1
    %s18 = ssub.s32 %s10, %s17
    %p19 = scmp.eq.s32.totalorder %s18, 0
    %s21 = sadd.s32 %s20, 1
    %s22 = scalar_select %p19, %s20, %s21
    %p25 = pneg %p19
    %p26 = scmp.eq.s32.totalorder %s10, 1
    %p27 = por %p25, %p26
    %p28 = scmp.ne.s32.totalorder %s20, %s23
    %p29 = scmp.eq.s32.totalorder %s10, 0
    %p30 = por %p28, %p29
    %p31 = scmp.ne.s32.totalorder %s20, %s23
    %p32 = scmp.eq.s32.totalorder %s15, 1
    %p33 = por %p31, %p32
    %p34 = scmp.ne.s32.totalorder %s23, %s24
    %p35 = scmp.eq.s32.totalorder %s15, 0
    %p36 = por %p34, %p35
    %p37 = scmp.ne.s32.totalorder %s23, %s24
    %p38 = scmp.eq.s32.totalorder %s16, 1
    %p39 = por %p37, %p38
    %p41 = scmp.ne.s32.totalorder %s24, %s40
    %p42 = scmp.eq.s32.totalorder %s16, 0
    %p43 = por %p41, %p42
    %s45 = sadd.s32 %s44, 1
    %p48 = scmp.eq.s32.totalorder %s10, 1
    %p49 = scmp.ne.s32.totalorder %s44, %s46
    %p50 = scmp.eq.s32.totalorder %s10, 0
    %p51 = por %p49, %p50
    %p52 = scmp.ne.s32.totalorder %s44, %s46
    %p53 = scmp.eq.s32.totalorder %s15, 1
    %p54 = por %p52, %p53
    %p55 = scmp.ne.s32.totalorder %s46, %s47
    %p56 = scmp.eq.s32.totalorder %s15, 0
    %p57 = por %p55, %p56
    %p58 = scmp.ne.s32.totalorder %s46, %s47
    %p59 = scmp.eq.s32.totalorder %s16, 1
    %p60 = por %p58, %p59
    %p62 = scmp.ne.s32.totalorder %s47, %s61
    %p63 = scmp.eq.s32.totalorder %s16, 0
    %p64 = por %p62, %p63
    %s65 = ssub.s32 %s10, %s17
    %p66 = scmp.eq.s32.totalorder %s65, 0
    %s68 = sadd.s32 %s67, 1
    %s69 = scalar_select %p66, %s67, %s68
    %p72 = pneg %p66
    %p73 = scmp.eq.s32.totalorder %s10, 1
    %p74 = por %p72, %p73
    %p75 = scmp.ne.s32.totalorder %s67, %s70
    %p76 = scmp.eq.s32.totalorder %s10, 0
    %p77 = por %p75, %p76
    %p78 = scmp.ne.s32.totalorder %s67, %s70
    %p79 = scmp.eq.s32.totalorder %s15, 1
    %p80 = por %p78, %p79
    %p81 = scmp.ne.s32.totalorder %s70, %s71
    %p82 = scmp.eq.s32.totalorder %s15, 0
    %p83 = por %p81, %p82
    %p84 = scmp.ne.s32.totalorder %s70, %s71
    %p85 = scmp.eq.s32.totalorder %s16, 1
    %p86 = por %p84, %p85
    %p88 = scmp.ne.s32.totalorder %s71, %s87
    %p89 = scmp.eq.s32.totalorder %s16, 0
    %p90 = por %p88, %p89
    %s91 = ssub.s32 %s10, %s17
    %p92 = scmp.eq.s32.totalorder %s91, 0
    %s94 = sadd.s32 %s93, 1
    %s95 = scalar_select %p92, %s93, %s94
    %p98 = pneg %p92
    %p99 = scmp.eq.s32.totalorder %s10, 1
    %p100 = por %p98, %p99
    %p101 = scmp.ne.s32.totalorder %s93, %s96
    %p102 = scmp.eq.s32.totalorder %s10, 0
    %p103 = por %p101, %p102
    %p104 = scmp.ne.s32.totalorder %s93, %s96
    %p105 = scmp.eq.s32.totalorder %s15, 1
    %p106 = por %p104, %p105
    %p107 = scmp.ne.s32.totalorder %s96, %s97
    %p108 = scmp.eq.s32.totalorder %s15, 0
    %p109 = por %p107, %p108
    %p110 = scmp.ne.s32.totalorder %s96, %s97
    %p111 = scmp.eq.s32.totalorder %s16, 1
    %p112 = por %p110, %p111
    %p114 = scmp.ne.s32.totalorder %s97, %s113
    %p115 = scmp.eq.s32.totalorder %s16, 0
    %p116 = por %p114, %p115
    %p117 = scmp.le.s32.totalorder 1, %s10
    %p118 = scmp.lt.s32.totalorder %s10, 3
    %p119 = pnand %p117, %p118
    %p120 = pneg %p119
    // Predicated region
    $region9: #{feature_map_convolution.11} parent=5 // pred_check
      _
    $region10: #{feature_map_convolution.11} parent=5 // pred_check_branch
      %122 = sbr.rel (%p119) target = $region12
    $region11: #{feature_map_convolution.11} parent=5 // pred_region
      %s123 = ssub.s32 %s10, 1
      // Predicated region
      $region13: #{feature_map_convolution.11} parent=11 // pred_check
        %p124 = pneg %p57
      $region14: #{feature_map_convolution.11} parent=11 // pred_check_branch
        %126 = sbr.rel (%p124) target = $region16
      $region15: #{feature_map_convolution.11} parent=11 // pred_region
        _
      $region16: #{feature_map_convolution.11} parent=11 // pred_fallthru
        _
    $region12: #{feature_map_convolution.11} parent=5 // pred_fallthru
      _
    %p127 = scmp.lt.s32.totalorder %s10, 2
    // Predicated region
    $region17: #{feature_map_convolution.11} parent=5 // pred_check
      %p128 = pneg %p127
    $region18: #{feature_map_convolution.11} parent=5 // pred_check_branch
      %130 = sbr.rel (%p128) target = $region20
    $region19: #{feature_map_convolution.11} parent=5 // pred_region
      // Predicated region
      $region21: #{feature_map_convolution.11} parent=19 // pred_check
        %p131 = pneg %p30
      $region22: #{feature_map_convolution.11} parent=19 // pred_check_branch
        %133 = sbr.rel (%p131) target = $region24
      $region23: #{feature_map_convolution.11} parent=19 // pred_region
        %p134 = scmp.lt.s32.totalorder %s10, 1
        %s135 = scalar_select %p134, %s10, 1
        %s136 = smul.addr %s135, 20
        %s137 = smul.addr %s136, 4
        %s138 = scalar_lea.vmem %s0, %s137
      $region24: #{feature_map_convolution.11} parent=19 // pred_fallthru
        _
    $region20: #{feature_map_convolution.11} parent=5 // pred_fallthru
      _
    %p139 = scmp.le.s32.totalorder 1, %s10
    %p140 = scmp.lt.s32.totalorder %s10, 3
    %p141 = pnand %p139, %p140
    %p142 = pneg %p141
    // Predicated region
    $region25: #{feature_map_convolution.11} parent=5 // pred_check
      _
    $region26: #{feature_map_convolution.11} parent=5 // pred_check_branch
      %144 = sbr.rel (%p141) target = $region28
    $region27: #{feature_map_convolution.11} parent=5 // pred_region
      %s145 = ssub.s32 %s10, 1
      %p146 = scmp.lt.s32.totalorder %s15, 1
      %s147 = scalar_select %p146, %s15, 1
      %s148 = smul.addr %s147, 20
      %s149 = smul.addr %s148, 4
      %s150 = scalar_lea.vmem %s0, %s149
      %p151 = pneg %p36
      %p152 = pneg %p33
      %p153 = pneg %p57
      %p154 = pneg %p54
      %p155 = pneg %p83
      %p156 = pneg %p80
      %p157 = scmp.lt.s32.totalorder %s15, 1
      %s158 = scalar_select %p157, %s15, 1
      %s159 = smul.addr %s158, 8
      %s160 = smul.addr %s159, 8
      %s161 = scalar_lea.vmem %s2, %s160
      %p162 = pneg %p109
      %p163 = pneg %p106
      %p164 = scmp.lt.s32.totalorder %s15, 1
      %s165 = scalar_select %p164, %s15, 1
      %s166 = smul.addr %s165, 2
      %s167 = scalar_lea.vmem %s3, %s166
      %p168 = scmp.lt.s32.totalorder %s15, 1
      %s169 = scalar_select %p168, %s15, 1
      %s170 = smul.addr %s169, 20
      %s171 = smul.addr %s170, 4
      %s172 = scalar_lea.vmem %s0, %s171
      %p173 = scmp.lt.s32.totalorder %s15, 1
      %s174 = scalar_select %p173, %s15, 1
      %s175 = smul.addr %s174, 8
      %s176 = smul.addr %s175, 8
      %s177 = scalar_lea.vmem %s2, %s176
      %p178 = scmp.lt.s32.totalorder %s15, 1
      %s179 = scalar_select %p178, %s15, 1
      %s180 = smul.addr %s179, 2
      %s181 = scalar_lea.vmem %s3, %s180
      %v183 = vld [vmem:[%s172] sm:$0xf]
      %v184 = vld [vmem:[%s172 + $0x4] sm:$0x1]
      %v185 = vld [vmem:[%s172 + $0x8] sm:$0xf]
      %v186 = vld [vmem:[%s172 + $0xc] sm:$0x1]
      %v187 = vld [vmem:[%s172 + $0x10] sm:$0xf]
      %v188 = vld [vmem:[%s172 + $0x14] sm:$0x1]
      %v189 = vld [vmem:[%s172 + $0x18] sm:$0xf]
      %v190 = vld [vmem:[%s172 + $0x1c] sm:$0x1]
      %v191 = vld [vmem:[%s172 + $0x20] sm:$0xf]
      %v192 = vld [vmem:[%s172 + $0x24] sm:$0x1]
      %v193 = vld [vmem:[%s172 + $0x28] sm:$0xf]
      %v194 = vld [vmem:[%s172 + $0x2c] sm:$0x1]
      %v195 = vld [vmem:[%s172 + $0x30] sm:$0xf]
      %v196 = vld [vmem:[%s172 + $0x34] sm:$0x1]
      %v197 = vld [vmem:[%s172 + $0x38] sm:$0xf]
      %v198 = vld [vmem:[%s172 + $0x3c] sm:$0x1]
      %v199 = vld [vmem:[%s172 + $0x40] sm:$0xf]
      %v200 = vld [vmem:[%s172 + $0x44] sm:$0x1]
      %v201 = vld [vmem:[%s172 + $0x48] sm:$0xf]
      %v202 = vld [vmem:[%s172 + $0x4c] sm:$0x1]
      %v203 = vld [vmem:[%s1] sm:$0xf]
      %v204 = vld [vmem:[%s1 + $0x4] sm:$0xf]
      %v205 = vld [vmem:[%s1 + $0x8] sm:$0xf]
      %v206 = vld [vmem:[%s1 + $0xc] sm:$0xf]
      %v207 = vld [vmem:[%s1 + $0x10] sm:$0xf]
      %v208 = vld [vmem:[%s1 + $0x14] sm:$0xf]
      %v209 = vld [vmem:[%s1 + $0x18] sm:$0xf]
      %v210 = vld [vmem:[%s1 + $0x1c] sm:$0xf]
      %vm211 = vsmask.f32 3328
      %vm212 = vsmask.f32 7440
      %vm213 = vmor %vm211, %vm212
      %v215 = vshrl.u32 %v183, 16
      %v217 = vrot.slane %v215, 4
      %v218 = vshll.u32 %v183, 16
      %v220 = vrot.slane %v218, 5
      %v221 = vor.u32 %v217, %v220
      %v222 = vrot.slane %v221, 4
      %v224 = vshll.u32 %v184, 16
      %v226 = vrot.slane %v224, 5
      %v227 = vsel %vm213, %v222, %v226
      %v229 = vshrl.u32 %v185, 16
      %v231 = vrot.slane %v229, 4
      %v232 = vshll.u32 %v185, 16
      %v234 = vrot.slane %v232, 5
      %v235 = vor.u32 %v231, %v234
      %v236 = vrot.slane %v235, 4
      %v238 = vshll.u32 %v186, 16
      %v240 = vrot.slane %v238, 5
      %v241 = vsel %vm213, %v236, %v240
      %v243 = vshrl.u32 %v187, 16
      %v245 = vrot.slane %v243, 4
      %v246 = vshll.u32 %v187, 16
      %v248 = vrot.slane %v246, 5
      %v249 = vor.u32 %v245, %v248
      %v250 = vrot.slane %v249, 4
      %v252 = vshll.u32 %v188, 16
      %v254 = vrot.slane %v252, 5
      %v255 = vsel %vm213, %v250, %v254
      %v257 = vshrl.u32 %v189, 16
      %v259 = vrot.slane %v257, 4
      %v260 = vshll.u32 %v189, 16
      %v262 = vrot.slane %v260, 5
      %v263 = vor.u32 %v259, %v262
      %v264 = vrot.slane %v263, 4
      %v266 = vshll.u32 %v190, 16
      %v268 = vrot.slane %v266, 5
      %v269 = vsel %vm213, %v264, %v268
      %v271 = vshrl.u32 %v191, 16
      %v273 = vrot.slane %v271, 4
      %v274 = vshll.u32 %v191, 16
      %v276 = vrot.slane %v274, 5
      %v277 = vor.u32 %v273, %v276
      %v278 = vrot.slane %v277, 4
      %v280 = vshll.u32 %v192, 16
      %v282 = vrot.slane %v280, 5
      %v283 = vsel %vm213, %v278, %v282
      %v285 = vshrl.u32 %v193, 16
      %v287 = vrot.slane %v285, 4
      %v288 = vshll.u32 %v193, 16
      %v290 = vrot.slane %v288, 5
      %v291 = vor.u32 %v287, %v290
      %v292 = vrot.slane %v291, 4
      %v294 = vshll.u32 %v194, 16
      %v296 = vrot.slane %v294, 5
      %v297 = vsel %vm213, %v292, %v296
      %v299 = vshrl.u32 %v195, 16
      %v301 = vrot.slane %v299, 4
      %v302 = vshll.u32 %v195, 16
      %v304 = vrot.slane %v302, 5
      %v305 = vor.u32 %v301, %v304
      %v306 = vrot.slane %v305, 4
      %v308 = vshll.u32 %v196, 16
      %v310 = vrot.slane %v308, 5
      %v311 = vsel %vm213, %v306, %v310
      %v313 = vshrl.u32 %v197, 16
      %v315 = vrot.slane %v313, 4
      %v316 = vshll.u32 %v197, 16
      %v318 = vrot.slane %v316, 5
      %v319 = vor.u32 %v315, %v318
      %v320 = vrot.slane %v319, 4
      %v322 = vshll.u32 %v198, 16
      %v324 = vrot.slane %v322, 5
      %v325 = vsel %vm213, %v320, %v324
      %s326 = scalar_lea.vmem %s1, 32
      %v327 = vld [vmem:[%s326] sm:$0xf]
      %v328 = vld [vmem:[%s326 + $0x4] sm:$0xf]
      %v329 = vld [vmem:[%s326 + $0x8] sm:$0xf]
      %v330 = vld [vmem:[%s326 + $0xc] sm:$0xf]
      %v331 = vld [vmem:[%s326 + $0x10] sm:$0xf]
      %v332 = vld [vmem:[%s326 + $0x14] sm:$0xf]
      %v333 = vld [vmem:[%s326 + $0x18] sm:$0xf]
      %v334 = vld [vmem:[%s326 + $0x1c] sm:$0xf]
      %v335 = vunpack.c.l.b16 %v227
      %v336 = vunpack.c.l.b16 %v241
      %v337 = vunpack.c.l.b16 %v255
      %v338 = vunpack.c.l.b16 %v269
      %v339 = vunpack.c.l.b16 %v283
      %v340 = vunpack.c.l.b16 %v297
      %v341 = vunpack.c.l.b16 %v311
      %v342 = vunpack.c.l.b16 %v325
      %v343 = vpack.c.b16 %v336, %v335
      %v344 = vpack.c.b16 %v338, %v337
      %v345 = vpack.c.b16 %v340, %v339
      %v346 = vpack.c.b16 %v342, %v341
      %v355 = vunpack.c.l.b16 %v327
      %v356 = vunpack.c.l.b16 %v328
      %v357 = vunpack.c.l.b16 %v329
      %v358 = vunpack.c.l.b16 %v330
      %v359 = vunpack.c.l.b16 %v331
      %v360 = vunpack.c.l.b16 %v332
      %v361 = vunpack.c.l.b16 %v333
      %v362 = vunpack.c.l.b16 %v334
      %v363 = vpack.c.b16 %v356, %v355
      %v364 = vpack.c.b16 %v358, %v357
      %v365 = vpack.c.b16 %v360, %v359
      %v366 = vpack.c.b16 %v362, %v361
      %vm371 = vcmask 523264
      %v373 = vsel %vm371, %v343, 0
      %v376 = vsel %vm371, %v344, 0
      %v379 = vsel %vm371, %v345, 0
      %v382 = vsel %vm371, %v346, 0
      %384 = vmatpush.bf16.msra.mxu0 0
      %385 = vmatpush.bf16.msra.mxu0 0
      %386 = vmatpush.bf16.msra.mxu0 0
      %387 = vmatpush.bf16.msra.mxu0 0
      %388 = vmatpush.bf16.msra.mxu0 %v366
      %389 = vmatpush.bf16.msra.mxu0 %v365
      %390 = vmatpush.bf16.msra.mxu0 %v364
      %391 = vmatpush.bf16.msra.mxu0 %v363
      %392 = vmatmul.bf16.gmra.mxu0 %v373
      %v393 = vpop.f32.mrf.mxu0
      %v394 = vadd.f32 0.0, %v393
      %v395 = vpop.f32.mrf.mxu0
      %v396 = vadd.f32 0.0, %v395
      %397 = vmatmul.bf16.gmra.mxu0 %v376
      %v398 = vpop.f32.mrf.mxu0
      %v399 = vadd.f32 0.0, %v398
      %v400 = vpop.f32.mrf.mxu0
      %v401 = vadd.f32 0.0, %v400
      %402 = vmatmul.bf16.gmra.mxu0 %v379
      %v403 = vpop.f32.mrf.mxu0
      %v404 = vadd.f32 0.0, %v403
      %v405 = vpop.f32.mrf.mxu0
      %v406 = vadd.f32 0.0, %v405
      %407 = vmatmul.bf16.gmra.mxu0 %v382
      %v408 = vpop.f32.mrf.mxu0
      %v409 = vadd.f32 0.0, %v408
      %v410 = vpop.f32.mrf.mxu0
      %v411 = vadd.f32 0.0, %v410
      %412 = vdwg.mxu0
      %v421 = vunpack.c.l.b16 %v183
      %v422 = vunpack.c.l.b16 %v185
      %v423 = vunpack.c.l.b16 %v187
      %v424 = vunpack.c.l.b16 %v189
      %v425 = vunpack.c.l.b16 %v191
      %v426 = vunpack.c.l.b16 %v193
      %v427 = vunpack.c.l.b16 %v195
      %v428 = vunpack.c.l.b16 %v197
      %v429 = vpack.c.b16 %v422, %v421
      %v430 = vpack.c.b16 %v424, %v423
      %v431 = vpack.c.b16 %v426, %v425
      %v432 = vpack.c.b16 %v428, %v427
      %v441 = vunpack.c.l.b16 %v203
      %v442 = vunpack.c.l.b16 %v204
      %v443 = vunpack.c.l.b16 %v205
      %v444 = vunpack.c.l.b16 %v206
      %v445 = vunpack.c.l.b16 %v207
      %v446 = vunpack.c.l.b16 %v208
      %v447 = vunpack.c.l.b16 %v209
      %v448 = vunpack.c.l.b16 %v210
      %v449 = vpack.c.b16 %v442, %v441
      %v450 = vpack.c.b16 %v444, %v443
      %v451 = vpack.c.b16 %v446, %v445
      %v452 = vpack.c.b16 %v448, %v447
      %v458 = vsel %vm371, %v429, 0
      %v461 = vsel %vm371, %v430, 0
      %v464 = vsel %vm371, %v431, 0
      %v467 = vsel %vm371, %v432, 0
      %469 = vmatpush.bf16.msra.mxu0 0
      %470 = vmatpush.bf16.msra.mxu0 0
      %471 = vmatpush.bf16.msra.mxu0 0
      %472 = vmatpush.bf16.msra.mxu0 0
      %473 = vmatpush.bf16.msra.mxu0 %v452
      %474 = vmatpush.bf16.msra.mxu0 %v451
      %475 = vmatpush.bf16.msra.mxu0 %v450
      %476 = vmatpush.bf16.msra.mxu0 %v449
      %477 = vmatmul.bf16.gmra.mxu0 %v458
      %v478 = vpop.f32.mrf.mxu0
      %v479 = vadd.f32 %v394, %v478
      %v480 = vpop.f32.mrf.mxu0
      %v481 = vadd.f32 %v396, %v480
      %482 = vmatmul.bf16.gmra.mxu0 %v461
      %v483 = vpop.f32.mrf.mxu0
      %v484 = vadd.f32 %v399, %v483
      %v485 = vpop.f32.mrf.mxu0
      %v486 = vadd.f32 %v401, %v485
      %487 = vmatmul.bf16.gmra.mxu0 %v464
      %v488 = vpop.f32.mrf.mxu0
      %v489 = vadd.f32 %v404, %v488
      %v490 = vpop.f32.mrf.mxu0
      %v491 = vadd.f32 %v406, %v490
      %492 = vmatmul.bf16.gmra.mxu0 %v467
      %v493 = vpop.f32.mrf.mxu0
      %v494 = vadd.f32 %v409, %v493
      %v495 = vpop.f32.mrf.mxu0
      %v496 = vadd.f32 %v411, %v495
      %497 = vdwg.mxu0
      %vm506 = vcmask 1042432
      %vm507 = vcmask 1046532
      %vm508 = vmor %vm506, %vm507
      %v509 = vrot.slane %v183, 5
      %v510 = vrot.slane %v509, 4
      %v511 = vrot.slane %v184, 5
      %v512 = vsel %vm508, %v510, %v511
      %v513 = vrot.slane %v185, 5
      %v514 = vrot.slane %v513, 4
      %v515 = vrot.slane %v186, 5
      %v516 = vsel %vm508, %v514, %v515
      %v517 = vrot.slane %v187, 5
      %v518 = vrot.slane %v517, 4
      %v519 = vrot.slane %v188, 5
      %v520 = vsel %vm508, %v518, %v519
      %v521 = vrot.slane %v189, 5
      %v522 = vrot.slane %v521, 4
      %v523 = vrot.slane %v190, 5
      %v524 = vsel %vm508, %v522, %v523
      %v525 = vrot.slane %v191, 5
      %v526 = vrot.slane %v525, 4
      %v527 = vrot.slane %v192, 5
      %v528 = vsel %vm508, %v526, %v527
      %v529 = vrot.slane %v193, 5
      %v530 = vrot.slane %v529, 4
      %v531 = vrot.slane %v194, 5
      %v532 = vsel %vm508, %v530, %v531
      %v533 = vrot.slane %v195, 5
      %v534 = vrot.slane %v533, 4
      %v535 = vrot.slane %v196, 5
      %v536 = vsel %vm508, %v534, %v535
      %v537 = vrot.slane %v197, 5
      %v538 = vrot.slane %v537, 4
      %v539 = vrot.slane %v198, 5
      %v540 = vsel %vm508, %v538, %v539
      %s541 = scalar_lea.vmem %s1, 64
      %v542 = vld [vmem:[%s541] sm:$0xf]
      %v543 = vld [vmem:[%s541 + $0x4] sm:$0xf]
      %v544 = vld [vmem:[%s541 + $0x8] sm:$0xf]
      %v545 = vld [vmem:[%s541 + $0xc] sm:$0xf]
      %v546 = vld [vmem:[%s541 + $0x10] sm:$0xf]
      %v547 = vld [vmem:[%s541 + $0x14] sm:$0xf]
      %v548 = vld [vmem:[%s541 + $0x18] sm:$0xf]
      %v549 = vld [vmem:[%s541 + $0x1c] sm:$0xf]
      %v550 = vunpack.c.l.b16 %v512
      %v551 = vunpack.c.l.b16 %v516
      %v552 = vunpack.c.l.b16 %v520
      %v553 = vunpack.c.l.b16 %v524
      %v554 = vunpack.c.l.b16 %v528
      %v555 = vunpack.c.l.b16 %v532
      %v556 = vunpack.c.l.b16 %v536
      %v557 = vunpack.c.l.b16 %v540
      %v558 = vpack.c.b16 %v551, %v550
      %v559 = vpack.c.b16 %v553, %v552
      %v560 = vpack.c.b16 %v555, %v554
      %v561 = vpack.c.b16 %v557, %v556
      %v570 = vunpack.c.l.b16 %v542
      %v571 = vunpack.c.l.b16 %v543
      %v572 = vunpack.c.l.b16 %v544
      %v573 = vunpack.c.l.b16 %v545
      %v574 = vunpack.c.l.b16 %v546
      %v575 = vunpack.c.l.b16 %v547
      %v576 = vunpack.c.l.b16 %v548
      %v577 = vunpack.c.l.b16 %v549
      %v578 = vpack.c.b16 %v571, %v570
      %v579 = vpack.c.b16 %v573, %v572
      %v580 = vpack.c.b16 %v575, %v574
      %v581 = vpack.c.b16 %v577, %v576
      %v587 = vsel %vm371, %v558, 0
      %v590 = vsel %vm371, %v559, 0
      %v593 = vsel %vm371, %v560, 0
      %v596 = vsel %vm371, %v561, 0
      %598 = vmatpush.bf16.msra.mxu0 0
      %599 = vmatpush.bf16.msra.mxu0 0
      %600 = vmatpush.bf16.msra.mxu0 0
      %601 = vmatpush.bf16.msra.mxu0 0
      %602 = vmatpush.bf16.msra.mxu0 %v581
      %603 = vmatpush.bf16.msra.mxu0 %v580
      %604 = vmatpush.bf16.msra.mxu0 %v579
      %605 = vmatpush.bf16.msra.mxu0 %v578
      %606 = vmatmul.bf16.gmra.mxu0 %v587
      %v607 = vpop.f32.mrf.mxu0
      %v608 = vadd.f32 0.0, %v607
      %v609 = vpop.f32.mrf.mxu0
      %v610 = vadd.f32 0.0, %v609
      %611 = vmatmul.bf16.gmra.mxu0 %v590
      %v612 = vpop.f32.mrf.mxu0
      %v613 = vadd.f32 0.0, %v612
      %v614 = vpop.f32.mrf.mxu0
      %v615 = vadd.f32 0.0, %v614
      %616 = vmatmul.bf16.gmra.mxu0 %v593
      %v617 = vpop.f32.mrf.mxu0
      %v618 = vadd.f32 0.0, %v617
      %v619 = vpop.f32.mrf.mxu0
      %v620 = vadd.f32 0.0, %v619
      %621 = vmatmul.bf16.gmra.mxu0 %v596
      %v622 = vpop.f32.mrf.mxu0
      %v623 = vadd.f32 0.0, %v622
      %v624 = vpop.f32.mrf.mxu0
      %v625 = vadd.f32 0.0, %v624
      %626 = vdwg.mxu0
      %v627 = vadd.f32 %v479, %v608
      %v628 = vadd.f32 %v481, %v610
      %v629 = vadd.f32 %v484, %v613
      %v630 = vadd.f32 %v486, %v615
      %v631 = vadd.f32 %v489, %v618
      %v632 = vadd.f32 %v491, %v620
      %v633 = vadd.f32 %v494, %v623
      %v634 = vadd.f32 %v496, %v625
      %s635 = scalar_lea.vmem %s1, 96
      %v636 = vld [vmem:[%s635] sm:$0xf]
      %v637 = vld [vmem:[%s635 + $0x4] sm:$0xf]
      %v638 = vld [vmem:[%s635 + $0x8] sm:$0xf]
      %v639 = vld [vmem:[%s635 + $0xc] sm:$0xf]
      %v640 = vld [vmem:[%s635 + $0x10] sm:$0xf]
      %v641 = vld [vmem:[%s635 + $0x14] sm:$0xf]
      %v642 = vld [vmem:[%s635 + $0x18] sm:$0xf]
      %v643 = vld [vmem:[%s635 + $0x1c] sm:$0xf]
      %v645 = vunpack.c.l.b16 %v199
      %v646 = vpack.c.b16 %v423, %v422
      %v647 = vpack.c.b16 %v425, %v424
      %v648 = vpack.c.b16 %v427, %v426
      %v649 = vpack.c.b16 %v645, %v428
      %v658 = vunpack.c.l.b16 %v636
      %v659 = vunpack.c.l.b16 %v637
      %v660 = vunpack.c.l.b16 %v638
      %v661 = vunpack.c.l.b16 %v639
      %v662 = vunpack.c.l.b16 %v640
      %v663 = vunpack.c.l.b16 %v641
      %v664 = vunpack.c.l.b16 %v642
      %v665 = vunpack.c.l.b16 %v643
      %v666 = vpack.c.b16 %v659, %v658
      %v667 = vpack.c.b16 %v661, %v660
      %v668 = vpack.c.b16 %v663, %v662
      %v669 = vpack.c.b16 %v665, %v664
      %v675 = vsel %vm371, %v646, 0
      %v678 = vsel %vm371, %v647, 0
      %v681 = vsel %vm371, %v648, 0
      %v684 = vsel %vm371, %v649, 0
      %686 = vmatpush.bf16.msra.mxu0 0
      %687 = vmatpush.bf16.msra.mxu0 0
      %688 = vmatpush.bf16.msra.mxu0 0
      %689 = vmatpush.bf16.msra.mxu0 0
      %690 = vmatpush.bf16.msra.mxu0 %v669
      %691 = vmatpush.bf16.msra.mxu0 %v668
      %692 = vmatpush.bf16.msra.mxu0 %v667
      %693 = vmatpush.bf16.msra.mxu0 %v666
      %694 = vmatmul.bf16.gmra.mxu0 %v675
      %v695 = vpop.f32.mrf.mxu0
      %v696 = vadd.f32 0.0, %v695
      %v697 = vpop.f32.mrf.mxu0
      %v698 = vadd.f32 0.0, %v697
      %699 = vmatmul.bf16.gmra.mxu0 %v678
      %v700 = vpop.f32.mrf.mxu0
      %v701 = vadd.f32 0.0, %v700
      %v702 = vpop.f32.mrf.mxu0
      %v703 = vadd.f32 0.0, %v702
      %704 = vmatmul.bf16.gmra.mxu0 %v681
      %v705 = vpop.f32.mrf.mxu0
      %v706 = vadd.f32 0.0, %v705
      %v707 = vpop.f32.mrf.mxu0
      %v708 = vadd.f32 0.0, %v707
      %709 = vmatmul.bf16.gmra.mxu0 %v684
      %v710 = vpop.f32.mrf.mxu0
      %v711 = vadd.f32 0.0, %v710
      %v712 = vpop.f32.mrf.mxu0
      %v713 = vadd.f32 0.0, %v712
      %714 = vdwg.mxu0
      %v715 = vadd.f32 %v627, %v696
      %v716 = vadd.f32 %v628, %v698
      %v717 = vadd.f32 %v629, %v701
      %v718 = vadd.f32 %v630, %v703
      %v719 = vadd.f32 %v631, %v706
      %v720 = vadd.f32 %v632, %v708
      %v721 = vadd.f32 %v633, %v711
      %v722 = vadd.f32 %v634, %v713
      %v724 = vshrl.u32 %v199, 16
      %v726 = vrot.slane %v724, 4
      %v727 = vshll.u32 %v199, 16
      %v729 = vrot.slane %v727, 5
      %v730 = vor.u32 %v726, %v729
      %v731 = vrot.slane %v730, 4
      %v733 = vshll.u32 %v200, 16
      %v735 = vrot.slane %v733, 5
      %v736 = vsel %vm213, %v731, %v735
      %s737 = scalar_lea.vmem %s1, 128
      %v738 = vld [vmem:[%s737] sm:$0xf]
      %v739 = vld [vmem:[%s737 + $0x4] sm:$0xf]
      %v740 = vld [vmem:[%s737 + $0x8] sm:$0xf]
      %v741 = vld [vmem:[%s737 + $0xc] sm:$0xf]
      %v742 = vld [vmem:[%s737 + $0x10] sm:$0xf]
      %v743 = vld [vmem:[%s737 + $0x14] sm:$0xf]
      %v744 = vld [vmem:[%s737 + $0x18] sm:$0xf]
      %v745 = vld [vmem:[%s737 + $0x1c] sm:$0xf]
      %v746 = vunpack.c.l.b16 %v736
      %v747 = vpack.c.b16 %v337, %v336
      %v748 = vpack.c.b16 %v339, %v338
      %v749 = vpack.c.b16 %v341, %v340
      %v750 = vpack.c.b16 %v746, %v342
      %v759 = vunpack.c.l.b16 %v738
      %v760 = vunpack.c.l.b16 %v739
      %v761 = vunpack.c.l.b16 %v740
      %v762 = vunpack.c.l.b16 %v741
      %v763 = vunpack.c.l.b16 %v742
      %v764 = vunpack.c.l.b16 %v743
      %v765 = vunpack.c.l.b16 %v744
      %v766 = vunpack.c.l.b16 %v745
      %v767 = vpack.c.b16 %v760, %v759
      %v768 = vpack.c.b16 %v762, %v761
      %v769 = vpack.c.b16 %v764, %v763
      %v770 = vpack.c.b16 %v766, %v765
      %v776 = vsel %vm371, %v747, 0
      %v779 = vsel %vm371, %v748, 0
      %v782 = vsel %vm371, %v749, 0
      %v785 = vsel %vm371, %v750, 0
      %787 = vmatpush.bf16.msra.mxu0 0
      %788 = vmatpush.bf16.msra.mxu0 0
      %789 = vmatpush.bf16.msra.mxu0 0
      %790 = vmatpush.bf16.msra.mxu0 0
      %791 = vmatpush.bf16.msra.mxu0 %v770
      %792 = vmatpush.bf16.msra.mxu0 %v769
      %793 = vmatpush.bf16.msra.mxu0 %v768
      %794 = vmatpush.bf16.msra.mxu0 %v767
      %795 = vmatmul.bf16.gmra.mxu0 %v776
      %v796 = vpop.f32.mrf.mxu0
      %v797 = vadd.f32 0.0, %v796
      %v798 = vpop.f32.mrf.mxu0
      %v799 = vadd.f32 0.0, %v798
      %800 = vmatmul.bf16.gmra.mxu0 %v779
      %v801 = vpop.f32.mrf.mxu0
      %v802 = vadd.f32 0.0, %v801
      %v803 = vpop.f32.mrf.mxu0
      %v804 = vadd.f32 0.0, %v803
      %805 = vmatmul.bf16.gmra.mxu0 %v782
      %v806 = vpop.f32.mrf.mxu0
      %v807 = vadd.f32 0.0, %v806
      %v808 = vpop.f32.mrf.mxu0
      %v809 = vadd.f32 0.0, %v808
      %810 = vmatmul.bf16.gmra.mxu0 %v785
      %v811 = vpop.f32.mrf.mxu0
      %v812 = vadd.f32 0.0, %v811
      %v813 = vpop.f32.mrf.mxu0
      %v814 = vadd.f32 0.0, %v813
      %815 = vdwg.mxu0
      %v816 = vadd.f32 %v715, %v797
      %v817 = vadd.f32 %v716, %v799
      %v818 = vadd.f32 %v717, %v802
      %v819 = vadd.f32 %v718, %v804
      %v820 = vadd.f32 %v719, %v807
      %v821 = vadd.f32 %v720, %v809
      %v822 = vadd.f32 %v721, %v812
      %v823 = vadd.f32 %v722, %v814
      %v825 = vrot.slane %v199, 5
      %v826 = vrot.slane %v825, 4
      %v827 = vrot.slane %v200, 5
      %v828 = vsel %vm508, %v826, %v827
      %s829 = scalar_lea.vmem %s1, 160
      %v830 = vld [vmem:[%s829] sm:$0xf]
      %v831 = vld [vmem:[%s829 + $0x4] sm:$0xf]
      %v832 = vld [vmem:[%s829 + $0x8] sm:$0xf]
      %v833 = vld [vmem:[%s829 + $0xc] sm:$0xf]
      %v834 = vld [vmem:[%s829 + $0x10] sm:$0xf]
      %v835 = vld [vmem:[%s829 + $0x14] sm:$0xf]
      %v836 = vld [vmem:[%s829 + $0x18] sm:$0xf]
      %v837 = vld [vmem:[%s829 + $0x1c] sm:$0xf]
      %v838 = vunpack.c.l.b16 %v828
      %v839 = vpack.c.b16 %v552, %v551
      %v840 = vpack.c.b16 %v554, %v553
      %v841 = vpack.c.b16 %v556, %v555
      %v842 = vpack.c.b16 %v838, %v557
      %v851 = vunpack.c.l.b16 %v830
      %v852 = vunpack.c.l.b16 %v831
      %v853 = vunpack.c.l.b16 %v832
      %v854 = vunpack.c.l.b16 %v833
      %v855 = vunpack.c.l.b16 %v834
      %v856 = vunpack.c.l.b16 %v835
      %v857 = vunpack.c.l.b16 %v836
      %v858 = vunpack.c.l.b16 %v837
      %v859 = vpack.c.b16 %v852, %v851
      %v860 = vpack.c.b16 %v854, %v853
      %v861 = vpack.c.b16 %v856, %v855
      %v862 = vpack.c.b16 %v858, %v857
      %v868 = vsel %vm371, %v839, 0
      %v871 = vsel %vm371, %v840, 0
      %v874 = vsel %vm371, %v841, 0
      %v877 = vsel %vm371, %v842, 0
      %879 = vmatpush.bf16.msra.mxu0 0
      %880 = vmatpush.bf16.msra.mxu0 0
      %881 = vmatpush.bf16.msra.mxu0 0
      %882 = vmatpush.bf16.msra.mxu0 0
      %883 = vmatpush.bf16.msra.mxu0 %v862
      %884 = vmatpush.bf16.msra.mxu0 %v861
      %885 = vmatpush.bf16.msra.mxu0 %v860
      %886 = vmatpush.bf16.msra.mxu0 %v859
      %887 = vmatmul.bf16.gmra.mxu0 %v868
      %v888 = vpop.f32.mrf.mxu0
      %v889 = vadd.f32 0.0, %v888
      %v890 = vpop.f32.mrf.mxu0
      %v891 = vadd.f32 0.0, %v890
      %892 = vmatmul.bf16.gmra.mxu0 %v871
      %v893 = vpop.f32.mrf.mxu0
      %v894 = vadd.f32 0.0, %v893
      %v895 = vpop.f32.mrf.mxu0
      %v896 = vadd.f32 0.0, %v895
      %897 = vmatmul.bf16.gmra.mxu0 %v874
      %v898 = vpop.f32.mrf.mxu0
      %v899 = vadd.f32 0.0, %v898
      %v900 = vpop.f32.mrf.mxu0
      %v901 = vadd.f32 0.0, %v900
      %902 = vmatmul.bf16.gmra.mxu0 %v877
      %v903 = vpop.f32.mrf.mxu0
      %v904 = vadd.f32 0.0, %v903
      %v905 = vpop.f32.mrf.mxu0
      %v906 = vadd.f32 0.0, %v905
      %907 = vdwg.mxu0
      %v908 = vadd.f32 %v816, %v889
      %v909 = vadd.f32 %v817, %v891
      %v910 = vadd.f32 %v818, %v894
      %v911 = vadd.f32 %v819, %v896
      %v912 = vadd.f32 %v820, %v899
      %v913 = vadd.f32 %v821, %v901
      %v914 = vadd.f32 %v822, %v904
      %v915 = vadd.f32 %v823, %v906
      %s916 = scalar_lea.vmem %s1, 192
      %v917 = vld [vmem:[%s916] sm:$0xf]
      %v918 = vld [vmem:[%s916 + $0x4] sm:$0xf]
      %v919 = vld [vmem:[%s916 + $0x8] sm:$0xf]
      %v920 = vld [vmem:[%s916 + $0xc] sm:$0xf]
      %v921 = vld [vmem:[%s916 + $0x10] sm:$0xf]
      %v922 = vld [vmem:[%s916 + $0x14] sm:$0xf]
      %v923 = vld [vmem:[%s916 + $0x18] sm:$0xf]
      %v924 = vld [vmem:[%s916 + $0x1c] sm:$0xf]
      %v926 = vunpack.c.l.b16 %v201
      %v927 = vpack.c.b16 %v926, %v645
      %v936 = vunpack.c.l.b16 %v917
      %v937 = vunpack.c.l.b16 %v918
      %v938 = vunpack.c.l.b16 %v919
      %v939 = vunpack.c.l.b16 %v920
      %v940 = vunpack.c.l.b16 %v921
      %v941 = vunpack.c.l.b16 %v922
      %v942 = vunpack.c.l.b16 %v923
      %v943 = vunpack.c.l.b16 %v924
      %v944 = vpack.c.b16 %v937, %v936
      %v945 = vpack.c.b16 %v939, %v938
      %v946 = vpack.c.b16 %v941, %v940
      %v947 = vpack.c.b16 %v943, %v942
      %v953 = vsel %vm371, %v927, 0
      %955 = vmatpush.bf16.msra.mxu0 0
      %956 = vmatpush.bf16.msra.mxu0 0
      %957 = vmatpush.bf16.msra.mxu0 0
      %958 = vmatpush.bf16.msra.mxu0 0
      %959 = vmatpush.bf16.msra.mxu0 %v947
      %960 = vmatpush.bf16.msra.mxu0 %v946
      %961 = vmatpush.bf16.msra.mxu0 %v945
      %962 = vmatpush.bf16.msra.mxu0 %v944
      %963 = vmatmul.bf16.gmra.mxu0 %v461
      %v964 = vpop.f32.mrf.mxu0
      %v965 = vadd.f32 0.0, %v964
      %v966 = vpop.f32.mrf.mxu0
      %v967 = vadd.f32 0.0, %v966
      %968 = vmatmul.bf16.gmra.mxu0 %v464
      %v969 = vpop.f32.mrf.mxu0
      %v970 = vadd.f32 0.0, %v969
      %v971 = vpop.f32.mrf.mxu0
      %v972 = vadd.f32 0.0, %v971
      %973 = vmatmul.bf16.gmra.mxu0 %v467
      %v974 = vpop.f32.mrf.mxu0
      %v975 = vadd.f32 0.0, %v974
      %v976 = vpop.f32.mrf.mxu0
      %v977 = vadd.f32 0.0, %v976
      %978 = vmatmul.bf16.gmra.mxu0 %v953
      %v979 = vpop.f32.mrf.mxu0
      %v980 = vadd.f32 0.0, %v979
      %v981 = vpop.f32.mrf.mxu0
      %v982 = vadd.f32 0.0, %v981
      %983 = vdwg.mxu0
      %v984 = vadd.f32 %v908, %v965
      %v985 = vadd.f32 %v909, %v967
      %v986 = vadd.f32 %v910, %v970
      %v987 = vadd.f32 %v911, %v972
      %v988 = vadd.f32 %v912, %v975
      %v989 = vadd.f32 %v913, %v977
      %v990 = vadd.f32 %v914, %v980
      %v991 = vadd.f32 %v915, %v982
      %v993 = vshrl.u32 %v201, 16
      %v995 = vrot.slane %v993, 4
      %v996 = vshll.u32 %v201, 16
      %v998 = vrot.slane %v996, 5
      %v999 = vor.u32 %v995, %v998
      %v1000 = vrot.slane %v999, 4
      %v1002 = vshll.u32 %v202, 16
      %v1004 = vrot.slane %v1002, 5
      %v1005 = vsel %vm213, %v1000, %v1004
      %s1006 = scalar_lea.vmem %s1, 224
      %v1007 = vld [vmem:[%s1006] sm:$0xf]
      %v1008 = vld [vmem:[%s1006 + $0x4] sm:$0xf]
      %v1009 = vld [vmem:[%s1006 + $0x8] sm:$0xf]
      %v1010 = vld [vmem:[%s1006 + $0xc] sm:$0xf]
      %v1011 = vld [vmem:[%s1006 + $0x10] sm:$0xf]
      %v1012 = vld [vmem:[%s1006 + $0x14] sm:$0xf]
      %v1013 = vld [vmem:[%s1006 + $0x18] sm:$0xf]
      %v1014 = vld [vmem:[%s1006 + $0x1c] sm:$0xf]
      %v1015 = vunpack.c.l.b16 %v1005
      %v1016 = vpack.c.b16 %v1015, %v746
      %v1025 = vunpack.c.l.b16 %v1007
      %v1026 = vunpack.c.l.b16 %v1008
      %v1027 = vunpack.c.l.b16 %v1009
      %v1028 = vunpack.c.l.b16 %v1010
      %v1029 = vunpack.c.l.b16 %v1011
      %v1030 = vunpack.c.l.b16 %v1012
      %v1031 = vunpack.c.l.b16 %v1013
      %v1032 = vunpack.c.l.b16 %v1014
      %v1033 = vpack.c.b16 %v1026, %v1025
      %v1034 = vpack.c.b16 %v1028, %v1027
      %v1035 = vpack.c.b16 %v1030, %v1029
      %v1036 = vpack.c.b16 %v1032, %v1031
      %v1042 = vsel %vm371, %v1016, 0
      %1044 = vmatpush.bf16.msra.mxu0 0
      %1045 = vmatpush.bf16.msra.mxu0 0
      %1046 = vmatpush.bf16.msra.mxu0 0
      %1047 = vmatpush.bf16.msra.mxu0 0
      %1048 = vmatpush.bf16.msra.mxu0 %v1036
      %1049 = vmatpush.bf16.msra.mxu0 %v1035
      %1050 = vmatpush.bf16.msra.mxu0 %v1034
      %1051 = vmatpush.bf16.msra.mxu0 %v1033
      %1052 = vmatmul.bf16.gmra.mxu0 %v376
      %v1053 = vpop.f32.mrf.mxu0
      %v1054 = vadd.f32 0.0, %v1053
      %v1055 = vpop.f32.mrf.mxu0
      %v1056 = vadd.f32 0.0, %v1055
      %1057 = vmatmul.bf16.gmra.mxu0 %v379
      %v1058 = vpop.f32.mrf.mxu0
      %v1059 = vadd.f32 0.0, %v1058
      %v1060 = vpop.f32.mrf.mxu0
      %v1061 = vadd.f32 0.0, %v1060
      %1062 = vmatmul.bf16.gmra.mxu0 %v382
      %v1063 = vpop.f32.mrf.mxu0
      %v1064 = vadd.f32 0.0, %v1063
      %v1065 = vpop.f32.mrf.mxu0
      %v1066 = vadd.f32 0.0, %v1065
      %1067 = vmatmul.bf16.gmra.mxu0 %v1042
      %v1068 = vpop.f32.mrf.mxu0
      %v1069 = vadd.f32 0.0, %v1068
      %v1070 = vpop.f32.mrf.mxu0
      %v1071 = vadd.f32 0.0, %v1070
      %1072 = vdwg.mxu0
      %v1073 = vadd.f32 %v984, %v1054
      %v1074 = vadd.f32 %v985, %v1056
      %v1075 = vadd.f32 %v986, %v1059
      %v1076 = vadd.f32 %v987, %v1061
      %v1077 = vadd.f32 %v988, %v1064
      %v1078 = vadd.f32 %v989, %v1066
      %v1079 = vadd.f32 %v990, %v1069
      %v1080 = vadd.f32 %v991, %v1071
      %v1082 = vrot.slane %v201, 5
      %v1083 = vrot.slane %v1082, 4
      %v1084 = vrot.slane %v202, 5
      %v1085 = vsel %vm508, %v1083, %v1084
      %s1086 = scalar_lea.vmem %s1, 256
      %v1087 = vld [vmem:[%s1086] sm:$0xf]
      %v1088 = vld [vmem:[%s1086 + $0x4] sm:$0xf]
      %v1089 = vld [vmem:[%s1086 + $0x8] sm:$0xf]
      %v1090 = vld [vmem:[%s1086 + $0xc] sm:$0xf]
      %v1091 = vld [vmem:[%s1086 + $0x10] sm:$0xf]
      %v1092 = vld [vmem:[%s1086 + $0x14] sm:$0xf]
      %v1093 = vld [vmem:[%s1086 + $0x18] sm:$0xf]
      %v1094 = vld [vmem:[%s1086 + $0x1c] sm:$0xf]
      %v1095 = vunpack.c.l.b16 %v1085
      %v1096 = vpack.c.b16 %v1095, %v838
      %v1105 = vunpack.c.l.b16 %v1087
      %v1106 = vunpack.c.l.b16 %v1088
      %v1107 = vunpack.c.l.b16 %v1089
      %v1108 = vunpack.c.l.b16 %v1090
      %v1109 = vunpack.c.l.b16 %v1091
      %v1110 = vunpack.c.l.b16 %v1092
      %v1111 = vunpack.c.l.b16 %v1093
      %v1112 = vunpack.c.l.b16 %v1094
      %v1113 = vpack.c.b16 %v1106, %v1105
      %v1114 = vpack.c.b16 %v1108, %v1107
      %v1115 = vpack.c.b16 %v1110, %v1109
      %v1116 = vpack.c.b16 %v1112, %v1111
      %v1122 = vsel %vm371, %v1096, 0
      %1124 = vmatpush.bf16.msra.mxu0 0
      %1125 = vmatpush.bf16.msra.mxu0 0
      %1126 = vmatpush.bf16.msra.mxu0 0
      %1127 = vmatpush.bf16.msra.mxu0 0
      %1128 = vmatpush.bf16.msra.mxu0 %v1116
      %1129 = vmatpush.bf16.msra.mxu0 %v1115
      %1130 = vmatpush.bf16.msra.mxu0 %v1114
      %1131 = vmatpush.bf16.msra.mxu0 %v1113
      %1132 = vmatmul.bf16.gmra.mxu0 %v590
      %v1133 = vpop.f32.mrf.mxu0
      %v1134 = vadd.f32 0.0, %v1133
      %v1135 = vpop.f32.mrf.mxu0
      %v1136 = vadd.f32 0.0, %v1135
      %1137 = vmatmul.bf16.gmra.mxu0 %v593
      %v1138 = vpop.f32.mrf.mxu0
      %v1139 = vadd.f32 0.0, %v1138
      %v1140 = vpop.f32.mrf.mxu0
      %v1141 = vadd.f32 0.0, %v1140
      %1142 = vmatmul.bf16.gmra.mxu0 %v596
      %v1143 = vpop.f32.mrf.mxu0
      %v1144 = vadd.f32 0.0, %v1143
      %v1145 = vpop.f32.mrf.mxu0
      %v1146 = vadd.f32 0.0, %v1145
      %1147 = vmatmul.bf16.gmra.mxu0 %v1122
      %v1148 = vpop.f32.mrf.mxu0
      %v1149 = vadd.f32 0.0, %v1148
      %v1150 = vpop.f32.mrf.mxu0
      %v1151 = vadd.f32 0.0, %v1150
      %1152 = vdwg.mxu0
      %v1153 = vadd.f32 %v1073, %v1134
      %v1154 = vadd.f32 %v1074, %v1136
      %v1155 = vadd.f32 %v1075, %v1139
      %v1156 = vadd.f32 %v1076, %v1141
      %v1157 = vadd.f32 %v1077, %v1144
      %v1158 = vadd.f32 %v1078, %v1146
      %v1159 = vadd.f32 %v1079, %v1149
      %v1160 = vadd.f32 %v1080, %v1151
      %1161 = vst [vmem:[%s177] sm:$0xff] %v1153
      %1162 = vst [vmem:[%s177 + $0x8] sm:$0xff] %v1154
      %1163 = vst [vmem:[%s177 + $0x10] sm:$0xff] %v1155
      %1164 = vst [vmem:[%s177 + $0x18] sm:$0xff] %v1156
      %1165 = vst [vmem:[%s177 + $0x20] sm:$0xff] %v1157
      %1166 = vst [vmem:[%s177 + $0x28] sm:$0xff] %v1158
      %1167 = vst [vmem:[%s177 + $0x30] sm:$0xff] %v1159
      %1168 = vst [vmem:[%s177 + $0x38] sm:$0xff] %v1160
      %v1169 = vadd.f32 %v1153, %v1154
      %v1170 = vadd.f32 %v1169, %v1155
      %v1171 = vadd.f32 %v1170, %v1156
      %v1172 = vadd.f32 %v1171, %v1157
      %v1173 = vadd.f32 %v1172, %v1158
      %v1174 = vadd.f32 %v1173, %v1159
      %v1175 = vadd.f32 %v1174, %v1160
      %v1176 = vrot.slane %v1175, 4
      %v1177 = vadd.f32 %v1175, %v1176
      %v1178 = vrot.slane %v1177, 2
      %v1179 = vadd.f32 %v1177, %v1178
      %v1180 = vrot.slane %v1179, 1
      %v1181 = vadd.f32 %v1179, %v1180
      %v1182 = vmul.f32 %v1153, %v1153
      %v1183 = vmul.f32 %v1154, %v1154
      %v1184 = vmul.f32 %v1155, %v1155
      %v1185 = vmul.f32 %v1156, %v1156
      %v1186 = vmul.f32 %v1157, %v1157
      %v1187 = vmul.f32 %v1158, %v1158
      %v1188 = vmul.f32 %v1159, %v1159
      %v1189 = vmul.f32 %v1160, %v1160
      %v1190 = vadd.f32 %v1182, %v1183
      %v1191 = vadd.f32 %v1190, %v1184
      %v1192 = vadd.f32 %v1191, %v1185
      %v1193 = vadd.f32 %v1192, %v1186
      %v1194 = vadd.f32 %v1193, %v1187
      %v1195 = vadd.f32 %v1194, %v1188
      %v1196 = vadd.f32 %v1195, %v1189
      %v1197 = vrot.slane %v1196, 4
      %v1198 = vadd.f32 %v1196, %v1197
      %v1199 = vrot.slane %v1198, 2
      %v1200 = vadd.f32 %v1198, %v1199
      %v1201 = vrot.slane %v1200, 1
      %v1202 = vadd.f32 %v1200, %v1201
      %vm1203 = vcmask 1040384
      %v1204 = vsel %vm1203, %v1181, %v1202
      %1205 = vst [vmem:[%s181] sm:$0x3] %v1204
      %p1206 = scmp.lt.s32.totalorder %s15, 1
      %s1207 = scalar_select %p1206, %s15, 1
      %s1208 = smul.addr %s1207, 8
      %s1209 = smul.addr %s1208, 8
      %s1210 = scalar_lea.vmem %s2, %s1209
      %p1211 = scmp.lt.s32.totalorder %s15, 1
      %s1212 = scalar_select %p1211, %s15, 1
      %s1213 = smul.addr %s1212, 2
      %s1214 = scalar_lea.vmem %s3, %s1213
      // Predicated region
      $region29: #{feature_map_convolution.11} parent=27 // pred_check
        %p1215 = pneg %p80
      $region30: #{feature_map_convolution.11} parent=27 // pred_check_branch
        %1217 = sbr.rel (%p1215) target = $region32
      $region31: #{feature_map_convolution.11} parent=27 // pred_region
        _
      $region32: #{feature_map_convolution.11} parent=27 // pred_fallthru
        _
      // Predicated region
      $region33: #{feature_map_convolution.11} parent=27 // pred_check
        %p1218 = pneg %p106
      $region34: #{feature_map_convolution.11} parent=27 // pred_check_branch
        %1220 = sbr.rel (%p1218) target = $region36
      $region35: #{feature_map_convolution.11} parent=27 // pred_region
        _
      $region36: #{feature_map_convolution.11} parent=27 // pred_fallthru
        _
    $region28: #{feature_map_convolution.11} parent=5 // pred_fallthru
      _
    %p1221 = scmp.le.s32.totalorder 2, %s10
    // Predicated region
    $region37: #{feature_map_convolution.11} parent=5 // pred_check
      %p1222 = pneg %p1221
    $region38: #{feature_map_convolution.11} parent=5 // pred_check_branch
      %1224 = sbr.rel (%p1222) target = $region40
    $region39: #{feature_map_convolution.11} parent=5 // pred_region
      %s1225 = ssub.s32 %s10, 2
      // Predicated region
      $region41: #{feature_map_convolution.11} parent=39 // pred_check
        %p1226 = pneg %p86
      $region42: #{feature_map_convolution.11} parent=39 // pred_check_branch
        %1228 = sbr.rel (%p1226) target = $region44
      $region43: #{feature_map_convolution.11} parent=39 // pred_region
        %p1229 = scmp.lt.s32.totalorder %s16, 1
        %s1230 = scalar_select %p1229, %s16, 1
        %s1231 = smul.addr %s1230, 8
        %s1232 = smul.addr %s1231, 8
        %s1233 = scalar_lea.vmem %s2, %s1232
      $region44: #{feature_map_convolution.11} parent=39 // pred_fallthru
        _
      // Predicated region
      $region45: #{feature_map_convolution.11} parent=39 // pred_check
        %p1234 = pneg %p112
      $region46: #{feature_map_convolution.11} parent=39 // pred_check_branch
        %1236 = sbr.rel (%p1234) target = $region48
      $region47: #{feature_map_convolution.11} parent=39 // pred_region
        %p1237 = scmp.lt.s32.totalorder %s16, 1
        %s1238 = scalar_select %p1237, %s16, 1
        %s1239 = smul.addr %s1238, 2
        %s1240 = scalar_lea.vmem %s3, %s1239
      $region48: #{feature_map_convolution.11} parent=39 // pred_fallthru
        _
    $region40: #{feature_map_convolution.11} parent=5 // pred_fallthru
      _
  $region6: #{feature_map_convolution.11} parent=0 // loop_footer
    %s14 = sadd.s32 1, %s10
  $region7: #{feature_map_convolution.11} parent=0 // loop_footer_branch
    %9 = sbr.rel target = $region3
  $region8: #{feature_map_convolution.11} parent=0 // loop_exit
    _

// kernel: feature_map_convolution.13
$region0: #{feature_map_convolution.13}
  #allocation0 [shape = 'u32[]', space=smem, size = 0x4, offset = 0x4, fixed_abs, tag = 'smem constant byte address 0x4 - core index']
  #allocation1 [shape = 'u32[72,128]{1,0:T(1,128)}', space=vmem, size = 0x9000, scoped, tag = 'internal scratch']
  %s0 = inlined_call_operand.vmem [shape: f32[8,5,5,128], index: 0, kind: input, shape index: {}]
  %s1 = inlined_call_operand.hbm [shape: f32[2,4,4,128], index: 1, kind: output, shape index: {}]
  %s2 = sld [smem:[#allocation0]]
  $region37: #{feature_map_convolution.13} parent=0
    _
  %s4 = ssub.s32 1, %s2
  %s5 = scalar_select 0, %s4, %s2
  $region1: #{feature_map_convolution.13} parent=0
    #allocation2 [shape = 'u8[16384]{0}', space=vmem, size = 0x4000, scoped, tag = 'output window, operand 0']
    #allocation3 [shape = 's32[2]{0}', space=sflag, size = 0x8, scoped, tag = 'scoped memory for feature_map_convolution.13']
    %6 = vsyncpa [#allocation3], 0
    %s7 = scalar_lea.sflag [#allocation3], 1
    %8 = vsyncpa %s7, 0
    loop: start=0, step=1, limit=4
    $region2: #{feature_map_convolution.13} parent=1 // loop_pre_header
      _
    $region3: #{feature_map_convolution.13} parent=1 // loop_header
      %s10 = sphi 0, %s14
      %p11 = scmp.ge.s32.totalorder %s10, 4
      %s20 = sphi 0, %s22
      %s23 = sphi 0, %s20
      %s24 = sphi 0, %s23
      %s40 = sphi 0, %s24
      %s46 = sphi 0, %s48
      %s49 = sphi 0, %s46
      %s50 = sphi 0, %s49
      %s66 = sphi 0, %s50
    $region4: #{feature_map_convolution.13} parent=1 // loop_header_branch
      %13 = sbr.rel (%p11) target = $region8
    $region5: #{feature_map_convolution.13} parent=1 // loop_body
      %s15 = ssub.s32 %s10, 1
      %s16 = ssub.s32 %s10, 2
      %s17 = sadd.s32 %s10, 1
      %s18 = ssub.s32 %s10, %s17
      %p19 = scmp.eq.s32.totalorder %s18, 0
      %s21 = sadd.s32 %s20, 1
      %s22 = scalar_select %p19, %s20, %s21
      %p25 = pneg %p19
      %p26 = scmp.eq.s32.totalorder %s10, 1
      %p27 = por %p25, %p26
      %p28 = scmp.ne.s32.totalorder %s20, %s23
      %p29 = scmp.eq.s32.totalorder %s10, 0
      %p30 = por %p28, %p29
      %p31 = scmp.ne.s32.totalorder %s20, %s23
      %p32 = scmp.eq.s32.totalorder %s15, 1
      %p33 = por %p31, %p32
      %p34 = scmp.ne.s32.totalorder %s23, %s24
      %p35 = scmp.eq.s32.totalorder %s15, 0
      %p36 = por %p34, %p35
      %p37 = scmp.ne.s32.totalorder %s23, %s24
      %p38 = scmp.eq.s32.totalorder %s16, 1
      %p39 = por %p37, %p38
      %p41 = scmp.ne.s32.totalorder %s24, %s40
      %p42 = scmp.eq.s32.totalorder %s16, 0
      %p43 = por %p41, %p42
      %s44 = ssub.s32 %s10, %s17
      %p45 = scmp.eq.s32.totalorder %s44, 0
      %s47 = sadd.s32 %s46, 1
      %s48 = scalar_select %p45, %s46, %s47
      %p51 = pneg %p45
      %p52 = scmp.eq.s32.totalorder %s10, 1
      %p53 = por %p51, %p52
      %p54 = scmp.ne.s32.totalorder %s46, %s49
      %p55 = scmp.eq.s32.totalorder %s10, 0
      %p56 = por %p54, %p55
      %p57 = scmp.ne.s32.totalorder %s46, %s49
      %p58 = scmp.eq.s32.totalorder %s15, 1
      %p59 = por %p57, %p58
      %p60 = scmp.ne.s32.totalorder %s49, %s50
      %p61 = scmp.eq.s32.totalorder %s15, 0
      %p62 = por %p60, %p61
      %p63 = scmp.ne.s32.totalorder %s49, %s50
      %p64 = scmp.eq.s32.totalorder %s16, 1
      %p65 = por %p63, %p64
      %p67 = scmp.ne.s32.totalorder %s50, %s66
      %p68 = scmp.eq.s32.totalorder %s16, 0
      %p69 = por %p67, %p68
      %p70 = scmp.le.s32.totalorder 1, %s10
      %p71 = scmp.lt.s32.totalorder %s10, 3
      %p72 = pnand %p70, %p71
      %p73 = pneg %p72
      // Predicated region
      $region9: #{feature_map_convolution.13} parent=5 // pred_check
        _
      $region10: #{feature_map_convolution.13} parent=5 // pred_check_branch
        %75 = sbr.rel (%p72) target = $region12
      $region11: #{feature_map_convolution.13} parent=5 // pred_region
        %s76 = ssub.s32 %s10, 1
      $region12: #{feature_map_convolution.13} parent=5 // pred_fallthru
        _
      %p77 = scmp.lt.s32.totalorder %s10, 2
      // Predicated region
      $region13: #{feature_map_convolution.13} parent=5 // pred_check
        %p78 = pneg %p77
      $region14: #{feature_map_convolution.13} parent=5 // pred_check_branch
        %80 = sbr.rel (%p78) target = $region16
      $region15: #{feature_map_convolution.13} parent=5 // pred_region
        // Predicated region
        $region17: #{feature_map_convolution.13} parent=15 // pred_check
          %p81 = pneg %p30
        $region18: #{feature_map_convolution.13} parent=15 // pred_check_branch
          %83 = sbr.rel (%p81) target = $region20
        $region19: #{feature_map_convolution.13} parent=15 // pred_region
          %s84 = smul.u32 4, %s10
          %p85 = scmp.lt.s32.totalorder %s84, 7
          %s86 = scalar_select %p85, %s84, 7
          %s87 = smul.addr %s86, 5
          %s88 = smul.addr %s87, 8
          %s89 = scalar_lea.vmem %s0, %s88
          %s90 = smul.u32 4, %s10
        $region20: #{feature_map_convolution.13} parent=15 // pred_fallthru
          _
      $region16: #{feature_map_convolution.13} parent=5 // pred_fallthru
        _
      %p91 = scmp.le.s32.totalorder 1, %s10
      %p92 = scmp.lt.s32.totalorder %s10, 3
      %p93 = pnand %p91, %p92
      %p94 = pneg %p93
      // Predicated region
      $region21: #{feature_map_convolution.13} parent=5 // pred_check
        _
      $region22: #{feature_map_convolution.13} parent=5 // pred_check_branch
        %96 = sbr.rel (%p93) target = $region24
      $region23: #{feature_map_convolution.13} parent=5 // pred_region
        %s97 = ssub.s32 %s10, 1
        %s98 = smul.u32 4, %s15
        %p99 = scmp.lt.s32.totalorder %s98, 7
        %s100 = scalar_select %p99, %s98, 7
        %s101 = smul.addr %s100, 5
        %s102 = smul.addr %s101, 8
        %s103 = scalar_lea.vmem %s0, %s102
        %p104 = pneg %p36
        %p105 = pneg %p33
        %p106 = pneg %p62
        %p107 = pneg %p59
        %s108 = sand.u32 %s49, 1
        %s109 = scalar_lea.sflag [#allocation3], %s108
        %s110 = sand.u32 %s49, 1
        %s111 = smul.addr %s110, 16
        %s112 = scalar_lea.vmem [#allocation2], %s111
        %s113 = smul.u32 4, %s15
        %p114 = scmp.lt.s32.totalorder %s113, 7
        %s115 = scalar_select %p114, %s113, 7
        %s116 = smul.addr %s115, 5
        %s117 = smul.addr %s116, 8
        %s118 = scalar_lea.vmem %s0, %s117
        %s119 = smul.u32 4, %s15
        %v120 = vld [vmem:[%s118] sm:$0x1f]
        %v121 = vld [vmem:[%s118 + $0x8] sm:$0x1f]
        %v122 = vld [vmem:[%s118 + $0x10] sm:$0x1f]
        %v123 = vld [vmem:[%s118 + $0x18] sm:$0x1f]
        %v124 = vld [vmem:[%s118 + $0x20] sm:$0x1f]
        %s125 = scalar_lea.vmem %s118, 40
        %v126 = vld [vmem:[%s125] sm:$0x1f]
        %v127 = vld [vmem:[%s125 + $0x8] sm:$0x1f]
        %v128 = vld [vmem:[%s125 + $0x10] sm:$0x1f]
        %v129 = vld [vmem:[%s125 + $0x18] sm:$0x1f]
        %v130 = vld [vmem:[%s125 + $0x20] sm:$0x1f]
        %s131 = scalar_lea.vmem %s118, 80
        %v132 = vld [vmem:[%s131] sm:$0x1f]
        %v133 = vld [vmem:[%s131 + $0x8] sm:$0x1f]
        %v134 = vld [vmem:[%s131 + $0x10] sm:$0x1f]
        %v135 = vld [vmem:[%s131 + $0x18] sm:$0x1f]
        %s136 = scalar_lea.vmem %s118, 120
        %v137 = vld [vmem:[%s136] sm:$0x1f]
        %v138 = vld [vmem:[%s136 + $0x8] sm:$0x1f]
        %v139 = vld [vmem:[%s136 + $0x10] sm:$0x1f]
        %v140 = vld [vmem:[%s136 + $0x18] sm:$0x1f]
        %v145 = vrot.slane %v120, 1
        %v146 = vrot.slane %v121, 1
        %v147 = vrot.slane %v122, 1
        %v148 = vrot.slane %v123, 1
        %v153 = vmax.f32 %v120, %v145
        %v154 = vmax.f32 %v121, %v146
        %v155 = vmax.f32 %v122, %v147
        %v156 = vmax.f32 %v123, %v148
        %v157 = vmax.f32 %v153, %v121
        %v158 = vmax.f32 %v154, %v122
        %v159 = vmax.f32 %v155, %v123
        %v160 = vmax.f32 %v156, %v124
        %v162 = vrot.slane %v124, 1
        %v164 = vmax.f32 %v157, %v146
        %v165 = vmax.f32 %v158, %v147
        %v166 = vmax.f32 %v159, %v148
        %v167 = vmax.f32 %v160, %v162
        %v168 = vmax.f32 %v164, %v126
        %v169 = vmax.f32 %v165, %v127
        %v170 = vmax.f32 %v166, %v128
        %v171 = vmax.f32 %v167, %v129
        %v172 = vmax.f32 %v168, %v127
        %v173 = vmax.f32 %v169, %v128
        %v174 = vmax.f32 %v170, %v129
        %v175 = vmax.f32 %v171, %v130
        %v176 = vmax.f32 %v172, %v132
        %v177 = vmax.f32 %v173, %v133
        %v178 = vmax.f32 %v174, %v134
        %v179 = vmax.f32 %v175, %v135
        %v184 = vrot.slane %v132, 1
        %v185 = vrot.slane %v133, 1
        %v186 = vrot.slane %v134, 1
        %v187 = vrot.slane %v135, 1
        %v192 = vmax.f32 %v176, %v184
        %v193 = vmax.f32 %v177, %v185
        %v194 = vmax.f32 %v178, %v186
        %v195 = vmax.f32 %v179, %v187
        %v196 = vmax.f32 %v192, %v137
        %v197 = vmax.f32 %v193, %v138
        %v198 = vmax.f32 %v194, %v139
        %v199 = vmax.f32 %v195, %v140
        %200 = vst [vmem:[%s112] sm:$0xf] %v196
        %201 = vst [vmem:[%s112 + $0x4] sm:$0xf] %v197
        %202 = vst [vmem:[%s112 + $0x8] sm:$0xf] %v198
        %203 = vst [vmem:[%s112 + $0xc] sm:$0xf] %v199
        %s204 = sand.u32 %s49, 1
        %s205 = scalar_lea.sflag [#allocation3], %s204
        %s206 = sand.u32 %s49, 1
        %s207 = smul.addr %s206, 16
        %s208 = scalar_lea.vmem [#allocation2], %s207
        // Predicated region
        $region25: #{feature_map_convolution.13} parent=23 // pred_check
          %p209 = pneg %p59
        $region26: #{feature_map_convolution.13} parent=23 // pred_check_branch
          %211 = sbr.rel (%p209) target = $region28
        $region27: #{feature_map_convolution.13} parent=23 // pred_region
          %213 = vsyncadd %s205, 0
          %s214 = smul.addr %s15, 4
          %s215 = smul.addr %s214, 4
          %s216 = scalar_lea.hbm %s1, %s215
          %s217 = sshll.u32 %s208, 4
          %s218 = int_to_ptr.vmem [resolvable:$true] %s217
          %s219 = sshll.u32 %s216, 4
          %s220 = int_to_ptr.hbm [resolvable:$true] %s219
          %225 = dma.vmem_to_hbm [thread:$0]  %s218, 256, %s220, %s205, 64, 64, 4
        $region28: #{feature_map_convolution.13} parent=23 // pred_fallthru
          _
      $region24: #{feature_map_convolution.13} parent=5 // pred_fallthru
        _
      %p226 = scmp.le.s32.totalorder 2, %s10
      // Predicated region
      $region29: #{feature_map_convolution.13} parent=5 // pred_check
        %p227 = pneg %p226
      $region30: #{feature_map_convolution.13} parent=5 // pred_check_branch
        %229 = sbr.rel (%p227) target = $region32
      $region31: #{feature_map_convolution.13} parent=5 // pred_region
        %s230 = ssub.s32 %s10, 2
        // Predicated region
        $region33: #{feature_map_convolution.13} parent=31 // pred_check
          %p231 = pneg %p65
        $region34: #{feature_map_convolution.13} parent=31 // pred_check_branch
          %233 = sbr.rel (%p231) target = $region36
        $region35: #{feature_map_convolution.13} parent=31 // pred_region
          %s234 = sand.u32 %s50, 1
          %s235 = scalar_lea.sflag [#allocation3], %s234
          %s236 = sand.u32 %s50, 1
          %s237 = smul.addr %s236, 16
          %s238 = scalar_lea.vmem [#allocation2], %s237
          %240 = dma.done %s235, 256
        $region36: #{feature_map_convolution.13} parent=31 // pred_fallthru
          _
      $region32: #{feature_map_convolution.13} parent=5 // pred_fallthru
        _
    $region6: #{feature_map_convolution.13} parent=1 // loop_footer
      %s14 = sadd.s32 1, %s10
    $region7: #{feature_map_convolution.13} parent=1 // loop_footer_branch
      %9 = sbr.rel target = $region3
    $region8: #{feature_map_convolution.13} parent=1 // loop_exit
      _
    %241 = vsyncpa [#allocation3], 1
    %s242 = scalar_lea.sflag [#allocation3], 1
    %243 = vsyncpa %s242, 1

</llo_original>
